<compile_context>
chip_gen: v7x
topology: tpu7x:2x2x1
jax: 0.10.0
libtpu: 0.0.40
codegen_flags: <defaults>
</compile_context>

<pallas_src>
import functools

import numpy as np

import jax
import jax.numpy as jnp
from jax.experimental import pallas as pl
from jax.experimental.pallas import tpu as pltpu


BN_EPS = 1e-5   # PyTorch BatchNorm2d default
MIN_TB = 16     # multiple of 16 keeps every bf16 slice tile-aligned
MAX_TB = 128


def _pick_tb(batch):
    """Batch tile: multiple of 16, <=128, and grid >= 2 when possible so
    dimension_semantics=("parallel",) can split across v7x's two TensorCores."""
    b16 = ((batch + 15) // 16) * 16
    tb = (b16 // 2) // 16 * 16          # aim for at least two grid steps
    return max(MIN_TB, min(MAX_TB, tb))


# ----------------------------------------------------------------------------
# Host-side weight preprocessing (pure re-indexing of the PyTorch weights)
# ----------------------------------------------------------------------------
def _make_band(w_conv, w_spatial, rows):
    """Banded conv-as-matmul matrices, one per vertical tap di.

    w_conv : (Cout, Cin, 5, 5) numpy conv weight (padding=2 'same' conv).
    Input lanes  : ci * w_spatial + x          (x = input column)
    Output lanes : s*128 + co*(w_spatial//2) + jh   for output column j=2*jh+s,
                   i.e. the two 2x2-pool column groups land in separate,
                   128-aligned lane halves.
    """
    cout, cin, _, _ = w_conv.shape
    wh = w_spatial // 2
    n = np.zeros((5, rows, 256), np.float32)
    for di in range(5):
        for co in range(cout):
            for ci in range(cin):
                for jh in range(wh):
                    for s in range(2):
                        j = 2 * jh + s
                        for dj in range(5):
                            x = j + dj - 2          # 'same' padding of 2
                            if 0 <= x < w_spatial:
                                n[di, ci * w_spatial + x,
                                  s * 128 + co * wh + jh] = w_conv[co, ci, di, dj]
    return n


def _epilogue_vectors(bias, gamma, beta, mean, var, wh):
    """Per-lane (256-wide) conv-bias / BN-scale / BN-shift vectors."""
    bias = np.asarray(bias, np.float32)
    scale = np.asarray(gamma, np.float32) / np.sqrt(np.asarray(var, np.float32) + BN_EPS)
    shift = np.asarray(beta, np.float32) - np.asarray(mean, np.float32) * scale

    def lane(v):
        out = np.zeros((256,), np.float32)
        half = np.repeat(v.astype(np.float32), wh)       # lane = co*wh + jh
        out[:half.size] = half
        out[128:128 + half.size] = half
        return out

    return np.stack([lane(bias), lane(scale), lane(shift)])   # (3, 256)


def _mlp1_weight(lw1):
    """Fold the NCHW flatten permutation into the first MLP weight.

    lw1: (400, 128) with row index f = co*25 + ih*5 + jw (PyTorch flatten).
    Returns (5, 128, 128): [ih, co*5 + jw, out], rows 80..127 zero padding.
    """
    w = np.asarray(lw1, np.float32).reshape(16, 5, 5, 128)   # (co, ih, jw, out)
    w = w.transpose(1, 0, 2, 3).reshape(5, 80, 128)          # (ih, co*5+jw, out)
    out = np.zeros((5, 128, 128), np.float32)
    out[:, :80, :] = w
    return out


def build_kernel_params(p, n_classes):
    assert n_classes <= 128
    w1 = np.asarray(p["w1"], np.float32)
    w2 = np.asarray(p["w2"], np.float32)
    bf16 = jnp.bfloat16

    # conv1: stack the 5 vertical taps along the contraction dim (K = 100 -> 128)
    n1 = _make_band(w1, 20, 20).reshape(100, 256)            # rows = di*20 + x
    n1 = np.pad(n1, ((0, 28), (0, 0)))

    # MLP2/MLP3 padded to full 128 lanes (zero rows/cols -> identical math)
    l2 = np.zeros((128, 128), np.float32)
    l2[:, :64] = np.asarray(p["lw2"], np.float32)
    l3 = np.zeros((128, 128), np.float32)
    l3[:64, :n_classes] = np.asarray(p["lw3"], np.float32)
    lb = np.zeros((3, 128), np.float32)
    lb[0, :] = np.asarray(p["lb1"], np.float32)
    lb[1, :64] = np.asarray(p["lb2"], np.float32)
    lb[2, :n_classes] = np.asarray(p["lb3"], np.float32)

    return {
        "n1": jnp.asarray(n1, bf16),                          # (128, 256)
        "n2": jnp.asarray(_make_band(w2, 10, 128), bf16),     # (5, 128, 256)
        "l1": jnp.asarray(_mlp1_weight(p["lw1"]), bf16),      # (5, 128, 128)
        "l2": jnp.asarray(l2, bf16),                          # (128, 128)
        "l3": jnp.asarray(l3, bf16),                          # (128, 128)
        "v1": jnp.asarray(_epilogue_vectors(p["b1"], p["g1"], p["be1"],
                                            p["rm1"], p["rv1"], 10)),   # (3,256) f32
        "v2": jnp.asarray(_epilogue_vectors(p["b2"], p["g2"], p["be2"],
                                            p["rm2"], p["rv2"], 5)),    # (3,256) f32
        "lb": jnp.asarray(lb),                                # (3, 128) f32
    }


# ----------------------------------------------------------------------------
# The fused Pallas kernel (whole forward pass for one batch tile of tb images)
# ----------------------------------------------------------------------------
def pnet_kernel(xs_ref, n1_ref, n2_ref, l1_ref, l2_ref, l3_ref,
                v1_ref, v2_ref, lb_ref, o_ref, h1s_ref, *, tb):
    f32 = jnp.float32
    bf16 = jnp.bfloat16

    # -------- Conv1(1->8,k5,p2) + ReLU + BN1 + MaxPool2x2 ------------------
    # xs_ref: (1, 4, 5*tb, 128) bf16, indexed [0, 2*t+q, u*tb + b, di*20 + x]:
    # all 5 vertical taps are pre-stacked along K, so one matmul per (t, q).
    b1v, sc1, sh1 = v1_ref[0:1, :], v1_ref[1:2, :], v1_ref[2:3, :]
    for t in range(2):                        # parity of the pooled output row
        z = None
        for q in range(2):                    # pool1 row-window member
            acc = jnp.dot(xs_ref[0, 2 * t + q], n1_ref[...],
                          preferred_element_type=f32)              # (5*tb, 256)
            g = jnp.maximum(acc + b1v, 0.0) * sc1 + sh1            # bias,ReLU,BN
            z = g if z is None else jnp.maximum(z, g)              # pool over rows
        h1t = jnp.maximum(z[:, :128], z[:, 128:])                  # pool over cols
        # Persistent halo scratch for conv2: block 0 / block 6 are the zero
        # height-padding halo, blocks 1..5 the interior pooled rows.  Halos are
        # rewritten every step (4 tiny zero stores) so the result is correct no
        # matter how the parallel grid is partitioned across TensorCores.
        h1s_ref[t, 0:tb, :] = jnp.zeros((tb, 128), bf16)
        h1s_ref[t, tb:6 * tb, :] = h1t.astype(bf16)
        h1s_ref[t, 6 * tb:7 * tb, :] = jnp.zeros((tb, 128), bf16)

    # -------- Conv2(8->16,k5,p2) + ReLU + BN2 + MaxPool2x2 -----------------
    # Chained dot-accumulation straight from the VMEM scratch (no concat).
    b2v, sc2, sh2 = v2_ref[0:1, :], v2_ref[1:2, :], v2_ref[2:3, :]
    z2 = None
    for q2 in range(2):                       # pool2 row-window member
        acc = None
        for di in range(5):                   # vertical conv tap
            m2 = q2 + di
            p, k0 = m2 % 2, m2 // 2
            part = jnp.dot(h1s_ref[p, k0 * tb:(k0 + 5) * tb, :], n2_ref[di],
                           preferred_element_type=f32)             # (5*tb, 256)
            acc = part if acc is None else acc + part
        g = jnp.maximum(acc + b2v, 0.0) * sc2 + sh2
        z2 = g if z2 is None else jnp.maximum(z2, g)
    h2 = jnp.maximum(z2[:, :128], z2[:, 128:]).astype(bf16)        # (5*tb, 128)

    # -------- Flatten (NCHW order, folded into l1) + MLP -------------------
    # Dropout layers are identity (eval mode).  Everything is 128-lane dense.
    lb1, lb2, lb3 = lb_ref[0:1, :], lb_ref[1:2, :], lb_ref[2:3, :]
    acc = None
    for ih in range(5):
        part = jnp.dot(h2[ih * tb:(ih + 1) * tb, :], l1_ref[ih],
                       preferred_element_type=f32)                 # (tb, 128)
        acc = part if acc is None else acc + part
    z = jnp.maximum(acc + lb1, 0.0)                                # (tb, 128)
    z = jnp.maximum(jnp.dot(z.astype(bf16), l2_ref[...],
                            preferred_element_type=f32) + lb2, 0.0)
    o_ref[...] = jnp.dot(z.astype(bf16), l3_ref[...],
                         preferred_element_type=f32) + lb3         # (tb, 128)


# ----------------------------------------------------------------------------
# Wrapper: cheap input re-layout + single gridded pallas_call
# ----------------------------------------------------------------------------
def _prep_input(x, tb):
    """(B,1,20,20) NCHW -> (G, 4, 5*tb, 128) bf16 with the 5 vertical conv1
    taps stacked along K.  Entry [g, 2*t+q, u*tb + b, di*20 + x] equals
    padded_input[g*tb+b, 4*u + 2*t + q + di, x]  (height padded by 2)."""
    B = x.shape[0]
    x = x.reshape(B, 20, 20).astype(jnp.float32)
    G = -(-B // tb)
    Bp = G * tb
    if Bp != B:
        x = jnp.pad(x, ((0, Bp - B), (0, 0), (0, 0)))
    xp = jnp.pad(x, ((0, 0), (2, 2), (0, 0)))                    # (Bp, 24, 20)
    tq = np.arange(4)
    rows = (4 * np.arange(5)[None, :, None]                      # u
            + (2 * (tq // 2) + tq % 2)[:, None, None]            # 2*t + q
            + np.arange(5)[None, None, :])                       # di  -> (4,5,5)
    xg = xp[:, rows, :]                                          # (Bp, 4, 5, 5, 20)
    xg = xg.reshape(G, tb, 4, 5, 5, 20).transpose(0, 2, 3, 1, 4, 5)
    xg = xg.reshape(G, 4, 5 * tb, 100)
    xg = jnp.pad(xg, ((0, 0), (0, 0), (0, 0), (0, 28)))          # K -> 128
    return xg.astype(jnp.bfloat16), G, Bp


@functools.partial(jax.jit, static_argnames=("n_classes",))
def pnet_forward(x, kp, n_classes):
    B = x.shape[0]
    tb = _pick_tb(B)
    xs, G, Bp = _prep_input(x, tb)

    weights = (kp["n1"], kp["n2"], kp["l1"], kp["l2"], kp["l3"],
               kp["v1"], kp["v2"], kp["lb"])

    def resident(a):
        # Constant index_map -> block stays VMEM-resident across the grid.
        # Weights total ~0.6 MiB (bf16); VMEM is not the constraint on any
        # generation, so default buffering is fine and no vmem tuning needed.
        nd = a.ndim
        return pl.BlockSpec(a.shape, lambda g, nd=nd: (0,) * nd)

    flops = G * (2 * (5 * tb) * 128 * 256 * (4 + 10)     # conv1 + conv2 banded matmuls
                 + 2 * tb * 128 * 128 * 7)               # MLP (5 + 1 + 1 dots)
    bytes_accessed = (xs.size * 2 + Bp * 128 * 4
                      + sum(int(w.size) * w.dtype.itemsize for w in weights))

    out = pl.pallas_call(
        functools.partial(pnet_kernel, tb=tb),
        grid=(G,),
        in_specs=[pl.BlockSpec((1, 4, 5 * tb, 128), lambda g: (g, 0, 0, 0))]
                 + [resident(w) for w in weights],
        out_specs=pl.BlockSpec((tb, 128), lambda g: (g, 0)),
        out_shape=jax.ShapeDtypeStruct((Bp, 128), jnp.float32),
        scratch_shapes=[pltpu.VMEM((2, 7 * tb, 128), jnp.bfloat16)],
        compiler_params=pltpu.CompilerParams(
            dimension_semantics=("parallel",),
            vmem_limit_bytes=32 * 1024 * 1024),
        cost_estimate=pl.CostEstimate(flops=int(flops), transcendentals=0,
                                      bytes_accessed=int(bytes_accessed)),
    )(xs, *weights)
    return out[:B, :n_classes]


# ----------------------------------------------------------------------------
# Pure-JAX reference (mirrors the PyTorch module in eval mode)
# ----------------------------------------------------------------------------
def pnet_reference(x, p):
    def conv_block(h, w, b, gamma, beta, mean, var):
        B, C, H, W = h.shape
        hp = jnp.pad(h, ((0, 0), (0, 0), (2, 2), (2, 2)))
        cols = jnp.stack([hp[:, :, di:di + H, dj:dj + W]
                          for di in range(5) for dj in range(5)], axis=2)
        out = jnp.einsum('bckhw,ock->bohw', cols, w.reshape(w.shape[0], C, 25))
        out = out + b[None, :, None, None]
        out = jnp.maximum(out, 0.0)
        scale = gamma / jnp.sqrt(var + BN_EPS)
        shift = beta - mean * scale
        out = out * scale[None, :, None, None] + shift[None, :, None, None]
        B2, C2, H2, W2 = out.shape
        return out.reshape(B2, C2, H2 // 2, 2, W2 // 2, 2).max(axis=(3, 5))

    h = conv_block(x, p["w1"], p["b1"], p["g1"], p["be1"], p["rm1"], p["rv1"])
    h = conv_block(h, p["w2"], p["b2"], p["g2"], p["be2"], p["rm2"], p["rv2"])
    hidden = h.reshape(h.shape[0], -1)
    z = jnp.maximum(hidden @ p["lw1"] + p["lb1"], 0.0)
    z = jnp.maximum(z @ p["lw2"] + p["lb2"], 0.0)
    return z @ p["lw3"] + p["lb3"]


# ----------------------------------------------------------------------------
# Deterministic synthetic parameters (PyTorch layouts / eval-mode BN stats)
# ----------------------------------------------------------------------------
def init_torch_like_params(key, n_classes):
    ks = jax.random.split(key, 16)
    return {
        "w1": jax.random.normal(ks[0], (8, 1, 5, 5), jnp.float32) * 0.2,
        "b1": jax.random.normal(ks[1], (8,), jnp.float32) * 0.1,
        "g1": 1.0 + 0.1 * jax.random.normal(ks[2], (8,), jnp.float32),
        "be1": 0.1 * jax.random.normal(ks[3], (8,), jnp.float32),
        "rm1": 0.1 * jax.random.normal(ks[4], (8,), jnp.float32),
        "rv1": 1.0 + 0.1 * jax.random.uniform(ks[5], (8,)),
        "w2": jax.random.normal(ks[6], (16, 8, 5, 5), jnp.float32) * 0.05,
        "b2": jax.random.normal(ks[7], (16,), jnp.float32) * 0.1,
        "g2": 1.0 + 0.1 * jax.random.normal(ks[8], (16,), jnp.float32),
        "be2": 0.1 * jax.random.normal(ks[9], (16,), jnp.float32),
        "rm2": 0.1 * jax.random.normal(ks[10], (16,), jnp.float32),
        "rv2": 1.0 + 0.1 * jax.random.uniform(ks[11], (16,)),
        "lw1": jax.random.normal(ks[12], (400, 128), jnp.float32) * 0.05,
        "lb1": 0.01 * jax.random.normal(ks[13], (128,), jnp.float32),
        "lw2": jax.random.normal(ks[14], (128, 64), jnp.float32) * 0.05,
        "lb2": jnp.zeros((64,), jnp.float32),
        "lw3": jax.random.normal(ks[15], (64, n_classes), jnp.float32) * 0.05,
        "lb3": jnp.zeros((n_classes,), jnp.float32),
    }


if __name__ == "__main__":
    N_CLASSES = 10
    key = jax.random.PRNGKey(0)
    k_data, k_params = jax.random.split(key)

    # hidden_size = 5*5*16 implies 20x20 single-channel input (NCHW).
    # batch=32 -> tb=16, grid=2 (exercises the multi-step / megacore path).
    data = jax.random.normal(k_data, (32, 1, 20, 20), jnp.float32)
    raw = init_torch_like_params(k_params, N_CLASSES)
    kparams = build_kernel_params(raw, N_CLASSES)

    out = pnet_forward(data, kparams, n_classes=N_CLASSES)
    out = jax.block_until_ready(out)
    assert out.shape == (32, N_CLASSES), out.shape
    assert bool(jnp.all(jnp.isfinite(out)))

    ref = pnet_reference(data, raw)
    err = float(jnp.max(jnp.abs(out - ref)))
    assert err < 2e-2, f"max |kernel - reference| = {err}"
    print("KERNEL_OK")
</pallas_src>

<mosaic_0001>
module attributes {stable_mosaic.version = 11 : i64} {
  func.func @pnet_kernel(%arg0: i32, %arg1: memref<1x4x80x128xbf16, #tpu.memory_space<vmem>>, %arg2: memref<128x256xbf16, #tpu.memory_space<vmem>>, %arg3: memref<5x128x256xbf16, #tpu.memory_space<vmem>>, %arg4: memref<5x128x128xbf16, #tpu.memory_space<vmem>>, %arg5: memref<128x128xbf16, #tpu.memory_space<vmem>>, %arg6: memref<128x128xbf16, #tpu.memory_space<vmem>>, %arg7: memref<3x256xf32, #tpu.memory_space<vmem>>, %arg8: memref<3x256xf32, #tpu.memory_space<vmem>>, %arg9: memref<3x128xf32, #tpu.memory_space<vmem>>, %arg10: memref<16x128xf32, #tpu.memory_space<vmem>>, %arg11: memref<2x112x128xbf16, #tpu.memory_space<vmem>>) attributes {dimension_semantics = [#tpu.dimension_semantics<parallel>], iteration_bounds = array<i64: 2>, scalar_prefetch = 0 : i64, scratch_operands = 1 : i64, tpu.core_type = #tpu.core_type<tc>, window_params = [{transform_indices = @transform_0, window_bounds = array<i64: 1, 4, 80, 128>}, {pipeline_mode = #tpu.pipeline_mode<synchronous>, transform_indices = @transform_1, window_bounds = array<i64: 128, 256>}, {pipeline_mode = #tpu.pipeline_mode<synchronous>, transform_indices = @transform_2, window_bounds = array<i64: 5, 128, 256>}, {pipeline_mode = #tpu.pipeline_mode<synchronous>, transform_indices = @transform_3, window_bounds = array<i64: 5, 128, 128>}, {pipeline_mode = #tpu.pipeline_mode<synchronous>, transform_indices = @transform_4, window_bounds = array<i64: 128, 128>}, {pipeline_mode = #tpu.pipeline_mode<synchronous>, transform_indices = @transform_5, window_bounds = array<i64: 128, 128>}, {pipeline_mode = #tpu.pipeline_mode<synchronous>, transform_indices = @transform_6, window_bounds = array<i64: 3, 256>}, {pipeline_mode = #tpu.pipeline_mode<synchronous>, transform_indices = @transform_7, window_bounds = array<i64: 3, 256>}, {pipeline_mode = #tpu.pipeline_mode<synchronous>, transform_indices = @transform_8, window_bounds = array<i64: 3, 128>}, {transform_indices = @transform_9, window_bounds = array<i64: 16, 128>}]} {
    %c0 = arith.constant 0 : index
    %c0_0 = arith.constant 0 : index
    %0 = vector.load %arg7[%c0, %c0_0] : memref<3x256xf32, #tpu.memory_space<vmem>>, vector<1x256xf32>
    %c1 = arith.constant 1 : index
    %c0_1 = arith.constant 0 : index
    %1 = vector.load %arg7[%c1, %c0_1] : memref<3x256xf32, #tpu.memory_space<vmem>>, vector<1x256xf32>
    %c2 = arith.constant 2 : index
    %c0_2 = arith.constant 0 : index
    %2 = vector.load %arg7[%c2, %c0_2] : memref<3x256xf32, #tpu.memory_space<vmem>>, vector<1x256xf32>
    %c0_3 = arith.constant 0 : index
    %c0_4 = arith.constant 0 : index
    %c0_5 = arith.constant 0 : index
    %c0_6 = arith.constant 0 : index
    %3 = vector.load %arg1[%c0_3, %c0_4, %c0_5, %c0_6] : memref<1x4x80x128xbf16, #tpu.memory_space<vmem>>, vector<1x1x80x128xbf16>
    %4 = vector.shape_cast %3 : vector<1x1x80x128xbf16> to vector<80x128xbf16>
    %c0_7 = arith.constant 0 : index
    %c0_8 = arith.constant 0 : index
    %5 = vector.load %arg2[%c0_7, %c0_8] : memref<128x256xbf16, #tpu.memory_space<vmem>>, vector<128x256xbf16>
    %cst = arith.constant dense<0.000000e+00> : vector<80x256xf32>
    %6 = tpu.matmul %4, %5, %cst {dimension_numbers = #tpu.dot_dimension_numbers<[1], [0], [0], [1], [0, 0, 1, 1], [], []>} : vector<80x128xbf16>, vector<128x256xbf16>, vector<80x256xf32> -> vector<80x256xf32>
    %7 = vector.broadcast %0 : vector<1x256xf32> to vector<80x256xf32>
    %8 = arith.addf %6, %7 : vector<80x256xf32>
    %cst_9 = arith.constant 0.000000e+00 : f32
    %9 = vector.broadcast %cst_9 : f32 to vector<80x256xf32>
    %10 = arith.maximumf %8, %9 : vector<80x256xf32>
    %11 = vector.broadcast %1 : vector<1x256xf32> to vector<80x256xf32>
    %12 = arith.mulf %10, %11 : vector<80x256xf32>
    %13 = vector.broadcast %2 : vector<1x256xf32> to vector<80x256xf32>
    %14 = arith.addf %12, %13 : vector<80x256xf32>
    %c0_10 = arith.constant 0 : index
    %c1_11 = arith.constant 1 : index
    %c0_12 = arith.constant 0 : index
    %c0_13 = arith.constant 0 : index
    %15 = vector.load %arg1[%c0_10, %c1_11, %c0_12, %c0_13] : memref<1x4x80x128xbf16, #tpu.memory_space<vmem>>, vector<1x1x80x128xbf16>
    %16 = vector.shape_cast %15 : vector<1x1x80x128xbf16> to vector<80x128xbf16>
    %c0_14 = arith.constant 0 : index
    %c0_15 = arith.constant 0 : index
    %17 = vector.load %arg2[%c0_14, %c0_15] : memref<128x256xbf16, #tpu.memory_space<vmem>>, vector<128x256xbf16>
    %cst_16 = arith.constant dense<0.000000e+00> : vector<80x256xf32>
    %18 = tpu.matmul %16, %17, %cst_16 {dimension_numbers = #tpu.dot_dimension_numbers<[1], [0], [0], [1], [0, 0, 1, 1], [], []>} : vector<80x128xbf16>, vector<128x256xbf16>, vector<80x256xf32> -> vector<80x256xf32>
    %19 = vector.broadcast %0 : vector<1x256xf32> to vector<80x256xf32>
    %20 = arith.addf %18, %19 : vector<80x256xf32>
    %cst_17 = arith.constant 0.000000e+00 : f32
    %21 = vector.broadcast %cst_17 : f32 to vector<80x256xf32>
    %22 = arith.maximumf %20, %21 : vector<80x256xf32>
    %23 = vector.broadcast %1 : vector<1x256xf32> to vector<80x256xf32>
    %24 = arith.mulf %22, %23 : vector<80x256xf32>
    %25 = vector.broadcast %2 : vector<1x256xf32> to vector<80x256xf32>
    %26 = arith.addf %24, %25 : vector<80x256xf32>
    %27 = arith.maximumf %14, %26 : vector<80x256xf32>
    %28 = vector.extract_strided_slice %27 {offsets = [0, 0], sizes = [80, 128], strides = [1, 1]} : vector<80x256xf32> to vector<80x128xf32>
    %29 = vector.extract_strided_slice %27 {offsets = [0, 128], sizes = [80, 128], strides = [1, 1]} : vector<80x256xf32> to vector<80x128xf32>
    %30 = arith.maximumf %28, %29 : vector<80x128xf32>
    %cst_18 = arith.constant 0.000000e+00 : bf16
    %31 = vector.broadcast %cst_18 : bf16 to vector<16x128xbf16>
    %c0_19 = arith.constant 0 : index
    %c0_20 = arith.constant 0 : index
    %c0_21 = arith.constant 0 : index
    %32 = vector.load %arg11[%c0_19, %c0_20, %c0_21] : memref<2x112x128xbf16, #tpu.memory_space<vmem>>, vector<1x16x128xbf16>
    %33 = vector.shape_cast %32 : vector<1x16x128xbf16> to vector<16x128xbf16>
    %34 = vector.shape_cast %31 : vector<16x128xbf16> to vector<1x16x128xbf16>
    tpu.vector_store %arg11[%c0_19, %c0_20, %c0_21], %34 {strides = array<i32>} : memref<2x112x128xbf16, #tpu.memory_space<vmem>>, vector<1x16x128xbf16>,
    %35 = arith.truncf %30 : vector<80x128xf32> to vector<80x128xbf16>
    %c0_22 = arith.constant 0 : index
    %c16 = arith.constant 16 : index
    %c0_23 = arith.constant 0 : index
    %36 = vector.load %arg11[%c0_22, %c16, %c0_23] : memref<2x112x128xbf16, #tpu.memory_space<vmem>>, vector<1x80x128xbf16>
    %37 = vector.shape_cast %36 : vector<1x80x128xbf16> to vector<80x128xbf16>
    %38 = vector.shape_cast %35 : vector<80x128xbf16> to vector<1x80x128xbf16>
    tpu.vector_store %arg11[%c0_22, %c16, %c0_23], %38 {strides = array<i32>} : memref<2x112x128xbf16, #tpu.memory_space<vmem>>, vector<1x80x128xbf16>,
    %cst_24 = arith.constant 0.000000e+00 : bf16
    %39 = vector.broadcast %cst_24 : bf16 to vector<16x128xbf16>
    %c0_25 = arith.constant 0 : index
    %c96 = arith.constant 96 : index
    %c0_26 = arith.constant 0 : index
    %40 = vector.load %arg11[%c0_25, %c96, %c0_26] : memref<2x112x128xbf16, #tpu.memory_space<vmem>>, vector<1x16x128xbf16>
    %41 = vector.shape_cast %40 : vector<1x16x128xbf16> to vector<16x128xbf16>
    %42 = vector.shape_cast %39 : vector<16x128xbf16> to vector<1x16x128xbf16>
    tpu.vector_store %arg11[%c0_25, %c96, %c0_26], %42 {strides = array<i32>} : memref<2x112x128xbf16, #tpu.memory_space<vmem>>, vector<1x16x128xbf16>,
    %c0_27 = arith.constant 0 : index
    %c2_28 = arith.constant 2 : index
    %c0_29 = arith.constant 0 : index
    %c0_30 = arith.constant 0 : index
    %43 = vector.load %arg1[%c0_27, %c2_28, %c0_29, %c0_30] : memref<1x4x80x128xbf16, #tpu.memory_space<vmem>>, vector<1x1x80x128xbf16>
    %44 = vector.shape_cast %43 : vector<1x1x80x128xbf16> to vector<80x128xbf16>
    %c0_31 = arith.constant 0 : index
    %c0_32 = arith.constant 0 : index
    %45 = vector.load %arg2[%c0_31, %c0_32] : memref<128x256xbf16, #tpu.memory_space<vmem>>, vector<128x256xbf16>
    %cst_33 = arith.constant dense<0.000000e+00> : vector<80x256xf32>
    %46 = tpu.matmul %44, %45, %cst_33 {dimension_numbers = #tpu.dot_dimension_numbers<[1], [0], [0], [1], [0, 0, 1, 1], [], []>} : vector<80x128xbf16>, vector<128x256xbf16>, vector<80x256xf32> -> vector<80x256xf32>
    %47 = vector.broadcast %0 : vector<1x256xf32> to vector<80x256xf32>
    %48 = arith.addf %46, %47 : vector<80x256xf32>
    %cst_34 = arith.constant 0.000000e+00 : f32
    %49 = vector.broadcast %cst_34 : f32 to vector<80x256xf32>
    %50 = arith.maximumf %48, %49 : vector<80x256xf32>
    %51 = vector.broadcast %1 : vector<1x256xf32> to vector<80x256xf32>
    %52 = arith.mulf %50, %51 : vector<80x256xf32>
    %53 = vector.broadcast %2 : vector<1x256xf32> to vector<80x256xf32>
    %54 = arith.addf %52, %53 : vector<80x256xf32>
    %c0_35 = arith.constant 0 : index
    %c3 = arith.constant 3 : index
    %c0_36 = arith.constant 0 : index
    %c0_37 = arith.constant 0 : index
    %55 = vector.load %arg1[%c0_35, %c3, %c0_36, %c0_37] : memref<1x4x80x128xbf16, #tpu.memory_space<vmem>>, vector<1x1x80x128xbf16>
    %56 = vector.shape_cast %55 : vector<1x1x80x128xbf16> to vector<80x128xbf16>
    %c0_38 = arith.constant 0 : index
    %c0_39 = arith.constant 0 : index
    %57 = vector.load %arg2[%c0_38, %c0_39] : memref<128x256xbf16, #tpu.memory_space<vmem>>, vector<128x256xbf16>
    %cst_40 = arith.constant dense<0.000000e+00> : vector<80x256xf32>
    %58 = tpu.matmul %56, %57, %cst_40 {dimension_numbers = #tpu.dot_dimension_numbers<[1], [0], [0], [1], [0, 0, 1, 1], [], []>} : vector<80x128xbf16>, vector<128x256xbf16>, vector<80x256xf32> -> vector<80x256xf32>
    %59 = vector.broadcast %0 : vector<1x256xf32> to vector<80x256xf32>
    %60 = arith.addf %58, %59 : vector<80x256xf32>
    %cst_41 = arith.constant 0.000000e+00 : f32
    %61 = vector.broadcast %cst_41 : f32 to vector<80x256xf32>
    %62 = arith.maximumf %60, %61 : vector<80x256xf32>
    %63 = vector.broadcast %1 : vector<1x256xf32> to vector<80x256xf32>
    %64 = arith.mulf %62, %63 : vector<80x256xf32>
    %65 = vector.broadcast %2 : vector<1x256xf32> to vector<80x256xf32>
    %66 = arith.addf %64, %65 : vector<80x256xf32>
    %67 = arith.maximumf %54, %66 : vector<80x256xf32>
    %68 = vector.extract_strided_slice %67 {offsets = [0, 0], sizes = [80, 128], strides = [1, 1]} : vector<80x256xf32> to vector<80x128xf32>
    %69 = vector.extract_strided_slice %67 {offsets = [0, 128], sizes = [80, 128], strides = [1, 1]} : vector<80x256xf32> to vector<80x128xf32>
    %70 = arith.maximumf %68, %69 : vector<80x128xf32>
    %cst_42 = arith.constant 0.000000e+00 : bf16
    %71 = vector.broadcast %cst_42 : bf16 to vector<16x128xbf16>
    %c1_43 = arith.constant 1 : index
    %c0_44 = arith.constant 0 : index
    %c0_45 = arith.constant 0 : index
    %72 = vector.load %arg11[%c1_43, %c0_44, %c0_45] : memref<2x112x128xbf16, #tpu.memory_space<vmem>>, vector<1x16x128xbf16>
    %73 = vector.shape_cast %72 : vector<1x16x128xbf16> to vector<16x128xbf16>
    %74 = vector.shape_cast %71 : vector<16x128xbf16> to vector<1x16x128xbf16>
    tpu.vector_store %arg11[%c1_43, %c0_44, %c0_45], %74 {strides = array<i32>} : memref<2x112x128xbf16, #tpu.memory_space<vmem>>, vector<1x16x128xbf16>,
    %75 = arith.truncf %70 : vector<80x128xf32> to vector<80x128xbf16>
    %c1_46 = arith.constant 1 : index
    %c16_47 = arith.constant 16 : index
    %c0_48 = arith.constant 0 : index
    %76 = vector.load %arg11[%c1_46, %c16_47, %c0_48] : memref<2x112x128xbf16, #tpu.memory_space<vmem>>, vector<1x80x128xbf16>
    %77 = vector.shape_cast %76 : vector<1x80x128xbf16> to vector<80x128xbf16>
    %78 = vector.shape_cast %75 : vector<80x128xbf16> to vector<1x80x128xbf16>
    tpu.vector_store %arg11[%c1_46, %c16_47, %c0_48], %78 {strides = array<i32>} : memref<2x112x128xbf16, #tpu.memory_space<vmem>>, vector<1x80x128xbf16>,
    %cst_49 = arith.constant 0.000000e+00 : bf16
    %79 = vector.broadcast %cst_49 : bf16 to vector<16x128xbf16>
    %c1_50 = arith.constant 1 : index
    %c96_51 = arith.constant 96 : index
    %c0_52 = arith.constant 0 : index
    %80 = vector.load %arg11[%c1_50, %c96_51, %c0_52] : memref<2x112x128xbf16, #tpu.memory_space<vmem>>, vector<1x16x128xbf16>
    %81 = vector.shape_cast %80 : vector<1x16x128xbf16> to vector<16x128xbf16>
    %82 = vector.shape_cast %79 : vector<16x128xbf16> to vector<1x16x128xbf16>
    tpu.vector_store %arg11[%c1_50, %c96_51, %c0_52], %82 {strides = array<i32>} : memref<2x112x128xbf16, #tpu.memory_space<vmem>>, vector<1x16x128xbf16>,
    %c0_53 = arith.constant 0 : index
    %c0_54 = arith.constant 0 : index
    %83 = vector.load %arg8[%c0_53, %c0_54] : memref<3x256xf32, #tpu.memory_space<vmem>>, vector<1x256xf32>
    %c1_55 = arith.constant 1 : index
    %c0_56 = arith.constant 0 : index
    %84 = vector.load %arg8[%c1_55, %c0_56] : memref<3x256xf32, #tpu.memory_space<vmem>>, vector<1x256xf32>
    %c2_57 = arith.constant 2 : index
    %c0_58 = arith.constant 0 : index
    %85 = vector.load %arg8[%c2_57, %c0_58] : memref<3x256xf32, #tpu.memory_space<vmem>>, vector<1x256xf32>
    %c0_59 = arith.constant 0 : index
    %c0_60 = arith.constant 0 : index
    %c0_61 = arith.constant 0 : index
    %86 = vector.load %arg11[%c0_59, %c0_60, %c0_61] : memref<2x112x128xbf16, #tpu.memory_space<vmem>>, vector<1x80x128xbf16>
    %87 = vector.shape_cast %86 : vector<1x80x128xbf16> to vector<80x128xbf16>
    %c0_62 = arith.constant 0 : index
    %c0_63 = arith.constant 0 : index
    %c0_64 = arith.constant 0 : index
    %88 = vector.load %arg3[%c0_62, %c0_63, %c0_64] : memref<5x128x256xbf16, #tpu.memory_space<vmem>>, vector<1x128x256xbf16>
    %89 = vector.shape_cast %88 : vector<1x128x256xbf16> to vector<128x256xbf16>
    %cst_65 = arith.constant dense<0.000000e+00> : vector<80x256xf32>
    %90 = tpu.matmul %87, %89, %cst_65 {dimension_numbers = #tpu.dot_dimension_numbers<[1], [0], [0], [1], [0, 0, 1, 1], [], []>} : vector<80x128xbf16>, vector<128x256xbf16>, vector<80x256xf32> -> vector<80x256xf32>
    %c1_66 = arith.constant 1 : index
    %c0_67 = arith.constant 0 : index
    %c0_68 = arith.constant 0 : index
    %91 = vector.load %arg11[%c1_66, %c0_67, %c0_68] : memref<2x112x128xbf16, #tpu.memory_space<vmem>>, vector<1x80x128xbf16>
    %92 = vector.shape_cast %91 : vector<1x80x128xbf16> to vector<80x128xbf16>
    %c1_69 = arith.constant 1 : index
    %c0_70 = arith.constant 0 : index
    %c0_71 = arith.constant 0 : index
    %93 = vector.load %arg3[%c1_69, %c0_70, %c0_71] : memref<5x128x256xbf16, #tpu.memory_space<vmem>>, vector<1x128x256xbf16>
    %94 = vector.shape_cast %93 : vector<1x128x256xbf16> to vector<128x256xbf16>
    %cst_72 = arith.constant dense<0.000000e+00> : vector<80x256xf32>
    %95 = tpu.matmul %92, %94, %cst_72 {dimension_numbers = #tpu.dot_dimension_numbers<[1], [0], [0], [1], [0, 0, 1, 1], [], []>} : vector<80x128xbf16>, vector<128x256xbf16>, vector<80x256xf32> -> vector<80x256xf32>
    %96 = arith.addf %90, %95 : vector<80x256xf32>
    %c0_73 = arith.constant 0 : index
    %c16_74 = arith.constant 16 : index
    %c0_75 = arith.constant 0 : index
    %97 = vector.load %arg11[%c0_73, %c16_74, %c0_75] : memref<2x112x128xbf16, #tpu.memory_space<vmem>>, vector<1x80x128xbf16>
    %98 = vector.shape_cast %97 : vector<1x80x128xbf16> to vector<80x128xbf16>
    %c2_76 = arith.constant 2 : index
    %c0_77 = arith.constant 0 : index
    %c0_78 = arith.constant 0 : index
    %99 = vector.load %arg3[%c2_76, %c0_77, %c0_78] : memref<5x128x256xbf16, #tpu.memory_space<vmem>>, vector<1x128x256xbf16>
    %100 = vector.shape_cast %99 : vector<1x128x256xbf16> to vector<128x256xbf16>
    %cst_79 = arith.constant dense<0.000000e+00> : vector<80x256xf32>
    %101 = tpu.matmul %98, %100, %cst_79 {dimension_numbers = #tpu.dot_dimension_numbers<[1], [0], [0], [1], [0, 0, 1, 1], [], []>} : vector<80x128xbf16>, vector<128x256xbf16>, vector<80x256xf32> -> vector<80x256xf32>
    %102 = arith.addf %96, %101 : vector<80x256xf32>
    %c1_80 = arith.constant 1 : index
    %c16_81 = arith.constant 16 : index
    %c0_82 = arith.constant 0 : index
    %103 = vector.load %arg11[%c1_80, %c16_81, %c0_82] : memref<2x112x128xbf16, #tpu.memory_space<vmem>>, vector<1x80x128xbf16>
    %104 = vector.shape_cast %103 : vector<1x80x128xbf16> to vector<80x128xbf16>
    %c3_83 = arith.constant 3 : index
    %c0_84 = arith.constant 0 : index
    %c0_85 = arith.constant 0 : index
    %105 = vector.load %arg3[%c3_83, %c0_84, %c0_85] : memref<5x128x256xbf16, #tpu.memory_space<vmem>>, vector<1x128x256xbf16>
    %106 = vector.shape_cast %105 : vector<1x128x256xbf16> to vector<128x256xbf16>
    %cst_86 = arith.constant dense<0.000000e+00> : vector<80x256xf32>
    %107 = tpu.matmul %104, %106, %cst_86 {dimension_numbers = #tpu.dot_dimension_numbers<[1], [0], [0], [1], [0, 0, 1, 1], [], []>} : vector<80x128xbf16>, vector<128x256xbf16>, vector<80x256xf32> -> vector<80x256xf32>
    %108 = arith.addf %102, %107 : vector<80x256xf32>
    %c0_87 = arith.constant 0 : index
    %c32 = arith.constant 32 : index
    %c0_88 = arith.constant 0 : index
    %109 = vector.load %arg11[%c0_87, %c32, %c0_88] : memref<2x112x128xbf16, #tpu.memory_space<vmem>>, vector<1x80x128xbf16>
    %110 = vector.shape_cast %109 : vector<1x80x128xbf16> to vector<80x128xbf16>
    %c4 = arith.constant 4 : index
    %c0_89 = arith.constant 0 : index
    %c0_90 = arith.constant 0 : index
    %111 = vector.load %arg3[%c4, %c0_89, %c0_90] : memref<5x128x256xbf16, #tpu.memory_space<vmem>>, vector<1x128x256xbf16>
    %112 = vector.shape_cast %111 : vector<1x128x256xbf16> to vector<128x256xbf16>
    %cst_91 = arith.constant dense<0.000000e+00> : vector<80x256xf32>
    %113 = tpu.matmul %110, %112, %cst_91 {dimension_numbers = #tpu.dot_dimension_numbers<[1], [0], [0], [1], [0, 0, 1, 1], [], []>} : vector<80x128xbf16>, vector<128x256xbf16>, vector<80x256xf32> -> vector<80x256xf32>
    %114 = arith.addf %108, %113 : vector<80x256xf32>
    %115 = vector.broadcast %83 : vector<1x256xf32> to vector<80x256xf32>
    %116 = arith.addf %114, %115 : vector<80x256xf32>
    %cst_92 = arith.constant 0.000000e+00 : f32
    %117 = vector.broadcast %cst_92 : f32 to vector<80x256xf32>
    %118 = arith.maximumf %116, %117 : vector<80x256xf32>
    %119 = vector.broadcast %84 : vector<1x256xf32> to vector<80x256xf32>
    %120 = arith.mulf %118, %119 : vector<80x256xf32>
    %121 = vector.broadcast %85 : vector<1x256xf32> to vector<80x256xf32>
    %122 = arith.addf %120, %121 : vector<80x256xf32>
    %c1_93 = arith.constant 1 : index
    %c0_94 = arith.constant 0 : index
    %c0_95 = arith.constant 0 : index
    %123 = vector.load %arg11[%c1_93, %c0_94, %c0_95] : memref<2x112x128xbf16, #tpu.memory_space<vmem>>, vector<1x80x128xbf16>
    %124 = vector.shape_cast %123 : vector<1x80x128xbf16> to vector<80x128xbf16>
    %c0_96 = arith.constant 0 : index
    %c0_97 = arith.constant 0 : index
    %c0_98 = arith.constant 0 : index
    %125 = vector.load %arg3[%c0_96, %c0_97, %c0_98] : memref<5x128x256xbf16, #tpu.memory_space<vmem>>, vector<1x128x256xbf16>
    %126 = vector.shape_cast %125 : vector<1x128x256xbf16> to vector<128x256xbf16>
    %cst_99 = arith.constant dense<0.000000e+00> : vector<80x256xf32>
    %127 = tpu.matmul %124, %126, %cst_99 {dimension_numbers = #tpu.dot_dimension_numbers<[1], [0], [0], [1], [0, 0, 1, 1], [], []>} : vector<80x128xbf16>, vector<128x256xbf16>, vector<80x256xf32> -> vector<80x256xf32>
    %c0_100 = arith.constant 0 : index
    %c16_101 = arith.constant 16 : index
    %c0_102 = arith.constant 0 : index
    %128 = vector.load %arg11[%c0_100, %c16_101, %c0_102] : memref<2x112x128xbf16, #tpu.memory_space<vmem>>, vector<1x80x128xbf16>
    %129 = vector.shape_cast %128 : vector<1x80x128xbf16> to vector<80x128xbf16>
    %c1_103 = arith.constant 1 : index
    %c0_104 = arith.constant 0 : index
    %c0_105 = arith.constant 0 : index
    %130 = vector.load %arg3[%c1_103, %c0_104, %c0_105] : memref<5x128x256xbf16, #tpu.memory_space<vmem>>, vector<1x128x256xbf16>
    %131 = vector.shape_cast %130 : vector<1x128x256xbf16> to vector<128x256xbf16>
    %cst_106 = arith.constant dense<0.000000e+00> : vector<80x256xf32>
    %132 = tpu.matmul %129, %131, %cst_106 {dimension_numbers = #tpu.dot_dimension_numbers<[1], [0], [0], [1], [0, 0, 1, 1], [], []>} : vector<80x128xbf16>, vector<128x256xbf16>, vector<80x256xf32> -> vector<80x256xf32>
    %133 = arith.addf %127, %132 : vector<80x256xf32>
    %c1_107 = arith.constant 1 : index
    %c16_108 = arith.constant 16 : index
    %c0_109 = arith.constant 0 : index
    %134 = vector.load %arg11[%c1_107, %c16_108, %c0_109] : memref<2x112x128xbf16, #tpu.memory_space<vmem>>, vector<1x80x128xbf16>
    %135 = vector.shape_cast %134 : vector<1x80x128xbf16> to vector<80x128xbf16>
    %c2_110 = arith.constant 2 : index
    %c0_111 = arith.constant 0 : index
    %c0_112 = arith.constant 0 : index
    %136 = vector.load %arg3[%c2_110, %c0_111, %c0_112] : memref<5x128x256xbf16, #tpu.memory_space<vmem>>, vector<1x128x256xbf16>
    %137 = vector.shape_cast %136 : vector<1x128x256xbf16> to vector<128x256xbf16>
    %cst_113 = arith.constant dense<0.000000e+00> : vector<80x256xf32>
    %138 = tpu.matmul %135, %137, %cst_113 {dimension_numbers = #tpu.dot_dimension_numbers<[1], [0], [0], [1], [0, 0, 1, 1], [], []>} : vector<80x128xbf16>, vector<128x256xbf16>, vector<80x256xf32> -> vector<80x256xf32>
    %139 = arith.addf %133, %138 : vector<80x256xf32>
    %c0_114 = arith.constant 0 : index
    %c32_115 = arith.constant 32 : index
    %c0_116 = arith.constant 0 : index
    %140 = vector.load %arg11[%c0_114, %c32_115, %c0_116] : memref<2x112x128xbf16, #tpu.memory_space<vmem>>, vector<1x80x128xbf16>
    %141 = vector.shape_cast %140 : vector<1x80x128xbf16> to vector<80x128xbf16>
    %c3_117 = arith.constant 3 : index
    %c0_118 = arith.constant 0 : index
    %c0_119 = arith.constant 0 : index
    %142 = vector.load %arg3[%c3_117, %c0_118, %c0_119] : memref<5x128x256xbf16, #tpu.memory_space<vmem>>, vector<1x128x256xbf16>
    %143 = vector.shape_cast %142 : vector<1x128x256xbf16> to vector<128x256xbf16>
    %cst_120 = arith.constant dense<0.000000e+00> : vector<80x256xf32>
    %144 = tpu.matmul %141, %143, %cst_120 {dimension_numbers = #tpu.dot_dimension_numbers<[1], [0], [0], [1], [0, 0, 1, 1], [], []>} : vector<80x128xbf16>, vector<128x256xbf16>, vector<80x256xf32> -> vector<80x256xf32>
    %145 = arith.addf %139, %144 : vector<80x256xf32>
    %c1_121 = arith.constant 1 : index
    %c32_122 = arith.constant 32 : index
    %c0_123 = arith.constant 0 : index
    %146 = vector.load %arg11[%c1_121, %c32_122, %c0_123] : memref<2x112x128xbf16, #tpu.memory_space<vmem>>, vector<1x80x128xbf16>
    %147 = vector.shape_cast %146 : vector<1x80x128xbf16> to vector<80x128xbf16>
    %c4_124 = arith.constant 4 : index
    %c0_125 = arith.constant 0 : index
    %c0_126 = arith.constant 0 : index
    %148 = vector.load %arg3[%c4_124, %c0_125, %c0_126] : memref<5x128x256xbf16, #tpu.memory_space<vmem>>, vector<1x128x256xbf16>
    %149 = vector.shape_cast %148 : vector<1x128x256xbf16> to vector<128x256xbf16>
    %cst_127 = arith.constant dense<0.000000e+00> : vector<80x256xf32>
    %150 = tpu.matmul %147, %149, %cst_127 {dimension_numbers = #tpu.dot_dimension_numbers<[1], [0], [0], [1], [0, 0, 1, 1], [], []>} : vector<80x128xbf16>, vector<128x256xbf16>, vector<80x256xf32> -> vector<80x256xf32>
    %151 = arith.addf %145, %150 : vector<80x256xf32>
    %152 = vector.broadcast %83 : vector<1x256xf32> to vector<80x256xf32>
    %153 = arith.addf %151, %152 : vector<80x256xf32>
    %cst_128 = arith.constant 0.000000e+00 : f32
    %154 = vector.broadcast %cst_128 : f32 to vector<80x256xf32>
    %155 = arith.maximumf %153, %154 : vector<80x256xf32>
    %156 = vector.broadcast %84 : vector<1x256xf32> to vector<80x256xf32>
    %157 = arith.mulf %155, %156 : vector<80x256xf32>
    %158 = vector.broadcast %85 : vector<1x256xf32> to vector<80x256xf32>
    %159 = arith.addf %157, %158 : vector<80x256xf32>
    %160 = arith.maximumf %122, %159 : vector<80x256xf32>
    %161 = vector.extract_strided_slice %160 {offsets = [0, 0], sizes = [80, 128], strides = [1, 1]} : vector<80x256xf32> to vector<80x128xf32>
    %162 = vector.extract_strided_slice %160 {offsets = [0, 128], sizes = [80, 128], strides = [1, 1]} : vector<80x256xf32> to vector<80x128xf32>
    %163 = arith.maximumf %161, %162 : vector<80x128xf32>
    %164 = arith.truncf %163 : vector<80x128xf32> to vector<80x128xbf16>
    %c0_129 = arith.constant 0 : index
    %c0_130 = arith.constant 0 : index
    %165 = vector.load %arg9[%c0_129, %c0_130] : memref<3x128xf32, #tpu.memory_space<vmem>>, vector<1x128xf32>
    %c1_131 = arith.constant 1 : index
    %c0_132 = arith.constant 0 : index
    %166 = vector.load %arg9[%c1_131, %c0_132] : memref<3x128xf32, #tpu.memory_space<vmem>>, vector<1x128xf32>
    %c2_133 = arith.constant 2 : index
    %c0_134 = arith.constant 0 : index
    %167 = vector.load %arg9[%c2_133, %c0_134] : memref<3x128xf32, #tpu.memory_space<vmem>>, vector<1x128xf32>
    %168 = vector.extract_strided_slice %164 {offsets = [0, 0], sizes = [16, 128], strides = [1, 1]} : vector<80x128xbf16> to vector<16x128xbf16>
    %c0_135 = arith.constant 0 : index
    %c0_136 = arith.constant 0 : index
    %c0_137 = arith.constant 0 : index
    %169 = vector.load %arg4[%c0_135, %c0_136, %c0_137] : memref<5x128x128xbf16, #tpu.memory_space<vmem>>, vector<1x128x128xbf16>
    %170 = vector.shape_cast %169 : vector<1x128x128xbf16> to vector<128x128xbf16>
    %cst_138 = arith.constant dense<0.000000e+00> : vector<16x128xf32>
    %171 = tpu.matmul %168, %170, %cst_138 {dimension_numbers = #tpu.dot_dimension_numbers<[1], [0], [0], [1], [0, 0, 1, 1], [], []>} : vector<16x128xbf16>, vector<128x128xbf16>, vector<16x128xf32> -> vector<16x128xf32>
    %172 = vector.extract_strided_slice %164 {offsets = [16, 0], sizes = [16, 128], strides = [1, 1]} : vector<80x128xbf16> to vector<16x128xbf16>
    %c1_139 = arith.constant 1 : index
    %c0_140 = arith.constant 0 : index
    %c0_141 = arith.constant 0 : index
    %173 = vector.load %arg4[%c1_139, %c0_140, %c0_141] : memref<5x128x128xbf16, #tpu.memory_space<vmem>>, vector<1x128x128xbf16>
    %174 = vector.shape_cast %173 : vector<1x128x128xbf16> to vector<128x128xbf16>
    %cst_142 = arith.constant dense<0.000000e+00> : vector<16x128xf32>
    %175 = tpu.matmul %172, %174, %cst_142 {dimension_numbers = #tpu.dot_dimension_numbers<[1], [0], [0], [1], [0, 0, 1, 1], [], []>} : vector<16x128xbf16>, vector<128x128xbf16>, vector<16x128xf32> -> vector<16x128xf32>
    %176 = arith.addf %171, %175 : vector<16x128xf32>
    %177 = vector.extract_strided_slice %164 {offsets = [32, 0], sizes = [16, 128], strides = [1, 1]} : vector<80x128xbf16> to vector<16x128xbf16>
    %c2_143 = arith.constant 2 : index
    %c0_144 = arith.constant 0 : index
    %c0_145 = arith.constant 0 : index
    %178 = vector.load %arg4[%c2_143, %c0_144, %c0_145] : memref<5x128x128xbf16, #tpu.memory_space<vmem>>, vector<1x128x128xbf16>
    %179 = vector.shape_cast %178 : vector<1x128x128xbf16> to vector<128x128xbf16>
    %cst_146 = arith.constant dense<0.000000e+00> : vector<16x128xf32>
    %180 = tpu.matmul %177, %179, %cst_146 {dimension_numbers = #tpu.dot_dimension_numbers<[1], [0], [0], [1], [0, 0, 1, 1], [], []>} : vector<16x128xbf16>, vector<128x128xbf16>, vector<16x128xf32> -> vector<16x128xf32>
    %181 = arith.addf %176, %180 : vector<16x128xf32>
    %182 = vector.extract_strided_slice %164 {offsets = [48, 0], sizes = [16, 128], strides = [1, 1]} : vector<80x128xbf16> to vector<16x128xbf16>
    %c3_147 = arith.constant 3 : index
    %c0_148 = arith.constant 0 : index
    %c0_149 = arith.constant 0 : index
    %183 = vector.load %arg4[%c3_147, %c0_148, %c0_149] : memref<5x128x128xbf16, #tpu.memory_space<vmem>>, vector<1x128x128xbf16>
    %184 = vector.shape_cast %183 : vector<1x128x128xbf16> to vector<128x128xbf16>
    %cst_150 = arith.constant dense<0.000000e+00> : vector<16x128xf32>
    %185 = tpu.matmul %182, %184, %cst_150 {dimension_numbers = #tpu.dot_dimension_numbers<[1], [0], [0], [1], [0, 0, 1, 1], [], []>} : vector<16x128xbf16>, vector<128x128xbf16>, vector<16x128xf32> -> vector<16x128xf32>
    %186 = arith.addf %181, %185 : vector<16x128xf32>
    %187 = vector.extract_strided_slice %164 {offsets = [64, 0], sizes = [16, 128], strides = [1, 1]} : vector<80x128xbf16> to vector<16x128xbf16>
    %c4_151 = arith.constant 4 : index
    %c0_152 = arith.constant 0 : index
    %c0_153 = arith.constant 0 : index
    %188 = vector.load %arg4[%c4_151, %c0_152, %c0_153] : memref<5x128x128xbf16, #tpu.memory_space<vmem>>, vector<1x128x128xbf16>
    %189 = vector.shape_cast %188 : vector<1x128x128xbf16> to vector<128x128xbf16>
    %cst_154 = arith.constant dense<0.000000e+00> : vector<16x128xf32>
    %190 = tpu.matmul %187, %189, %cst_154 {dimension_numbers = #tpu.dot_dimension_numbers<[1], [0], [0], [1], [0, 0, 1, 1], [], []>} : vector<16x128xbf16>, vector<128x128xbf16>, vector<16x128xf32> -> vector<16x128xf32>
    %191 = arith.addf %186, %190 : vector<16x128xf32>
    %192 = vector.broadcast %165 : vector<1x128xf32> to vector<16x128xf32>
    %193 = arith.addf %191, %192 : vector<16x128xf32>
    %cst_155 = arith.constant 0.000000e+00 : f32
    %194 = vector.broadcast %cst_155 : f32 to vector<16x128xf32>
    %195 = arith.maximumf %193, %194 : vector<16x128xf32>
    %196 = arith.truncf %195 : vector<16x128xf32> to vector<16x128xbf16>
    %c0_156 = arith.constant 0 : index
    %c0_157 = arith.constant 0 : index
    %197 = vector.load %arg5[%c0_156, %c0_157] : memref<128x128xbf16, #tpu.memory_space<vmem>>, vector<128x128xbf16>
    %cst_158 = arith.constant dense<0.000000e+00> : vector<16x128xf32>
    %198 = tpu.matmul %196, %197, %cst_158 {dimension_numbers = #tpu.dot_dimension_numbers<[1], [0], [0], [1], [0, 0, 1, 1], [], []>} : vector<16x128xbf16>, vector<128x128xbf16>, vector<16x128xf32> -> vector<16x128xf32>
    %199 = vector.broadcast %166 : vector<1x128xf32> to vector<16x128xf32>
    %200 = arith.addf %198, %199 : vector<16x128xf32>
    %cst_159 = arith.constant 0.000000e+00 : f32
    %201 = vector.broadcast %cst_159 : f32 to vector<16x128xf32>
    %202 = arith.maximumf %200, %201 : vector<16x128xf32>
    %203 = arith.truncf %202 : vector<16x128xf32> to vector<16x128xbf16>
    %c0_160 = arith.constant 0 : index
    %c0_161 = arith.constant 0 : index
    %204 = vector.load %arg6[%c0_160, %c0_161] : memref<128x128xbf16, #tpu.memory_space<vmem>>, vector<128x128xbf16>
    %cst_162 = arith.constant dense<0.000000e+00> : vector<16x128xf32>
    %205 = tpu.matmul %203, %204, %cst_162 {dimension_numbers = #tpu.dot_dimension_numbers<[1], [0], [0], [1], [0, 0, 1, 1], [], []>} : vector<16x128xbf16>, vector<128x128xbf16>, vector<16x128xf32> -> vector<16x128xf32>
    %206 = vector.broadcast %167 : vector<1x128xf32> to vector<16x128xf32>
    %207 = arith.addf %205, %206 : vector<16x128xf32>
    %c0_163 = arith.constant 0 : index
    %c0_164 = arith.constant 0 : index
    %208 = vector.load %arg10[%c0_163, %c0_164] : memref<16x128xf32, #tpu.memory_space<vmem>>, vector<16x128xf32>
    tpu.vector_store %arg10[%c0_163, %c0_164], %207 {strides = array<i32>} : memref<16x128xf32, #tpu.memory_space<vmem>>, vector<16x128xf32>,
    return
  }
  func.func @transform_0(%arg0: i32) -> (i32, i32, i32, i32) {
    %c0_i32 = arith.constant 0 : i32
    %c0_i32_0 = arith.constant 0 : i32
    %c0_i32_1 = arith.constant 0 : i32
    %c0_i32_2 = arith.constant 0 : i32
    return %arg0, %c0_i32, %c0_i32_0, %c0_i32_1 : i32, i32, i32, i32
  }
  func.func @transform_1(%arg0: i32) -> (i32, i32) {
    %c0_i32 = arith.constant 0 : i32
    %c0_i32_0 = arith.constant 0 : i32
    %c0_i32_1 = arith.constant 0 : i32
    return %c0_i32, %c0_i32_0 : i32, i32
  }
  func.func @transform_2(%arg0: i32) -> (i32, i32, i32) {
    %c0_i32 = arith.constant 0 : i32
    %c0_i32_0 = arith.constant 0 : i32
    %c0_i32_1 = arith.constant 0 : i32
    %c0_i32_2 = arith.constant 0 : i32
    return %c0_i32, %c0_i32_0, %c0_i32_1 : i32, i32, i32
  }
  func.func @transform_3(%arg0: i32) -> (i32, i32, i32) {
    %c0_i32 = arith.constant 0 : i32
    %c0_i32_0 = arith.constant 0 : i32
    %c0_i32_1 = arith.constant 0 : i32
    %c0_i32_2 = arith.constant 0 : i32
    return %c0_i32, %c0_i32_0, %c0_i32_1 : i32, i32, i32
  }
  func.func @transform_4(%arg0: i32) -> (i32, i32) {
    %c0_i32 = arith.constant 0 : i32
    %c0_i32_0 = arith.constant 0 : i32
    %c0_i32_1 = arith.constant 0 : i32
    return %c0_i32, %c0_i32_0 : i32, i32
  }
  func.func @transform_5(%arg0: i32) -> (i32, i32) {
    %c0_i32 = arith.constant 0 : i32
    %c0_i32_0 = arith.constant 0 : i32
    %c0_i32_1 = arith.constant 0 : i32
    return %c0_i32, %c0_i32_0 : i32, i32
  }
  func.func @transform_6(%arg0: i32) -> (i32, i32) {
    %c0_i32 = arith.constant 0 : i32
    %c0_i32_0 = arith.constant 0 : i32
    %c0_i32_1 = arith.constant 0 : i32
    return %c0_i32, %c0_i32_0 : i32, i32
  }
  func.func @transform_7(%arg0: i32) -> (i32, i32) {
    %c0_i32 = arith.constant 0 : i32
    %c0_i32_0 = arith.constant 0 : i32
    %c0_i32_1 = arith.constant 0 : i32
    return %c0_i32, %c0_i32_0 : i32, i32
  }
  func.func @transform_8(%arg0: i32) -> (i32, i32) {
    %c0_i32 = arith.constant 0 : i32
    %c0_i32_0 = arith.constant 0 : i32
    %c0_i32_1 = arith.constant 0 : i32
    return %c0_i32, %c0_i32_0 : i32, i32
  }
  func.func @transform_9(%arg0: i32) -> (i32, i32) {
    %c0_i32 = arith.constant 0 : i32
    %c0_i32_0 = arith.constant 0 : i32
    return %arg0, %c0_i32 : i32, i32
  }
}

</mosaic_0001>

<llo_original>
// kernel: pnet_forward.1
$region0: #{pnet_forward.1}
  #allocation0 [shape = 'u32[]', space=smem, size = 0x4, offset = 0x4, fixed_abs, tag = 'smem constant byte address 0x4 - core index']
  #allocation1 [shape = 'u32[144,128]{1,0:T(1,128)}', space=vmem, size = 0x12000, scoped, tag = 'internal scratch']
  #allocation2 [shape = 'bf16[2,112,128]{2,1,0:T(16,128)(2,1)}', space=vmem, size = 0xe000, scoped, tag = 'scratch operand']
  %s0 = inlined_call_operand.vmem [shape: bf16[2,4,80,128], index: 0, kind: input, shape index: {}]
  %s1 = inlined_call_operand.vmem [shape: bf16[128,256], index: 1, kind: input, shape index: {}]
  %s2 = inlined_call_operand.vmem [shape: bf16[5,128,256], index: 2, kind: input, shape index: {}]
  %s3 = inlined_call_operand.vmem [shape: bf16[5,128,128], index: 3, kind: input, shape index: {}]
  %s4 = inlined_call_operand.vmem [shape: bf16[128,128], index: 4, kind: input, shape index: {}]
  %s5 = inlined_call_operand.vmem [shape: bf16[128,128], index: 5, kind: input, shape index: {}]
  %s6 = inlined_call_operand.vmem [shape: f32[3,256], index: 6, kind: input, shape index: {}]
  %s7 = inlined_call_operand.vmem [shape: f32[3,256], index: 7, kind: input, shape index: {}]
  %s8 = inlined_call_operand.vmem [shape: f32[3,128], index: 8, kind: input, shape index: {}]
  %s9 = inlined_call_operand.vmem [shape: f32[32,128], index: 9, kind: output, shape index: {}]
  %s10 = sld [smem:[#allocation0]]
  $region69: #{pnet_forward.1} parent=0
    _
  %s12 = ssub.s32 1, %s10
  %s13 = scalar_select 0, %s12, %s10
  loop: start=0, step=1, limit=4
  $region2: #{pnet_forward.1} parent=0 // loop_pre_header
    _
  $region3: #{pnet_forward.1} parent=0 // loop_header
    %s15 = sphi 0, %s19
    %p16 = scmp.ge.s32.totalorder %s15, 4
    %s25 = sphi 0, %s27
    %s28 = sphi 0, %s25
    %s29 = sphi 0, %s28
    %s45 = sphi 0, %s29
    %s49 = sphi 0, %s49
    %s51 = sphi 0, %s49
    %s52 = sphi 0, %s51
    %s66 = sphi 0, %s52
    %s70 = sphi 0, %s70
    %s72 = sphi 0, %s70
    %s73 = sphi 0, %s72
    %s87 = sphi 0, %s73
    %s91 = sphi 0, %s91
    %s93 = sphi 0, %s91
    %s94 = sphi 0, %s93
    %s108 = sphi 0, %s94
    %s112 = sphi 0, %s112
    %s114 = sphi 0, %s112
    %s115 = sphi 0, %s114
    %s129 = sphi 0, %s115
    %s133 = sphi 0, %s133
    %s135 = sphi 0, %s133
    %s136 = sphi 0, %s135
    %s150 = sphi 0, %s136
    %s154 = sphi 0, %s154
    %s156 = sphi 0, %s154
    %s157 = sphi 0, %s156
    %s171 = sphi 0, %s157
    %s175 = sphi 0, %s175
    %s177 = sphi 0, %s175
    %s178 = sphi 0, %s177
    %s192 = sphi 0, %s178
    %s196 = sphi 0, %s196
    %s198 = sphi 0, %s196
    %s199 = sphi 0, %s198
    %s213 = sphi 0, %s199
    %s219 = sphi 0, %s221
    %s222 = sphi 0, %s219
    %s223 = sphi 0, %s222
    %s239 = sphi 0, %s223
  $region4: #{pnet_forward.1} parent=0 // loop_header_branch
    %18 = sbr.rel (%p16) target = $region8
  $region5: #{pnet_forward.1} parent=0 // loop_body
    %s20 = ssub.s32 %s15, 1
    %s21 = ssub.s32 %s15, 2
    %s22 = sadd.s32 %s15, 1
    %s23 = ssub.s32 %s15, %s22
    %p24 = scmp.eq.s32.totalorder %s23, 0
    %s26 = sadd.s32 %s25, 1
    %s27 = scalar_select %p24, %s25, %s26
    %p30 = pneg %p24
    %p31 = scmp.eq.s32.totalorder %s15, 1
    %p32 = por %p30, %p31
    %p33 = scmp.ne.s32.totalorder %s25, %s28
    %p34 = scmp.eq.s32.totalorder %s15, 0
    %p35 = por %p33, %p34
    %p36 = scmp.ne.s32.totalorder %s25, %s28
    %p37 = scmp.eq.s32.totalorder %s20, 1
    %p38 = por %p36, %p37
    %p39 = scmp.ne.s32.totalorder %s28, %s29
    %p40 = scmp.eq.s32.totalorder %s20, 0
    %p41 = por %p39, %p40
    %p42 = scmp.ne.s32.totalorder %s28, %s29
    %p43 = scmp.eq.s32.totalorder %s21, 1
    %p44 = por %p42, %p43
    %p46 = scmp.ne.s32.totalorder %s29, %s45
    %p47 = scmp.eq.s32.totalorder %s21, 0
    %p48 = por %p46, %p47
    %s50 = sadd.s32 %s49, 1
    %p53 = scmp.eq.s32.totalorder %s15, 1
    %p54 = scmp.ne.s32.totalorder %s49, %s51
    %p55 = scmp.eq.s32.totalorder %s15, 0
    %p56 = por %p54, %p55
    %p57 = scmp.ne.s32.totalorder %s49, %s51
    %p58 = scmp.eq.s32.totalorder %s20, 1
    %p59 = por %p57, %p58
    %p60 = scmp.ne.s32.totalorder %s51, %s52
    %p61 = scmp.eq.s32.totalorder %s20, 0
    %p62 = por %p60, %p61
    %p63 = scmp.ne.s32.totalorder %s51, %s52
    %p64 = scmp.eq.s32.totalorder %s21, 1
    %p65 = por %p63, %p64
    %p67 = scmp.ne.s32.totalorder %s52, %s66
    %p68 = scmp.eq.s32.totalorder %s21, 0
    %p69 = por %p67, %p68
    %s71 = sadd.s32 %s70, 1
    %p74 = scmp.eq.s32.totalorder %s15, 1
    %p75 = scmp.ne.s32.totalorder %s70, %s72
    %p76 = scmp.eq.s32.totalorder %s15, 0
    %p77 = por %p75, %p76
    %p78 = scmp.ne.s32.totalorder %s70, %s72
    %p79 = scmp.eq.s32.totalorder %s20, 1
    %p80 = por %p78, %p79
    %p81 = scmp.ne.s32.totalorder %s72, %s73
    %p82 = scmp.eq.s32.totalorder %s20, 0
    %p83 = por %p81, %p82
    %p84 = scmp.ne.s32.totalorder %s72, %s73
    %p85 = scmp.eq.s32.totalorder %s21, 1
    %p86 = por %p84, %p85
    %p88 = scmp.ne.s32.totalorder %s73, %s87
    %p89 = scmp.eq.s32.totalorder %s21, 0
    %p90 = por %p88, %p89
    %s92 = sadd.s32 %s91, 1
    %p95 = scmp.eq.s32.totalorder %s15, 1
    %p96 = scmp.ne.s32.totalorder %s91, %s93
    %p97 = scmp.eq.s32.totalorder %s15, 0
    %p98 = por %p96, %p97
    %p99 = scmp.ne.s32.totalorder %s91, %s93
    %p100 = scmp.eq.s32.totalorder %s20, 1
    %p101 = por %p99, %p100
    %p102 = scmp.ne.s32.totalorder %s93, %s94
    %p103 = scmp.eq.s32.totalorder %s20, 0
    %p104 = por %p102, %p103
    %p105 = scmp.ne.s32.totalorder %s93, %s94
    %p106 = scmp.eq.s32.totalorder %s21, 1
    %p107 = por %p105, %p106
    %p109 = scmp.ne.s32.totalorder %s94, %s108
    %p110 = scmp.eq.s32.totalorder %s21, 0
    %p111 = por %p109, %p110
    %s113 = sadd.s32 %s112, 1
    %p116 = scmp.eq.s32.totalorder %s15, 1
    %p117 = scmp.ne.s32.totalorder %s112, %s114
    %p118 = scmp.eq.s32.totalorder %s15, 0
    %p119 = por %p117, %p118
    %p120 = scmp.ne.s32.totalorder %s112, %s114
    %p121 = scmp.eq.s32.totalorder %s20, 1
    %p122 = por %p120, %p121
    %p123 = scmp.ne.s32.totalorder %s114, %s115
    %p124 = scmp.eq.s32.totalorder %s20, 0
    %p125 = por %p123, %p124
    %p126 = scmp.ne.s32.totalorder %s114, %s115
    %p127 = scmp.eq.s32.totalorder %s21, 1
    %p128 = por %p126, %p127
    %p130 = scmp.ne.s32.totalorder %s115, %s129
    %p131 = scmp.eq.s32.totalorder %s21, 0
    %p132 = por %p130, %p131
    %s134 = sadd.s32 %s133, 1
    %p137 = scmp.eq.s32.totalorder %s15, 1
    %p138 = scmp.ne.s32.totalorder %s133, %s135
    %p139 = scmp.eq.s32.totalorder %s15, 0
    %p140 = por %p138, %p139
    %p141 = scmp.ne.s32.totalorder %s133, %s135
    %p142 = scmp.eq.s32.totalorder %s20, 1
    %p143 = por %p141, %p142
    %p144 = scmp.ne.s32.totalorder %s135, %s136
    %p145 = scmp.eq.s32.totalorder %s20, 0
    %p146 = por %p144, %p145
    %p147 = scmp.ne.s32.totalorder %s135, %s136
    %p148 = scmp.eq.s32.totalorder %s21, 1
    %p149 = por %p147, %p148
    %p151 = scmp.ne.s32.totalorder %s136, %s150
    %p152 = scmp.eq.s32.totalorder %s21, 0
    %p153 = por %p151, %p152
    %s155 = sadd.s32 %s154, 1
    %p158 = scmp.eq.s32.totalorder %s15, 1
    %p159 = scmp.ne.s32.totalorder %s154, %s156
    %p160 = scmp.eq.s32.totalorder %s15, 0
    %p161 = por %p159, %p160
    %p162 = scmp.ne.s32.totalorder %s154, %s156
    %p163 = scmp.eq.s32.totalorder %s20, 1
    %p164 = por %p162, %p163
    %p165 = scmp.ne.s32.totalorder %s156, %s157
    %p166 = scmp.eq.s32.totalorder %s20, 0
    %p167 = por %p165, %p166
    %p168 = scmp.ne.s32.totalorder %s156, %s157
    %p169 = scmp.eq.s32.totalorder %s21, 1
    %p170 = por %p168, %p169
    %p172 = scmp.ne.s32.totalorder %s157, %s171
    %p173 = scmp.eq.s32.totalorder %s21, 0
    %p174 = por %p172, %p173
    %s176 = sadd.s32 %s175, 1
    %p179 = scmp.eq.s32.totalorder %s15, 1
    %p180 = scmp.ne.s32.totalorder %s175, %s177
    %p181 = scmp.eq.s32.totalorder %s15, 0
    %p182 = por %p180, %p181
    %p183 = scmp.ne.s32.totalorder %s175, %s177
    %p184 = scmp.eq.s32.totalorder %s20, 1
    %p185 = por %p183, %p184
    %p186 = scmp.ne.s32.totalorder %s177, %s178
    %p187 = scmp.eq.s32.totalorder %s20, 0
    %p188 = por %p186, %p187
    %p189 = scmp.ne.s32.totalorder %s177, %s178
    %p190 = scmp.eq.s32.totalorder %s21, 1
    %p191 = por %p189, %p190
    %p193 = scmp.ne.s32.totalorder %s178, %s192
    %p194 = scmp.eq.s32.totalorder %s21, 0
    %p195 = por %p193, %p194
    %s197 = sadd.s32 %s196, 1
    %p200 = scmp.eq.s32.totalorder %s15, 1
    %p201 = scmp.ne.s32.totalorder %s196, %s198
    %p202 = scmp.eq.s32.totalorder %s15, 0
    %p203 = por %p201, %p202
    %p204 = scmp.ne.s32.totalorder %s196, %s198
    %p205 = scmp.eq.s32.totalorder %s20, 1
    %p206 = por %p204, %p205
    %p207 = scmp.ne.s32.totalorder %s198, %s199
    %p208 = scmp.eq.s32.totalorder %s20, 0
    %p209 = por %p207, %p208
    %p210 = scmp.ne.s32.totalorder %s198, %s199
    %p211 = scmp.eq.s32.totalorder %s21, 1
    %p212 = por %p210, %p211
    %p214 = scmp.ne.s32.totalorder %s199, %s213
    %p215 = scmp.eq.s32.totalorder %s21, 0
    %p216 = por %p214, %p215
    %s217 = ssub.s32 %s15, %s22
    %p218 = scmp.eq.s32.totalorder %s217, 0
    %s220 = sadd.s32 %s219, 1
    %s221 = scalar_select %p218, %s219, %s220
    %p224 = pneg %p218
    %p225 = scmp.eq.s32.totalorder %s15, 1
    %p226 = por %p224, %p225
    %p227 = scmp.ne.s32.totalorder %s219, %s222
    %p228 = scmp.eq.s32.totalorder %s15, 0
    %p229 = por %p227, %p228
    %p230 = scmp.ne.s32.totalorder %s219, %s222
    %p231 = scmp.eq.s32.totalorder %s20, 1
    %p232 = por %p230, %p231
    %p233 = scmp.ne.s32.totalorder %s222, %s223
    %p234 = scmp.eq.s32.totalorder %s20, 0
    %p235 = por %p233, %p234
    %p236 = scmp.ne.s32.totalorder %s222, %s223
    %p237 = scmp.eq.s32.totalorder %s21, 1
    %p238 = por %p236, %p237
    %p240 = scmp.ne.s32.totalorder %s223, %s239
    %p241 = scmp.eq.s32.totalorder %s21, 0
    %p242 = por %p240, %p241
    %p243 = scmp.le.s32.totalorder 1, %s15
    %p244 = scmp.lt.s32.totalorder %s15, 3
    %p245 = pnand %p243, %p244
    %p246 = pneg %p245
    // Predicated region
    $region9: #{pnet_forward.1} parent=5 // pred_check
      _
    $region10: #{pnet_forward.1} parent=5 // pred_check_branch
      %248 = sbr.rel (%p245) target = $region12
    $region11: #{pnet_forward.1} parent=5 // pred_region
      %s249 = ssub.s32 %s15, 1
      // Predicated region
      $region13: #{pnet_forward.1} parent=11 // pred_check
        %p250 = pneg %p62
      $region14: #{pnet_forward.1} parent=11 // pred_check_branch
        %252 = sbr.rel (%p250) target = $region16
      $region15: #{pnet_forward.1} parent=11 // pred_region
        _
      $region16: #{pnet_forward.1} parent=11 // pred_fallthru
        _
      // Predicated region
      $region17: #{pnet_forward.1} parent=11 // pred_check
        %p253 = pneg %p83
      $region18: #{pnet_forward.1} parent=11 // pred_check_branch
        %255 = sbr.rel (%p253) target = $region20
      $region19: #{pnet_forward.1} parent=11 // pred_region
        _
      $region20: #{pnet_forward.1} parent=11 // pred_fallthru
        _
      // Predicated region
      $region21: #{pnet_forward.1} parent=11 // pred_check
        %p256 = pneg %p104
      $region22: #{pnet_forward.1} parent=11 // pred_check_branch
        %258 = sbr.rel (%p256) target = $region24
      $region23: #{pnet_forward.1} parent=11 // pred_region
        _
      $region24: #{pnet_forward.1} parent=11 // pred_fallthru
        _
      // Predicated region
      $region25: #{pnet_forward.1} parent=11 // pred_check
        %p259 = pneg %p125
      $region26: #{pnet_forward.1} parent=11 // pred_check_branch
        %261 = sbr.rel (%p259) target = $region28
      $region27: #{pnet_forward.1} parent=11 // pred_region
        _
      $region28: #{pnet_forward.1} parent=11 // pred_fallthru
        _
      // Predicated region
      $region29: #{pnet_forward.1} parent=11 // pred_check
        %p262 = pneg %p146
      $region30: #{pnet_forward.1} parent=11 // pred_check_branch
        %264 = sbr.rel (%p262) target = $region32
      $region31: #{pnet_forward.1} parent=11 // pred_region
        _
      $region32: #{pnet_forward.1} parent=11 // pred_fallthru
        _
      // Predicated region
      $region33: #{pnet_forward.1} parent=11 // pred_check
        %p265 = pneg %p167
      $region34: #{pnet_forward.1} parent=11 // pred_check_branch
        %267 = sbr.rel (%p265) target = $region36
      $region35: #{pnet_forward.1} parent=11 // pred_region
        _
      $region36: #{pnet_forward.1} parent=11 // pred_fallthru
        _
      // Predicated region
      $region37: #{pnet_forward.1} parent=11 // pred_check
        %p268 = pneg %p188
      $region38: #{pnet_forward.1} parent=11 // pred_check_branch
        %270 = sbr.rel (%p268) target = $region40
      $region39: #{pnet_forward.1} parent=11 // pred_region
        _
      $region40: #{pnet_forward.1} parent=11 // pred_fallthru
        _
      // Predicated region
      $region41: #{pnet_forward.1} parent=11 // pred_check
        %p271 = pneg %p209
      $region42: #{pnet_forward.1} parent=11 // pred_check_branch
        %273 = sbr.rel (%p271) target = $region44
      $region43: #{pnet_forward.1} parent=11 // pred_region
        _
      $region44: #{pnet_forward.1} parent=11 // pred_fallthru
        _
    $region12: #{pnet_forward.1} parent=5 // pred_fallthru
      _
    %p274 = scmp.lt.s32.totalorder %s15, 2
    // Predicated region
    $region45: #{pnet_forward.1} parent=5 // pred_check
      %p275 = pneg %p274
    $region46: #{pnet_forward.1} parent=5 // pred_check_branch
      %277 = sbr.rel (%p275) target = $region48
    $region47: #{pnet_forward.1} parent=5 // pred_region
      // Predicated region
      $region49: #{pnet_forward.1} parent=47 // pred_check
        %p278 = pneg %p35
      $region50: #{pnet_forward.1} parent=47 // pred_check_branch
        %280 = sbr.rel (%p278) target = $region52
      $region51: #{pnet_forward.1} parent=47 // pred_region
        %p281 = scmp.lt.s32.totalorder %s15, 1
        %s282 = scalar_select %p281, %s15, 1
        %s283 = smul.addr %s282, 40
        %s284 = smul.addr %s283, 4
        %s285 = scalar_lea.vmem %s0, %s284
      $region52: #{pnet_forward.1} parent=47 // pred_fallthru
        _
    $region48: #{pnet_forward.1} parent=5 // pred_fallthru
      _
    %p286 = scmp.le.s32.totalorder 1, %s15
    %p287 = scmp.lt.s32.totalorder %s15, 3
    %p288 = pnand %p286, %p287
    %p289 = pneg %p288
    // Predicated region
    $region53: #{pnet_forward.1} parent=5 // pred_check
      _
    $region54: #{pnet_forward.1} parent=5 // pred_check_branch
      %291 = sbr.rel (%p288) target = $region56
    $region55: #{pnet_forward.1} parent=5 // pred_region
      %s292 = ssub.s32 %s15, 1
      %p293 = scmp.lt.s32.totalorder %s20, 1
      %s294 = scalar_select %p293, %s20, 1
      %s295 = smul.addr %s294, 40
      %s296 = smul.addr %s295, 4
      %s297 = scalar_lea.vmem %s0, %s296
      %p298 = pneg %p41
      %p299 = pneg %p38
      %p300 = pneg %p62
      %p301 = pneg %p59
      %p302 = pneg %p83
      %p303 = pneg %p80
      %p304 = pneg %p104
      %p305 = pneg %p101
      %p306 = pneg %p125
      %p307 = pneg %p122
      %p308 = pneg %p146
      %p309 = pneg %p143
      %p310 = pneg %p167
      %p311 = pneg %p164
      %p312 = pneg %p188
      %p313 = pneg %p185
      %p314 = pneg %p209
      %p315 = pneg %p206
      %p316 = pneg %p235
      %p317 = pneg %p232
      %s318 = smul.u32 2, %s20
      %p319 = scmp.lt.s32.totalorder %s318, 3
      %s320 = scalar_select %p319, %s318, 3
      %s321 = smul.addr %s320, 8
      %s322 = scalar_lea.vmem %s9, %s321
      %p323 = scmp.lt.s32.totalorder %s20, 1
      %s324 = scalar_select %p323, %s20, 1
      %s325 = smul.addr %s324, 40
      %s326 = smul.addr %s325, 4
      %s327 = scalar_lea.vmem %s0, %s326
      %s328 = smul.u32 2, %s20
      %p329 = scmp.lt.s32.totalorder %s328, 3
      %s330 = scalar_select %p329, %s328, 3
      %s331 = smul.addr %s330, 8
      %s332 = scalar_lea.vmem %s9, %s331
      %s333 = smul.u32 2, %s20
      %v335 = vld [vmem:[%s6] ss:$4 sm:$0x3]
      %s336 = scalar_lea.vmem %s6, 1
      %v337 = vld [vmem:[%s336] ss:$4 sm:$0x3]
      %s338 = scalar_lea.vmem %s6, 2
      %v339 = vld [vmem:[%s338] ss:$4 sm:$0x3]
      %v340 = vld [vmem:[%s327] sm:$0xf]
      %v341 = vld [vmem:[%s327 + $0x4] sm:$0xf]
      %v342 = vld [vmem:[%s327 + $0x8] sm:$0xf]
      %v343 = vld [vmem:[%s327 + $0xc] sm:$0xf]
      %v344 = vld [vmem:[%s327 + $0x10] sm:$0xf]
      %v345 = vld [vmem:[%s327 + $0x14] sm:$0xf]
      %v346 = vld [vmem:[%s327 + $0x18] sm:$0xf]
      %v347 = vld [vmem:[%s327 + $0x1c] sm:$0xf]
      %v348 = vld [vmem:[%s327 + $0x20] sm:$0xf]
      %v349 = vld [vmem:[%s327 + $0x24] sm:$0xf]
      %v350 = vld [vmem:[%s1] sm:$0xff]
      %v351 = vld [vmem:[%s1 + $0x8] sm:$0xff]
      %v352 = vld [vmem:[%s1 + $0x10] sm:$0xff]
      %v353 = vld [vmem:[%s1 + $0x18] sm:$0xff]
      %v354 = vld [vmem:[%s1 + $0x20] sm:$0xff]
      %v355 = vld [vmem:[%s1 + $0x28] sm:$0xff]
      %v356 = vld [vmem:[%s1 + $0x30] sm:$0xff]
      %v357 = vld [vmem:[%s1 + $0x38] sm:$0xff]
      %v358 = vld [vmem:[%s1 + $0x40] sm:$0xff]
      %v359 = vld [vmem:[%s1 + $0x48] sm:$0xff]
      %v360 = vld [vmem:[%s1 + $0x50] sm:$0xff]
      %v361 = vld [vmem:[%s1 + $0x58] sm:$0xff]
      %v362 = vld [vmem:[%s1 + $0x60] sm:$0xff]
      %v363 = vld [vmem:[%s1 + $0x68] sm:$0xff]
      %v364 = vld [vmem:[%s1 + $0x70] sm:$0xff]
      %v365 = vld [vmem:[%s1 + $0x78] sm:$0xff]
      %v367 = vlaneseq
      %v368 = vshrl.u32 %v367, 7
      %v369 = vsub.s32 0, %v368
      %v370 = vrot.slane %v335, %v369
      %v371 = vlaneseq
      %v372 = vshrl.u32 %v371, 7
      %v373 = vsub.s32 1, %v372
      %v374 = vrot.slane %v335, %v373
      %v387 = vunpack.c.l.b16 %v340
      %v388 = vunpack.c.l.b16 %v341
      %v389 = vunpack.c.l.b16 %v342
      %v390 = vunpack.c.l.b16 %v343
      %v391 = vunpack.c.l.b16 %v344
      %v392 = vunpack.c.l.b16 %v345
      %v393 = vunpack.c.l.b16 %v346
      %v394 = vunpack.c.l.b16 %v347
      %v395 = vunpack.c.l.b16 %v348
      %v396 = vunpack.c.l.b16 %v349
      %v397 = vpack.c.b16 %v388, %v387
      %v398 = vpack.c.b16 %v390, %v389
      %v399 = vpack.c.b16 %v392, %v391
      %v400 = vpack.c.b16 %v394, %v393
      %v401 = vpack.c.b16 %v396, %v395
      %v423 = vunpack.c.l.b16 %v350
      %v424 = vunpack.c.h.b16 %v350
      %v425 = vunpack.c.l.b16 %v351
      %v426 = vunpack.c.h.b16 %v351
      %v427 = vunpack.c.l.b16 %v352
      %v428 = vunpack.c.h.b16 %v352
      %v429 = vunpack.c.l.b16 %v353
      %v430 = vunpack.c.h.b16 %v353
      %v431 = vunpack.c.l.b16 %v354
      %v432 = vunpack.c.h.b16 %v354
      %v433 = vunpack.c.l.b16 %v355
      %v434 = vunpack.c.h.b16 %v355
      %v435 = vunpack.c.l.b16 %v356
      %v436 = vunpack.c.h.b16 %v356
      %v437 = vunpack.c.l.b16 %v357
      %v438 = vunpack.c.h.b16 %v357
      %v439 = vunpack.c.l.b16 %v358
      %v440 = vunpack.c.h.b16 %v358
      %v441 = vunpack.c.l.b16 %v359
      %v442 = vunpack.c.h.b16 %v359
      %v443 = vunpack.c.l.b16 %v360
      %v444 = vunpack.c.h.b16 %v360
      %v445 = vunpack.c.l.b16 %v361
      %v446 = vunpack.c.h.b16 %v361
      %v447 = vunpack.c.l.b16 %v362
      %v448 = vunpack.c.h.b16 %v362
      %v449 = vunpack.c.l.b16 %v363
      %v450 = vunpack.c.h.b16 %v363
      %v451 = vunpack.c.l.b16 %v364
      %v452 = vunpack.c.h.b16 %v364
      %v453 = vunpack.c.l.b16 %v365
      %v454 = vunpack.c.h.b16 %v365
      %v455 = vpack.c.b16 %v425, %v423
      %v456 = vpack.c.b16 %v426, %v424
      %v457 = vpack.c.b16 %v429, %v427
      %v458 = vpack.c.b16 %v430, %v428
      %v459 = vpack.c.b16 %v433, %v431
      %v460 = vpack.c.b16 %v434, %v432
      %v461 = vpack.c.b16 %v437, %v435
      %v462 = vpack.c.b16 %v438, %v436
      %v463 = vpack.c.b16 %v441, %v439
      %v464 = vpack.c.b16 %v442, %v440
      %v465 = vpack.c.b16 %v445, %v443
      %v466 = vpack.c.b16 %v446, %v444
      %v467 = vpack.c.b16 %v449, %v447
      %v468 = vpack.c.b16 %v450, %v448
      %v469 = vpack.c.b16 %v453, %v451
      %v470 = vpack.c.b16 %v454, %v452
      %487 = vmatprep.subr.bf16.mxu0 %v456
      %488 = vmatpush1.bf16.msra.mxu0 %v455
      %489 = vmatprep.subr.bf16.mxu0 %v458
      %490 = vmatpush1.bf16.msra.mxu0 %v457
      %491 = vmatprep.subr.bf16.mxu0 %v460
      %492 = vmatpush1.bf16.msra.mxu0 %v459
      %493 = vmatprep.subr.bf16.mxu0 %v462
      %494 = vmatpush1.bf16.msra.mxu0 %v461
      %495 = vmatprep.subr.bf16.mxu0 %v464
      %496 = vmatpush1.bf16.msra.mxu0 %v463
      %497 = vmatprep.subr.bf16.mxu0 %v466
      %498 = vmatpush1.bf16.msra.mxu0 %v465
      %499 = vmatprep.subr.bf16.mxu0 %v468
      %500 = vmatpush1.bf16.msra.mxu0 %v467
      %501 = vmatprep.subr.bf16.mxu0 %v470
      %502 = vmatpush1.bf16.msra.mxu0 %v469
      %503 = vmatprep.subr.bf16.mxu0 0
      %504 = vmatpush1.bf16.msra.mxu0 0
      %505 = vmatprep.subr.bf16.mxu0 0
      %506 = vmatpush1.bf16.msra.mxu0 0
      %507 = vmatprep.subr.bf16.mxu0 0
      %508 = vmatpush1.bf16.msra.mxu0 0
      %509 = vmatprep.subr.bf16.mxu0 0
      %510 = vmatpush1.bf16.msra.mxu0 0
      %511 = vmatprep.subr.bf16.mxu0 0
      %512 = vmatpush1.bf16.msra.mxu0 0
      %513 = vmatprep.subr.bf16.mxu0 0
      %514 = vmatpush1.bf16.msra.mxu0 0
      %515 = vmatprep.subr.bf16.mxu0 0
      %516 = vmatpush1.bf16.msra.mxu0 0
      %517 = vmatprep.subr.bf16.mxu0 0
      %518 = vmatpush1.bf16.msra.mxu0 0
      %519 = vmatprep.mubr.bf16.mxu0 0
      %520 = vmatmul.mubr.bf16.gmra.mrb[0].mxu0 %v397
      %v521 = vpop.f32.mrb[0].mxu0
      %v522 = vadd.f32 %v370, %v521
      %v523 = vpop.f32.mrb[0].mxu0
      %v524 = vadd.f32 %v374, %v523
      %v525 = vpop.f32.mrb[0].mxu0
      %v526 = vadd.f32 %v370, %v525
      %v527 = vpop.f32.mrb[0].mxu0
      %v528 = vadd.f32 %v374, %v527
      %529 = vmatprep.mubr.bf16.mxu0 0
      %530 = vmatmul.mubr.bf16.gmra.mrb[0].mxu0 %v398
      %v531 = vpop.f32.mrb[0].mxu0
      %v532 = vadd.f32 %v370, %v531
      %v533 = vpop.f32.mrb[0].mxu0
      %v534 = vadd.f32 %v374, %v533
      %v535 = vpop.f32.mrb[0].mxu0
      %v536 = vadd.f32 %v370, %v535
      %v537 = vpop.f32.mrb[0].mxu0
      %v538 = vadd.f32 %v374, %v537
      %539 = vmatprep.mubr.bf16.mxu0 0
      %540 = vmatmul.mubr.bf16.gmra.mrb[0].mxu0 %v399
      %v541 = vpop.f32.mrb[0].mxu0
      %v542 = vadd.f32 %v370, %v541
      %v543 = vpop.f32.mrb[0].mxu0
      %v544 = vadd.f32 %v374, %v543
      %v545 = vpop.f32.mrb[0].mxu0
      %v546 = vadd.f32 %v370, %v545
      %v547 = vpop.f32.mrb[0].mxu0
      %v548 = vadd.f32 %v374, %v547
      %549 = vmatprep.mubr.bf16.mxu0 0
      %550 = vmatmul.mubr.bf16.gmra.mrb[0].mxu0 %v400
      %v551 = vpop.f32.mrb[0].mxu0
      %v552 = vadd.f32 %v370, %v551
      %v553 = vpop.f32.mrb[0].mxu0
      %v554 = vadd.f32 %v374, %v553
      %v555 = vpop.f32.mrb[0].mxu0
      %v556 = vadd.f32 %v370, %v555
      %v557 = vpop.f32.mrb[0].mxu0
      %v558 = vadd.f32 %v374, %v557
      %559 = vmatprep.mubr.bf16.mxu0 0
      %560 = vmatmul.mubr.bf16.gmra.mrb[0].mxu0 %v401
      %v561 = vpop.f32.mrb[0].mxu0
      %v562 = vadd.f32 %v370, %v561
      %v563 = vpop.f32.mrb[0].mxu0
      %v564 = vadd.f32 %v374, %v563
      %v565 = vpop.f32.mrb[0].mxu0
      %v566 = vadd.f32 %v370, %v565
      %v567 = vpop.f32.mrb[0].mxu0
      %v568 = vadd.f32 %v374, %v567
      %569 = vdwg.mxu0
      %v570 = vmax.f32 %v522, 0.0
      %v571 = vmax.f32 %v524, 0.0
      %v572 = vmax.f32 %v526, 0.0
      %v573 = vmax.f32 %v528, 0.0
      %v574 = vmax.f32 %v532, 0.0
      %v575 = vmax.f32 %v534, 0.0
      %v576 = vmax.f32 %v536, 0.0
      %v577 = vmax.f32 %v538, 0.0
      %v578 = vmax.f32 %v542, 0.0
      %v579 = vmax.f32 %v544, 0.0
      %v580 = vmax.f32 %v546, 0.0
      %v581 = vmax.f32 %v548, 0.0
      %v582 = vmax.f32 %v552, 0.0
      %v583 = vmax.f32 %v554, 0.0
      %v584 = vmax.f32 %v556, 0.0
      %v585 = vmax.f32 %v558, 0.0
      %v586 = vmax.f32 %v562, 0.0
      %v587 = vmax.f32 %v564, 0.0
      %v588 = vmax.f32 %v566, 0.0
      %v589 = vmax.f32 %v568, 0.0
      %v591 = vlaneseq
      %v592 = vshrl.u32 %v591, 7
      %v593 = vsub.s32 0, %v592
      %v594 = vrot.slane %v337, %v593
      %v595 = vlaneseq
      %v596 = vshrl.u32 %v595, 7
      %v597 = vsub.s32 1, %v596
      %v598 = vrot.slane %v337, %v597
      %v601 = vmul.f32 %v570, %v594
      %v602 = vmul.f32 %v571, %v598
      %v603 = vmul.f32 %v572, %v594
      %v604 = vmul.f32 %v573, %v598
      %v605 = vmul.f32 %v574, %v594
      %v606 = vmul.f32 %v575, %v598
      %v607 = vmul.f32 %v576, %v594
      %v608 = vmul.f32 %v577, %v598
      %v609 = vmul.f32 %v578, %v594
      %v610 = vmul.f32 %v579, %v598
      %v611 = vmul.f32 %v580, %v594
      %v612 = vmul.f32 %v581, %v598
      %v613 = vmul.f32 %v582, %v594
      %v614 = vmul.f32 %v583, %v598
      %v615 = vmul.f32 %v584, %v594
      %v616 = vmul.f32 %v585, %v598
      %v617 = vmul.f32 %v586, %v594
      %v618 = vmul.f32 %v587, %v598
      %v619 = vmul.f32 %v588, %v594
      %v620 = vmul.f32 %v589, %v598
      %v622 = vlaneseq
      %v623 = vshrl.u32 %v622, 7
      %v624 = vsub.s32 0, %v623
      %v625 = vrot.slane %v339, %v624
      %v626 = vlaneseq
      %v627 = vshrl.u32 %v626, 7
      %v628 = vsub.s32 1, %v627
      %v629 = vrot.slane %v339, %v628
      %v632 = vadd.f32 %v601, %v625
      %v633 = vadd.f32 %v602, %v629
      %v634 = vadd.f32 %v603, %v625
      %v635 = vadd.f32 %v604, %v629
      %v636 = vadd.f32 %v605, %v625
      %v637 = vadd.f32 %v606, %v629
      %v638 = vadd.f32 %v607, %v625
      %v639 = vadd.f32 %v608, %v629
      %v640 = vadd.f32 %v609, %v625
      %v641 = vadd.f32 %v610, %v629
      %v642 = vadd.f32 %v611, %v625
      %v643 = vadd.f32 %v612, %v629
      %v644 = vadd.f32 %v613, %v625
      %v645 = vadd.f32 %v614, %v629
      %v646 = vadd.f32 %v615, %v625
      %v647 = vadd.f32 %v616, %v629
      %v648 = vadd.f32 %v617, %v625
      %v649 = vadd.f32 %v618, %v629
      %v650 = vadd.f32 %v619, %v625
      %v651 = vadd.f32 %v620, %v629
      %s652 = scalar_lea.vmem %s327, 40
      %v653 = vld [vmem:[%s652] sm:$0xf]
      %v654 = vld [vmem:[%s652 + $0x4] sm:$0xf]
      %v655 = vld [vmem:[%s652 + $0x8] sm:$0xf]
      %v656 = vld [vmem:[%s652 + $0xc] sm:$0xf]
      %v657 = vld [vmem:[%s652 + $0x10] sm:$0xf]
      %v658 = vld [vmem:[%s652 + $0x14] sm:$0xf]
      %v659 = vld [vmem:[%s652 + $0x18] sm:$0xf]
      %v660 = vld [vmem:[%s652 + $0x1c] sm:$0xf]
      %v661 = vld [vmem:[%s652 + $0x20] sm:$0xf]
      %v662 = vld [vmem:[%s652 + $0x24] sm:$0xf]
      %v673 = vunpack.c.l.b16 %v653
      %v674 = vunpack.c.l.b16 %v654
      %v675 = vunpack.c.l.b16 %v655
      %v676 = vunpack.c.l.b16 %v656
      %v677 = vunpack.c.l.b16 %v657
      %v678 = vunpack.c.l.b16 %v658
      %v679 = vunpack.c.l.b16 %v659
      %v680 = vunpack.c.l.b16 %v660
      %v681 = vunpack.c.l.b16 %v661
      %v682 = vunpack.c.l.b16 %v662
      %v683 = vpack.c.b16 %v674, %v673
      %v684 = vpack.c.b16 %v676, %v675
      %v685 = vpack.c.b16 %v678, %v677
      %v686 = vpack.c.b16 %v680, %v679
      %v687 = vpack.c.b16 %v682, %v681
      %693 = vmatprep.subr.bf16.mxu0 %v456
      %694 = vmatpush1.bf16.msra.mxu0 %v455
      %695 = vmatprep.subr.bf16.mxu0 %v458
      %696 = vmatpush1.bf16.msra.mxu0 %v457
      %697 = vmatprep.subr.bf16.mxu0 %v460
      %698 = vmatpush1.bf16.msra.mxu0 %v459
      %699 = vmatprep.subr.bf16.mxu0 %v462
      %700 = vmatpush1.bf16.msra.mxu0 %v461
      %701 = vmatprep.subr.bf16.mxu0 %v464
      %702 = vmatpush1.bf16.msra.mxu0 %v463
      %703 = vmatprep.subr.bf16.mxu0 %v466
      %704 = vmatpush1.bf16.msra.mxu0 %v465
      %705 = vmatprep.subr.bf16.mxu0 %v468
      %706 = vmatpush1.bf16.msra.mxu0 %v467
      %707 = vmatprep.subr.bf16.mxu0 %v470
      %708 = vmatpush1.bf16.msra.mxu0 %v469
      %709 = vmatprep.subr.bf16.mxu0 0
      %710 = vmatpush1.bf16.msra.mxu0 0
      %711 = vmatprep.subr.bf16.mxu0 0
      %712 = vmatpush1.bf16.msra.mxu0 0
      %713 = vmatprep.subr.bf16.mxu0 0
      %714 = vmatpush1.bf16.msra.mxu0 0
      %715 = vmatprep.subr.bf16.mxu0 0
      %716 = vmatpush1.bf16.msra.mxu0 0
      %717 = vmatprep.subr.bf16.mxu0 0
      %718 = vmatpush1.bf16.msra.mxu0 0
      %719 = vmatprep.subr.bf16.mxu0 0
      %720 = vmatpush1.bf16.msra.mxu0 0
      %721 = vmatprep.subr.bf16.mxu0 0
      %722 = vmatpush1.bf16.msra.mxu0 0
      %723 = vmatprep.subr.bf16.mxu0 0
      %724 = vmatpush1.bf16.msra.mxu0 0
      %725 = vmatprep.mubr.bf16.mxu0 0
      %726 = vmatmul.mubr.bf16.gmra.mrb[0].mxu0 %v683
      %v727 = vpop.f32.mrb[0].mxu0
      %v728 = vadd.f32 %v370, %v727
      %v729 = vpop.f32.mrb[0].mxu0
      %v730 = vadd.f32 %v374, %v729
      %v731 = vpop.f32.mrb[0].mxu0
      %v732 = vadd.f32 %v370, %v731
      %v733 = vpop.f32.mrb[0].mxu0
      %v734 = vadd.f32 %v374, %v733
      %735 = vmatprep.mubr.bf16.mxu0 0
      %736 = vmatmul.mubr.bf16.gmra.mrb[0].mxu0 %v684
      %v737 = vpop.f32.mrb[0].mxu0
      %v738 = vadd.f32 %v370, %v737
      %v739 = vpop.f32.mrb[0].mxu0
      %v740 = vadd.f32 %v374, %v739
      %v741 = vpop.f32.mrb[0].mxu0
      %v742 = vadd.f32 %v370, %v741
      %v743 = vpop.f32.mrb[0].mxu0
      %v744 = vadd.f32 %v374, %v743
      %745 = vmatprep.mubr.bf16.mxu0 0
      %746 = vmatmul.mubr.bf16.gmra.mrb[0].mxu0 %v685
      %v747 = vpop.f32.mrb[0].mxu0
      %v748 = vadd.f32 %v370, %v747
      %v749 = vpop.f32.mrb[0].mxu0
      %v750 = vadd.f32 %v374, %v749
      %v751 = vpop.f32.mrb[0].mxu0
      %v752 = vadd.f32 %v370, %v751
      %v753 = vpop.f32.mrb[0].mxu0
      %v754 = vadd.f32 %v374, %v753
      %755 = vmatprep.mubr.bf16.mxu0 0
      %756 = vmatmul.mubr.bf16.gmra.mrb[0].mxu0 %v686
      %v757 = vpop.f32.mrb[0].mxu0
      %v758 = vadd.f32 %v370, %v757
      %v759 = vpop.f32.mrb[0].mxu0
      %v760 = vadd.f32 %v374, %v759
      %v761 = vpop.f32.mrb[0].mxu0
      %v762 = vadd.f32 %v370, %v761
      %v763 = vpop.f32.mrb[0].mxu0
      %v764 = vadd.f32 %v374, %v763
      %765 = vmatprep.mubr.bf16.mxu0 0
      %766 = vmatmul.mubr.bf16.gmra.mrb[0].mxu0 %v687
      %v767 = vpop.f32.mrb[0].mxu0
      %v768 = vadd.f32 %v370, %v767
      %v769 = vpop.f32.mrb[0].mxu0
      %v770 = vadd.f32 %v374, %v769
      %v771 = vpop.f32.mrb[0].mxu0
      %v772 = vadd.f32 %v370, %v771
      %v773 = vpop.f32.mrb[0].mxu0
      %v774 = vadd.f32 %v374, %v773
      %775 = vdwg.mxu0
      %v776 = vmax.f32 %v728, 0.0
      %v777 = vmax.f32 %v730, 0.0
      %v778 = vmax.f32 %v732, 0.0
      %v779 = vmax.f32 %v734, 0.0
      %v780 = vmax.f32 %v738, 0.0
      %v781 = vmax.f32 %v740, 0.0
      %v782 = vmax.f32 %v742, 0.0
      %v783 = vmax.f32 %v744, 0.0
      %v784 = vmax.f32 %v748, 0.0
      %v785 = vmax.f32 %v750, 0.0
      %v786 = vmax.f32 %v752, 0.0
      %v787 = vmax.f32 %v754, 0.0
      %v788 = vmax.f32 %v758, 0.0
      %v789 = vmax.f32 %v760, 0.0
      %v790 = vmax.f32 %v762, 0.0
      %v791 = vmax.f32 %v764, 0.0
      %v792 = vmax.f32 %v768, 0.0
      %v793 = vmax.f32 %v770, 0.0
      %v794 = vmax.f32 %v772, 0.0
      %v795 = vmax.f32 %v774, 0.0
      %v796 = vmul.f32 %v776, %v594
      %v797 = vmul.f32 %v777, %v598
      %v798 = vmul.f32 %v778, %v594
      %v799 = vmul.f32 %v779, %v598
      %v800 = vmul.f32 %v780, %v594
      %v801 = vmul.f32 %v781, %v598
      %v802 = vmul.f32 %v782, %v594
      %v803 = vmul.f32 %v783, %v598
      %v804 = vmul.f32 %v784, %v594
      %v805 = vmul.f32 %v785, %v598
      %v806 = vmul.f32 %v786, %v594
      %v807 = vmul.f32 %v787, %v598
      %v808 = vmul.f32 %v788, %v594
      %v809 = vmul.f32 %v789, %v598
      %v810 = vmul.f32 %v790, %v594
      %v811 = vmul.f32 %v791, %v598
      %v812 = vmul.f32 %v792, %v594
      %v813 = vmul.f32 %v793, %v598
      %v814 = vmul.f32 %v794, %v594
      %v815 = vmul.f32 %v795, %v598
      %v816 = vadd.f32 %v796, %v625
      %v817 = vadd.f32 %v797, %v629
      %v818 = vadd.f32 %v798, %v625
      %v819 = vadd.f32 %v799, %v629
      %v820 = vadd.f32 %v800, %v625
      %v821 = vadd.f32 %v801, %v629
      %v822 = vadd.f32 %v802, %v625
      %v823 = vadd.f32 %v803, %v629
      %v824 = vadd.f32 %v804, %v625
      %v825 = vadd.f32 %v805, %v629
      %v826 = vadd.f32 %v806, %v625
      %v827 = vadd.f32 %v807, %v629
      %v828 = vadd.f32 %v808, %v625
      %v829 = vadd.f32 %v809, %v629
      %v830 = vadd.f32 %v810, %v625
      %v831 = vadd.f32 %v811, %v629
      %v832 = vadd.f32 %v812, %v625
      %v833 = vadd.f32 %v813, %v629
      %v834 = vadd.f32 %v814, %v625
      %v835 = vadd.f32 %v815, %v629
      %v836 = vmax.f32 %v632, %v816
      %v837 = vmax.f32 %v633, %v817
      %v838 = vmax.f32 %v634, %v818
      %v839 = vmax.f32 %v635, %v819
      %v840 = vmax.f32 %v636, %v820
      %v841 = vmax.f32 %v637, %v821
      %v842 = vmax.f32 %v638, %v822
      %v843 = vmax.f32 %v639, %v823
      %v844 = vmax.f32 %v640, %v824
      %v845 = vmax.f32 %v641, %v825
      %v846 = vmax.f32 %v642, %v826
      %v847 = vmax.f32 %v643, %v827
      %v848 = vmax.f32 %v644, %v828
      %v849 = vmax.f32 %v645, %v829
      %v850 = vmax.f32 %v646, %v830
      %v851 = vmax.f32 %v647, %v831
      %v852 = vmax.f32 %v648, %v832
      %v853 = vmax.f32 %v649, %v833
      %v854 = vmax.f32 %v650, %v834
      %v855 = vmax.f32 %v651, %v835
      %v856 = vmax.f32 %v836, %v837
      %v857 = vmax.f32 %v838, %v839
      %v858 = vmax.f32 %v840, %v841
      %v859 = vmax.f32 %v842, %v843
      %v860 = vmax.f32 %v844, %v845
      %v861 = vmax.f32 %v846, %v847
      %v862 = vmax.f32 %v848, %v849
      %v863 = vmax.f32 %v850, %v851
      %v864 = vmax.f32 %v852, %v853
      %v865 = vmax.f32 %v854, %v855
      %866 = vst [vmem:[#allocation2] sm:$0xff] 0
      %v867 = vpack.c.bf16 %v857, %v856
      %v868 = vpack.c.bf16 %v859, %v858
      %v869 = vpack.c.bf16 %v861, %v860
      %v870 = vpack.c.bf16 %v863, %v862
      %v871 = vpack.c.bf16 %v865, %v864
      %872 = vst [vmem:[#allocation2 + $0x8] sm:$0xff] %v867
      %873 = vst [vmem:[#allocation2 + $0x10] sm:$0xff] %v868
      %874 = vst [vmem:[#allocation2 + $0x18] sm:$0xff] %v869
      %875 = vst [vmem:[#allocation2 + $0x20] sm:$0xff] %v870
      %876 = vst [vmem:[#allocation2 + $0x28] sm:$0xff] %v871
      %877 = vst [vmem:[#allocation2 + $0x30] sm:$0xff] 0
      %s878 = scalar_lea.vmem %s327, 80
      %v879 = vld [vmem:[%s878] sm:$0xf]
      %v880 = vld [vmem:[%s878 + $0x4] sm:$0xf]
      %v881 = vld [vmem:[%s878 + $0x8] sm:$0xf]
      %v882 = vld [vmem:[%s878 + $0xc] sm:$0xf]
      %v883 = vld [vmem:[%s878 + $0x10] sm:$0xf]
      %v884 = vld [vmem:[%s878 + $0x14] sm:$0xf]
      %v885 = vld [vmem:[%s878 + $0x18] sm:$0xf]
      %v886 = vld [vmem:[%s878 + $0x1c] sm:$0xf]
      %v887 = vld [vmem:[%s878 + $0x20] sm:$0xf]
      %v888 = vld [vmem:[%s878 + $0x24] sm:$0xf]
      %v889 = vld [vmem:[%s1] sm:$0xff]
      %v890 = vld [vmem:[%s1 + $0x8] sm:$0xff]
      %v891 = vld [vmem:[%s1 + $0x10] sm:$0xff]
      %v892 = vld [vmem:[%s1 + $0x18] sm:$0xff]
      %v893 = vld [vmem:[%s1 + $0x20] sm:$0xff]
      %v894 = vld [vmem:[%s1 + $0x28] sm:$0xff]
      %v895 = vld [vmem:[%s1 + $0x30] sm:$0xff]
      %v896 = vld [vmem:[%s1 + $0x38] sm:$0xff]
      %v897 = vld [vmem:[%s1 + $0x40] sm:$0xff]
      %v898 = vld [vmem:[%s1 + $0x48] sm:$0xff]
      %v899 = vld [vmem:[%s1 + $0x50] sm:$0xff]
      %v900 = vld [vmem:[%s1 + $0x58] sm:$0xff]
      %v901 = vld [vmem:[%s1 + $0x60] sm:$0xff]
      %v902 = vld [vmem:[%s1 + $0x68] sm:$0xff]
      %v903 = vld [vmem:[%s1 + $0x70] sm:$0xff]
      %v904 = vld [vmem:[%s1 + $0x78] sm:$0xff]
      %v915 = vunpack.c.l.b16 %v879
      %v916 = vunpack.c.l.b16 %v880
      %v917 = vunpack.c.l.b16 %v881
      %v918 = vunpack.c.l.b16 %v882
      %v919 = vunpack.c.l.b16 %v883
      %v920 = vunpack.c.l.b16 %v884
      %v921 = vunpack.c.l.b16 %v885
      %v922 = vunpack.c.l.b16 %v886
      %v923 = vunpack.c.l.b16 %v887
      %v924 = vunpack.c.l.b16 %v888
      %v925 = vpack.c.b16 %v916, %v915
      %v926 = vpack.c.b16 %v918, %v917
      %v927 = vpack.c.b16 %v920, %v919
      %v928 = vpack.c.b16 %v922, %v921
      %v929 = vpack.c.b16 %v924, %v923
      %v951 = vunpack.c.l.b16 %v889
      %v952 = vunpack.c.h.b16 %v889
      %v953 = vunpack.c.l.b16 %v890
      %v954 = vunpack.c.h.b16 %v890
      %v955 = vunpack.c.l.b16 %v891
      %v956 = vunpack.c.h.b16 %v891
      %v957 = vunpack.c.l.b16 %v892
      %v958 = vunpack.c.h.b16 %v892
      %v959 = vunpack.c.l.b16 %v893
      %v960 = vunpack.c.h.b16 %v893
      %v961 = vunpack.c.l.b16 %v894
      %v962 = vunpack.c.h.b16 %v894
      %v963 = vunpack.c.l.b16 %v895
      %v964 = vunpack.c.h.b16 %v895
      %v965 = vunpack.c.l.b16 %v896
      %v966 = vunpack.c.h.b16 %v896
      %v967 = vunpack.c.l.b16 %v897
      %v968 = vunpack.c.h.b16 %v897
      %v969 = vunpack.c.l.b16 %v898
      %v970 = vunpack.c.h.b16 %v898
      %v971 = vunpack.c.l.b16 %v899
      %v972 = vunpack.c.h.b16 %v899
      %v973 = vunpack.c.l.b16 %v900
      %v974 = vunpack.c.h.b16 %v900
      %v975 = vunpack.c.l.b16 %v901
      %v976 = vunpack.c.h.b16 %v901
      %v977 = vunpack.c.l.b16 %v902
      %v978 = vunpack.c.h.b16 %v902
      %v979 = vunpack.c.l.b16 %v903
      %v980 = vunpack.c.h.b16 %v903
      %v981 = vunpack.c.l.b16 %v904
      %v982 = vunpack.c.h.b16 %v904
      %v983 = vpack.c.b16 %v953, %v951
      %v984 = vpack.c.b16 %v954, %v952
      %v985 = vpack.c.b16 %v957, %v955
      %v986 = vpack.c.b16 %v958, %v956
      %v987 = vpack.c.b16 %v961, %v959
      %v988 = vpack.c.b16 %v962, %v960
      %v989 = vpack.c.b16 %v965, %v963
      %v990 = vpack.c.b16 %v966, %v964
      %v991 = vpack.c.b16 %v969, %v967
      %v992 = vpack.c.b16 %v970, %v968
      %v993 = vpack.c.b16 %v973, %v971
      %v994 = vpack.c.b16 %v974, %v972
      %v995 = vpack.c.b16 %v977, %v975
      %v996 = vpack.c.b16 %v978, %v976
      %v997 = vpack.c.b16 %v981, %v979
      %v998 = vpack.c.b16 %v982, %v980
      %1015 = vmatprep.subr.bf16.mxu0 %v984
      %1016 = vmatpush1.bf16.msra.mxu0 %v983
      %1017 = vmatprep.subr.bf16.mxu0 %v986
      %1018 = vmatpush1.bf16.msra.mxu0 %v985
      %1019 = vmatprep.subr.bf16.mxu0 %v988
      %1020 = vmatpush1.bf16.msra.mxu0 %v987
      %1021 = vmatprep.subr.bf16.mxu0 %v990
      %1022 = vmatpush1.bf16.msra.mxu0 %v989
      %1023 = vmatprep.subr.bf16.mxu0 %v992
      %1024 = vmatpush1.bf16.msra.mxu0 %v991
      %1025 = vmatprep.subr.bf16.mxu0 %v994
      %1026 = vmatpush1.bf16.msra.mxu0 %v993
      %1027 = vmatprep.subr.bf16.mxu0 %v996
      %1028 = vmatpush1.bf16.msra.mxu0 %v995
      %1029 = vmatprep.subr.bf16.mxu0 %v998
      %1030 = vmatpush1.bf16.msra.mxu0 %v997
      %1031 = vmatprep.subr.bf16.mxu0 0
      %1032 = vmatpush1.bf16.msra.mxu0 0
      %1033 = vmatprep.subr.bf16.mxu0 0
      %1034 = vmatpush1.bf16.msra.mxu0 0
      %1035 = vmatprep.subr.bf16.mxu0 0
      %1036 = vmatpush1.bf16.msra.mxu0 0
      %1037 = vmatprep.subr.bf16.mxu0 0
      %1038 = vmatpush1.bf16.msra.mxu0 0
      %1039 = vmatprep.subr.bf16.mxu0 0
      %1040 = vmatpush1.bf16.msra.mxu0 0
      %1041 = vmatprep.subr.bf16.mxu0 0
      %1042 = vmatpush1.bf16.msra.mxu0 0
      %1043 = vmatprep.subr.bf16.mxu0 0
      %1044 = vmatpush1.bf16.msra.mxu0 0
      %1045 = vmatprep.subr.bf16.mxu0 0
      %1046 = vmatpush1.bf16.msra.mxu0 0
      %1047 = vmatprep.mubr.bf16.mxu0 0
      %1048 = vmatmul.mubr.bf16.gmra.mrb[0].mxu0 %v925
      %v1049 = vpop.f32.mrb[0].mxu0
      %v1050 = vadd.f32 %v370, %v1049
      %v1051 = vpop.f32.mrb[0].mxu0
      %v1052 = vadd.f32 %v374, %v1051
      %v1053 = vpop.f32.mrb[0].mxu0
      %v1054 = vadd.f32 %v370, %v1053
      %v1055 = vpop.f32.mrb[0].mxu0
      %v1056 = vadd.f32 %v374, %v1055
      %1057 = vmatprep.mubr.bf16.mxu0 0
      %1058 = vmatmul.mubr.bf16.gmra.mrb[0].mxu0 %v926
      %v1059 = vpop.f32.mrb[0].mxu0
      %v1060 = vadd.f32 %v370, %v1059
      %v1061 = vpop.f32.mrb[0].mxu0
      %v1062 = vadd.f32 %v374, %v1061
      %v1063 = vpop.f32.mrb[0].mxu0
      %v1064 = vadd.f32 %v370, %v1063
      %v1065 = vpop.f32.mrb[0].mxu0
      %v1066 = vadd.f32 %v374, %v1065
      %1067 = vmatprep.mubr.bf16.mxu0 0
      %1068 = vmatmul.mubr.bf16.gmra.mrb[0].mxu0 %v927
      %v1069 = vpop.f32.mrb[0].mxu0
      %v1070 = vadd.f32 %v370, %v1069
      %v1071 = vpop.f32.mrb[0].mxu0
      %v1072 = vadd.f32 %v374, %v1071
      %v1073 = vpop.f32.mrb[0].mxu0
      %v1074 = vadd.f32 %v370, %v1073
      %v1075 = vpop.f32.mrb[0].mxu0
      %v1076 = vadd.f32 %v374, %v1075
      %1077 = vmatprep.mubr.bf16.mxu0 0
      %1078 = vmatmul.mubr.bf16.gmra.mrb[0].mxu0 %v928
      %v1079 = vpop.f32.mrb[0].mxu0
      %v1080 = vadd.f32 %v370, %v1079
      %v1081 = vpop.f32.mrb[0].mxu0
      %v1082 = vadd.f32 %v374, %v1081
      %v1083 = vpop.f32.mrb[0].mxu0
      %v1084 = vadd.f32 %v370, %v1083
      %v1085 = vpop.f32.mrb[0].mxu0
      %v1086 = vadd.f32 %v374, %v1085
      %1087 = vmatprep.mubr.bf16.mxu0 0
      %1088 = vmatmul.mubr.bf16.gmra.mrb[0].mxu0 %v929
      %v1089 = vpop.f32.mrb[0].mxu0
      %v1090 = vadd.f32 %v370, %v1089
      %v1091 = vpop.f32.mrb[0].mxu0
      %v1092 = vadd.f32 %v374, %v1091
      %v1093 = vpop.f32.mrb[0].mxu0
      %v1094 = vadd.f32 %v370, %v1093
      %v1095 = vpop.f32.mrb[0].mxu0
      %v1096 = vadd.f32 %v374, %v1095
      %1097 = vdwg.mxu0
      %v1098 = vmax.f32 %v1050, 0.0
      %v1099 = vmax.f32 %v1052, 0.0
      %v1100 = vmax.f32 %v1054, 0.0
      %v1101 = vmax.f32 %v1056, 0.0
      %v1102 = vmax.f32 %v1060, 0.0
      %v1103 = vmax.f32 %v1062, 0.0
      %v1104 = vmax.f32 %v1064, 0.0
      %v1105 = vmax.f32 %v1066, 0.0
      %v1106 = vmax.f32 %v1070, 0.0
      %v1107 = vmax.f32 %v1072, 0.0
      %v1108 = vmax.f32 %v1074, 0.0
      %v1109 = vmax.f32 %v1076, 0.0
      %v1110 = vmax.f32 %v1080, 0.0
      %v1111 = vmax.f32 %v1082, 0.0
      %v1112 = vmax.f32 %v1084, 0.0
      %v1113 = vmax.f32 %v1086, 0.0
      %v1114 = vmax.f32 %v1090, 0.0
      %v1115 = vmax.f32 %v1092, 0.0
      %v1116 = vmax.f32 %v1094, 0.0
      %v1117 = vmax.f32 %v1096, 0.0
      %v1118 = vmul.f32 %v1098, %v594
      %v1119 = vmul.f32 %v1099, %v598
      %v1120 = vmul.f32 %v1100, %v594
      %v1121 = vmul.f32 %v1101, %v598
      %v1122 = vmul.f32 %v1102, %v594
      %v1123 = vmul.f32 %v1103, %v598
      %v1124 = vmul.f32 %v1104, %v594
      %v1125 = vmul.f32 %v1105, %v598
      %v1126 = vmul.f32 %v1106, %v594
      %v1127 = vmul.f32 %v1107, %v598
      %v1128 = vmul.f32 %v1108, %v594
      %v1129 = vmul.f32 %v1109, %v598
      %v1130 = vmul.f32 %v1110, %v594
      %v1131 = vmul.f32 %v1111, %v598
      %v1132 = vmul.f32 %v1112, %v594
      %v1133 = vmul.f32 %v1113, %v598
      %v1134 = vmul.f32 %v1114, %v594
      %v1135 = vmul.f32 %v1115, %v598
      %v1136 = vmul.f32 %v1116, %v594
      %v1137 = vmul.f32 %v1117, %v598
      %v1138 = vadd.f32 %v1118, %v625
      %v1139 = vadd.f32 %v1119, %v629
      %v1140 = vadd.f32 %v1120, %v625
      %v1141 = vadd.f32 %v1121, %v629
      %v1142 = vadd.f32 %v1122, %v625
      %v1143 = vadd.f32 %v1123, %v629
      %v1144 = vadd.f32 %v1124, %v625
      %v1145 = vadd.f32 %v1125, %v629
      %v1146 = vadd.f32 %v1126, %v625
      %v1147 = vadd.f32 %v1127, %v629
      %v1148 = vadd.f32 %v1128, %v625
      %v1149 = vadd.f32 %v1129, %v629
      %v1150 = vadd.f32 %v1130, %v625
      %v1151 = vadd.f32 %v1131, %v629
      %v1152 = vadd.f32 %v1132, %v625
      %v1153 = vadd.f32 %v1133, %v629
      %v1154 = vadd.f32 %v1134, %v625
      %v1155 = vadd.f32 %v1135, %v629
      %v1156 = vadd.f32 %v1136, %v625
      %v1157 = vadd.f32 %v1137, %v629
      %s1158 = scalar_lea.vmem %s327, 120
      %v1159 = vld [vmem:[%s1158] sm:$0xf]
      %v1160 = vld [vmem:[%s1158 + $0x4] sm:$0xf]
      %v1161 = vld [vmem:[%s1158 + $0x8] sm:$0xf]
      %v1162 = vld [vmem:[%s1158 + $0xc] sm:$0xf]
      %v1163 = vld [vmem:[%s1158 + $0x10] sm:$0xf]
      %v1164 = vld [vmem:[%s1158 + $0x14] sm:$0xf]
      %v1165 = vld [vmem:[%s1158 + $0x18] sm:$0xf]
      %v1166 = vld [vmem:[%s1158 + $0x1c] sm:$0xf]
      %v1167 = vld [vmem:[%s1158 + $0x20] sm:$0xf]
      %v1168 = vld [vmem:[%s1158 + $0x24] sm:$0xf]
      %v1179 = vunpack.c.l.b16 %v1159
      %v1180 = vunpack.c.l.b16 %v1160
      %v1181 = vunpack.c.l.b16 %v1161
      %v1182 = vunpack.c.l.b16 %v1162
      %v1183 = vunpack.c.l.b16 %v1163
      %v1184 = vunpack.c.l.b16 %v1164
      %v1185 = vunpack.c.l.b16 %v1165
      %v1186 = vunpack.c.l.b16 %v1166
      %v1187 = vunpack.c.l.b16 %v1167
      %v1188 = vunpack.c.l.b16 %v1168
      %v1189 = vpack.c.b16 %v1180, %v1179
      %v1190 = vpack.c.b16 %v1182, %v1181
      %v1191 = vpack.c.b16 %v1184, %v1183
      %v1192 = vpack.c.b16 %v1186, %v1185
      %v1193 = vpack.c.b16 %v1188, %v1187
      %1199 = vmatprep.subr.bf16.mxu0 %v984
      %1200 = vmatpush1.bf16.msra.mxu0 %v983
      %1201 = vmatprep.subr.bf16.mxu0 %v986
      %1202 = vmatpush1.bf16.msra.mxu0 %v985
      %1203 = vmatprep.subr.bf16.mxu0 %v988
      %1204 = vmatpush1.bf16.msra.mxu0 %v987
      %1205 = vmatprep.subr.bf16.mxu0 %v990
      %1206 = vmatpush1.bf16.msra.mxu0 %v989
      %1207 = vmatprep.subr.bf16.mxu0 %v992
      %1208 = vmatpush1.bf16.msra.mxu0 %v991
      %1209 = vmatprep.subr.bf16.mxu0 %v994
      %1210 = vmatpush1.bf16.msra.mxu0 %v993
      %1211 = vmatprep.subr.bf16.mxu0 %v996
      %1212 = vmatpush1.bf16.msra.mxu0 %v995
      %1213 = vmatprep.subr.bf16.mxu0 %v998
      %1214 = vmatpush1.bf16.msra.mxu0 %v997
      %1215 = vmatprep.subr.bf16.mxu0 0
      %1216 = vmatpush1.bf16.msra.mxu0 0
      %1217 = vmatprep.subr.bf16.mxu0 0
      %1218 = vmatpush1.bf16.msra.mxu0 0
      %1219 = vmatprep.subr.bf16.mxu0 0
      %1220 = vmatpush1.bf16.msra.mxu0 0
      %1221 = vmatprep.subr.bf16.mxu0 0
      %1222 = vmatpush1.bf16.msra.mxu0 0
      %1223 = vmatprep.subr.bf16.mxu0 0
      %1224 = vmatpush1.bf16.msra.mxu0 0
      %1225 = vmatprep.subr.bf16.mxu0 0
      %1226 = vmatpush1.bf16.msra.mxu0 0
      %1227 = vmatprep.subr.bf16.mxu0 0
      %1228 = vmatpush1.bf16.msra.mxu0 0
      %1229 = vmatprep.subr.bf16.mxu0 0
      %1230 = vmatpush1.bf16.msra.mxu0 0
      %1231 = vmatprep.mubr.bf16.mxu0 0
      %1232 = vmatmul.mubr.bf16.gmra.mrb[0].mxu0 %v1189
      %v1233 = vpop.f32.mrb[0].mxu0
      %v1234 = vadd.f32 %v370, %v1233
      %v1235 = vpop.f32.mrb[0].mxu0
      %v1236 = vadd.f32 %v374, %v1235
      %v1237 = vpop.f32.mrb[0].mxu0
      %v1238 = vadd.f32 %v370, %v1237
      %v1239 = vpop.f32.mrb[0].mxu0
      %v1240 = vadd.f32 %v374, %v1239
      %1241 = vmatprep.mubr.bf16.mxu0 0
      %1242 = vmatmul.mubr.bf16.gmra.mrb[0].mxu0 %v1190
      %v1243 = vpop.f32.mrb[0].mxu0
      %v1244 = vadd.f32 %v370, %v1243
      %v1245 = vpop.f32.mrb[0].mxu0
      %v1246 = vadd.f32 %v374, %v1245
      %v1247 = vpop.f32.mrb[0].mxu0
      %v1248 = vadd.f32 %v370, %v1247
      %v1249 = vpop.f32.mrb[0].mxu0
      %v1250 = vadd.f32 %v374, %v1249
      %1251 = vmatprep.mubr.bf16.mxu0 0
      %1252 = vmatmul.mubr.bf16.gmra.mrb[0].mxu0 %v1191
      %v1253 = vpop.f32.mrb[0].mxu0
      %v1254 = vadd.f32 %v370, %v1253
      %v1255 = vpop.f32.mrb[0].mxu0
      %v1256 = vadd.f32 %v374, %v1255
      %v1257 = vpop.f32.mrb[0].mxu0
      %v1258 = vadd.f32 %v370, %v1257
      %v1259 = vpop.f32.mrb[0].mxu0
      %v1260 = vadd.f32 %v374, %v1259
      %1261 = vmatprep.mubr.bf16.mxu0 0
      %1262 = vmatmul.mubr.bf16.gmra.mrb[0].mxu0 %v1192
      %v1263 = vpop.f32.mrb[0].mxu0
      %v1264 = vadd.f32 %v370, %v1263
      %v1265 = vpop.f32.mrb[0].mxu0
      %v1266 = vadd.f32 %v374, %v1265
      %v1267 = vpop.f32.mrb[0].mxu0
      %v1268 = vadd.f32 %v370, %v1267
      %v1269 = vpop.f32.mrb[0].mxu0
      %v1270 = vadd.f32 %v374, %v1269
      %1271 = vmatprep.mubr.bf16.mxu0 0
      %1272 = vmatmul.mubr.bf16.gmra.mrb[0].mxu0 %v1193
      %v1273 = vpop.f32.mrb[0].mxu0
      %v1274 = vadd.f32 %v370, %v1273
      %v1275 = vpop.f32.mrb[0].mxu0
      %v1276 = vadd.f32 %v374, %v1275
      %v1277 = vpop.f32.mrb[0].mxu0
      %v1278 = vadd.f32 %v370, %v1277
      %v1279 = vpop.f32.mrb[0].mxu0
      %v1280 = vadd.f32 %v374, %v1279
      %1281 = vdwg.mxu0
      %v1282 = vmax.f32 %v1234, 0.0
      %v1283 = vmax.f32 %v1236, 0.0
      %v1284 = vmax.f32 %v1238, 0.0
      %v1285 = vmax.f32 %v1240, 0.0
      %v1286 = vmax.f32 %v1244, 0.0
      %v1287 = vmax.f32 %v1246, 0.0
      %v1288 = vmax.f32 %v1248, 0.0
      %v1289 = vmax.f32 %v1250, 0.0
      %v1290 = vmax.f32 %v1254, 0.0
      %v1291 = vmax.f32 %v1256, 0.0
      %v1292 = vmax.f32 %v1258, 0.0
      %v1293 = vmax.f32 %v1260, 0.0
      %v1294 = vmax.f32 %v1264, 0.0
      %v1295 = vmax.f32 %v1266, 0.0
      %v1296 = vmax.f32 %v1268, 0.0
      %v1297 = vmax.f32 %v1270, 0.0
      %v1298 = vmax.f32 %v1274, 0.0
      %v1299 = vmax.f32 %v1276, 0.0
      %v1300 = vmax.f32 %v1278, 0.0
      %v1301 = vmax.f32 %v1280, 0.0
      %v1302 = vmul.f32 %v1282, %v594
      %v1303 = vmul.f32 %v1283, %v598
      %v1304 = vmul.f32 %v1284, %v594
      %v1305 = vmul.f32 %v1285, %v598
      %v1306 = vmul.f32 %v1286, %v594
      %v1307 = vmul.f32 %v1287, %v598
      %v1308 = vmul.f32 %v1288, %v594
      %v1309 = vmul.f32 %v1289, %v598
      %v1310 = vmul.f32 %v1290, %v594
      %v1311 = vmul.f32 %v1291, %v598
      %v1312 = vmul.f32 %v1292, %v594
      %v1313 = vmul.f32 %v1293, %v598
      %v1314 = vmul.f32 %v1294, %v594
      %v1315 = vmul.f32 %v1295, %v598
      %v1316 = vmul.f32 %v1296, %v594
      %v1317 = vmul.f32 %v1297, %v598
      %v1318 = vmul.f32 %v1298, %v594
      %v1319 = vmul.f32 %v1299, %v598
      %v1320 = vmul.f32 %v1300, %v594
      %v1321 = vmul.f32 %v1301, %v598
      %v1322 = vadd.f32 %v1302, %v625
      %v1323 = vadd.f32 %v1303, %v629
      %v1324 = vadd.f32 %v1304, %v625
      %v1325 = vadd.f32 %v1305, %v629
      %v1326 = vadd.f32 %v1306, %v625
      %v1327 = vadd.f32 %v1307, %v629
      %v1328 = vadd.f32 %v1308, %v625
      %v1329 = vadd.f32 %v1309, %v629
      %v1330 = vadd.f32 %v1310, %v625
      %v1331 = vadd.f32 %v1311, %v629
      %v1332 = vadd.f32 %v1312, %v625
      %v1333 = vadd.f32 %v1313, %v629
      %v1334 = vadd.f32 %v1314, %v625
      %v1335 = vadd.f32 %v1315, %v629
      %v1336 = vadd.f32 %v1316, %v625
      %v1337 = vadd.f32 %v1317, %v629
      %v1338 = vadd.f32 %v1318, %v625
      %v1339 = vadd.f32 %v1319, %v629
      %v1340 = vadd.f32 %v1320, %v625
      %v1341 = vadd.f32 %v1321, %v629
      %v1342 = vmax.f32 %v1138, %v1322
      %v1343 = vmax.f32 %v1139, %v1323
      %v1344 = vmax.f32 %v1140, %v1324
      %v1345 = vmax.f32 %v1141, %v1325
      %v1346 = vmax.f32 %v1142, %v1326
      %v1347 = vmax.f32 %v1143, %v1327
      %v1348 = vmax.f32 %v1144, %v1328
      %v1349 = vmax.f32 %v1145, %v1329
      %v1350 = vmax.f32 %v1146, %v1330
      %v1351 = vmax.f32 %v1147, %v1331
      %v1352 = vmax.f32 %v1148, %v1332
      %v1353 = vmax.f32 %v1149, %v1333
      %v1354 = vmax.f32 %v1150, %v1334
      %v1355 = vmax.f32 %v1151, %v1335
      %v1356 = vmax.f32 %v1152, %v1336
      %v1357 = vmax.f32 %v1153, %v1337
      %v1358 = vmax.f32 %v1154, %v1338
      %v1359 = vmax.f32 %v1155, %v1339
      %v1360 = vmax.f32 %v1156, %v1340
      %v1361 = vmax.f32 %v1157, %v1341
      %v1362 = vmax.f32 %v1342, %v1343
      %v1363 = vmax.f32 %v1344, %v1345
      %v1364 = vmax.f32 %v1346, %v1347
      %v1365 = vmax.f32 %v1348, %v1349
      %v1366 = vmax.f32 %v1350, %v1351
      %v1367 = vmax.f32 %v1352, %v1353
      %v1368 = vmax.f32 %v1354, %v1355
      %v1369 = vmax.f32 %v1356, %v1357
      %v1370 = vmax.f32 %v1358, %v1359
      %v1371 = vmax.f32 %v1360, %v1361
      %s1372 = scalar_lea.vmem [#allocation2], 56
      %1373 = vst [vmem:[%s1372] sm:$0xff] 0
      %v1374 = vpack.c.bf16 %v1363, %v1362
      %v1375 = vpack.c.bf16 %v1365, %v1364
      %v1376 = vpack.c.bf16 %v1367, %v1366
      %v1377 = vpack.c.bf16 %v1369, %v1368
      %v1378 = vpack.c.bf16 %v1371, %v1370
      %1379 = vst [vmem:[%s1372 + $0x8] sm:$0xff] %v1374
      %1380 = vst [vmem:[%s1372 + $0x10] sm:$0xff] %v1375
      %1381 = vst [vmem:[%s1372 + $0x18] sm:$0xff] %v1376
      %1382 = vst [vmem:[%s1372 + $0x20] sm:$0xff] %v1377
      %1383 = vst [vmem:[%s1372 + $0x28] sm:$0xff] %v1378
      %1384 = vst [vmem:[%s1372 + $0x30] sm:$0xff] 0
      %v1385 = vld [vmem:[%s7] ss:$4 sm:$0x3]
      %s1386 = scalar_lea.vmem %s7, 1
      %v1387 = vld [vmem:[%s1386] ss:$4 sm:$0x3]
      %s1388 = scalar_lea.vmem %s7, 2
      %v1389 = vld [vmem:[%s1388] ss:$4 sm:$0x3]
      %v1390 = vld [vmem:[#allocation2] sm:$0xff]
      %v1391 = vld [vmem:[#allocation2 + $0x8] sm:$0xff]
      %v1392 = vld [vmem:[#allocation2 + $0x10] sm:$0xff]
      %v1393 = vld [vmem:[#allocation2 + $0x18] sm:$0xff]
      %v1394 = vld [vmem:[#allocation2 + $0x20] sm:$0xff]
      %v1395 = vld [vmem:[%s2] sm:$0xff]
      %v1396 = vld [vmem:[%s2 + $0x8] sm:$0xff]
      %v1397 = vld [vmem:[%s2 + $0x10] sm:$0xff]
      %v1398 = vld [vmem:[%s2 + $0x18] sm:$0xff]
      %v1399 = vld [vmem:[%s2 + $0x20] sm:$0xff]
      %v1400 = vld [vmem:[%s2 + $0x28] sm:$0xff]
      %v1401 = vld [vmem:[%s2 + $0x30] sm:$0xff]
      %v1402 = vld [vmem:[%s2 + $0x38] sm:$0xff]
      %v1403 = vld [vmem:[%s2 + $0x40] sm:$0xff]
      %v1404 = vld [vmem:[%s2 + $0x48] sm:$0xff]
      %v1405 = vld [vmem:[%s2 + $0x50] sm:$0xff]
      %v1406 = vld [vmem:[%s2 + $0x58] sm:$0xff]
      %v1407 = vld [vmem:[%s2 + $0x60] sm:$0xff]
      %v1408 = vld [vmem:[%s2 + $0x68] sm:$0xff]
      %v1409 = vld [vmem:[%s2 + $0x70] sm:$0xff]
      %v1410 = vld [vmem:[%s2 + $0x78] sm:$0xff]
      %v1411 = vld [vmem:[%s1372] sm:$0xff]
      %v1412 = vld [vmem:[%s1372 + $0x8] sm:$0xff]
      %v1413 = vld [vmem:[%s1372 + $0x10] sm:$0xff]
      %v1414 = vld [vmem:[%s1372 + $0x18] sm:$0xff]
      %v1415 = vld [vmem:[%s1372 + $0x20] sm:$0xff]
      %s1416 = scalar_lea.vmem %s2, 128
      %v1417 = vld [vmem:[%s1416] sm:$0xff]
      %v1418 = vld [vmem:[%s1416 + $0x8] sm:$0xff]
      %v1419 = vld [vmem:[%s1416 + $0x10] sm:$0xff]
      %v1420 = vld [vmem:[%s1416 + $0x18] sm:$0xff]
      %v1421 = vld [vmem:[%s1416 + $0x20] sm:$0xff]
      %v1422 = vld [vmem:[%s1416 + $0x28] sm:$0xff]
      %v1423 = vld [vmem:[%s1416 + $0x30] sm:$0xff]
      %v1424 = vld [vmem:[%s1416 + $0x38] sm:$0xff]
      %v1425 = vld [vmem:[%s1416 + $0x40] sm:$0xff]
      %v1426 = vld [vmem:[%s1416 + $0x48] sm:$0xff]
      %v1427 = vld [vmem:[%s1416 + $0x50] sm:$0xff]
      %v1428 = vld [vmem:[%s1416 + $0x58] sm:$0xff]
      %v1429 = vld [vmem:[%s1416 + $0x60] sm:$0xff]
      %v1430 = vld [vmem:[%s1416 + $0x68] sm:$0xff]
      %v1431 = vld [vmem:[%s1416 + $0x70] sm:$0xff]
      %v1432 = vld [vmem:[%s1416 + $0x78] sm:$0xff]
      %v1449 = vunpack.c.l.b16 %v1417
      %v1450 = vunpack.c.h.b16 %v1417
      %v1451 = vunpack.c.l.b16 %v1418
      %v1452 = vunpack.c.h.b16 %v1418
      %v1453 = vunpack.c.l.b16 %v1419
      %v1454 = vunpack.c.h.b16 %v1419
      %v1455 = vunpack.c.l.b16 %v1420
      %v1456 = vunpack.c.h.b16 %v1420
      %v1457 = vunpack.c.l.b16 %v1421
      %v1458 = vunpack.c.h.b16 %v1421
      %v1459 = vunpack.c.l.b16 %v1422
      %v1460 = vunpack.c.h.b16 %v1422
      %v1461 = vunpack.c.l.b16 %v1423
      %v1462 = vunpack.c.h.b16 %v1423
      %v1463 = vunpack.c.l.b16 %v1424
      %v1464 = vunpack.c.h.b16 %v1424
      %v1465 = vunpack.c.l.b16 %v1425
      %v1466 = vunpack.c.h.b16 %v1425
      %v1467 = vunpack.c.l.b16 %v1426
      %v1468 = vunpack.c.h.b16 %v1426
      %v1469 = vunpack.c.l.b16 %v1427
      %v1470 = vunpack.c.h.b16 %v1427
      %v1471 = vunpack.c.l.b16 %v1428
      %v1472 = vunpack.c.h.b16 %v1428
      %v1473 = vunpack.c.l.b16 %v1429
      %v1474 = vunpack.c.h.b16 %v1429
      %v1475 = vunpack.c.l.b16 %v1430
      %v1476 = vunpack.c.h.b16 %v1430
      %v1477 = vunpack.c.l.b16 %v1431
      %v1478 = vunpack.c.h.b16 %v1431
      %v1479 = vunpack.c.l.b16 %v1432
      %v1480 = vunpack.c.h.b16 %v1432
      %v1481 = vpack.c.b16 %v1451, %v1449
      %v1482 = vpack.c.b16 %v1452, %v1450
      %v1483 = vpack.c.b16 %v1455, %v1453
      %v1484 = vpack.c.b16 %v1456, %v1454
      %v1485 = vpack.c.b16 %v1459, %v1457
      %v1486 = vpack.c.b16 %v1460, %v1458
      %v1487 = vpack.c.b16 %v1463, %v1461
      %v1488 = vpack.c.b16 %v1464, %v1462
      %v1489 = vpack.c.b16 %v1467, %v1465
      %v1490 = vpack.c.b16 %v1468, %v1466
      %v1491 = vpack.c.b16 %v1471, %v1469
      %v1492 = vpack.c.b16 %v1472, %v1470
      %v1493 = vpack.c.b16 %v1475, %v1473
      %v1494 = vpack.c.b16 %v1476, %v1474
      %v1495 = vpack.c.b16 %v1479, %v1477
      %v1496 = vpack.c.b16 %v1480, %v1478
      %1513 = vmatprep.subr.bf16.mxu0 %v1482
      %1514 = vmatpush1.bf16.msra.mxu0 %v1481
      %1515 = vmatprep.subr.bf16.mxu0 %v1484
      %1516 = vmatpush1.bf16.msra.mxu0 %v1483
      %1517 = vmatprep.subr.bf16.mxu0 %v1486
      %1518 = vmatpush1.bf16.msra.mxu0 %v1485
      %1519 = vmatprep.subr.bf16.mxu0 %v1488
      %1520 = vmatpush1.bf16.msra.mxu0 %v1487
      %1521 = vmatprep.subr.bf16.mxu0 %v1490
      %1522 = vmatpush1.bf16.msra.mxu0 %v1489
      %1523 = vmatprep.subr.bf16.mxu0 %v1492
      %1524 = vmatpush1.bf16.msra.mxu0 %v1491
      %1525 = vmatprep.subr.bf16.mxu0 %v1494
      %1526 = vmatpush1.bf16.msra.mxu0 %v1493
      %1527 = vmatprep.subr.bf16.mxu0 %v1496
      %1528 = vmatpush1.bf16.msra.mxu0 %v1495
      %1529 = vmatprep.subr.bf16.mxu0 0
      %1530 = vmatpush1.bf16.msra.mxu0 0
      %1531 = vmatprep.subr.bf16.mxu0 0
      %1532 = vmatpush1.bf16.msra.mxu0 0
      %1533 = vmatprep.subr.bf16.mxu0 0
      %1534 = vmatpush1.bf16.msra.mxu0 0
      %1535 = vmatprep.subr.bf16.mxu0 0
      %1536 = vmatpush1.bf16.msra.mxu0 0
      %1537 = vmatprep.subr.bf16.mxu0 0
      %1538 = vmatpush1.bf16.msra.mxu0 0
      %1539 = vmatprep.subr.bf16.mxu0 0
      %1540 = vmatpush1.bf16.msra.mxu0 0
      %1541 = vmatprep.subr.bf16.mxu0 0
      %1542 = vmatpush1.bf16.msra.mxu0 0
      %1543 = vmatprep.subr.bf16.mxu0 0
      %1544 = vmatpush1.bf16.msra.mxu0 0
      %1545 = vmatprep.mubr.bf16.mxu0 0
      %1546 = vmatmul.mubr.bf16.gmra.mrb[0].mxu0 %v1411
      %v1547 = vpop.f32.mrb[0].mxu0
      %v1548 = vadd.f32 0.0, %v1547
      %v1549 = vpop.f32.mrb[0].mxu0
      %v1550 = vadd.f32 0.0, %v1549
      %v1551 = vpop.f32.mrb[0].mxu0
      %v1552 = vadd.f32 0.0, %v1551
      %v1553 = vpop.f32.mrb[0].mxu0
      %v1554 = vadd.f32 0.0, %v1553
      %1555 = vmatprep.mubr.bf16.mxu0 0
      %1556 = vmatmul.mubr.bf16.gmra.mrb[0].mxu0 %v1412
      %v1557 = vpop.f32.mrb[0].mxu0
      %v1558 = vadd.f32 0.0, %v1557
      %v1559 = vpop.f32.mrb[0].mxu0
      %v1560 = vadd.f32 0.0, %v1559
      %v1561 = vpop.f32.mrb[0].mxu0
      %v1562 = vadd.f32 0.0, %v1561
      %v1563 = vpop.f32.mrb[0].mxu0
      %v1564 = vadd.f32 0.0, %v1563
      %1565 = vmatprep.mubr.bf16.mxu0 0
      %1566 = vmatmul.mubr.bf16.gmra.mrb[0].mxu0 %v1413
      %v1567 = vpop.f32.mrb[0].mxu0
      %v1568 = vadd.f32 0.0, %v1567
      %v1569 = vpop.f32.mrb[0].mxu0
      %v1570 = vadd.f32 0.0, %v1569
      %v1571 = vpop.f32.mrb[0].mxu0
      %v1572 = vadd.f32 0.0, %v1571
      %v1573 = vpop.f32.mrb[0].mxu0
      %v1574 = vadd.f32 0.0, %v1573
      %1575 = vmatprep.mubr.bf16.mxu0 0
      %1576 = vmatmul.mubr.bf16.gmra.mrb[0].mxu0 %v1414
      %v1577 = vpop.f32.mrb[0].mxu0
      %v1578 = vadd.f32 0.0, %v1577
      %v1579 = vpop.f32.mrb[0].mxu0
      %v1580 = vadd.f32 0.0, %v1579
      %v1581 = vpop.f32.mrb[0].mxu0
      %v1582 = vadd.f32 0.0, %v1581
      %v1583 = vpop.f32.mrb[0].mxu0
      %v1584 = vadd.f32 0.0, %v1583
      %1585 = vmatprep.mubr.bf16.mxu0 0
      %1586 = vmatmul.mubr.bf16.gmra.mrb[0].mxu0 %v1415
      %v1587 = vpop.f32.mrb[0].mxu0
      %v1588 = vadd.f32 0.0, %v1587
      %v1589 = vpop.f32.mrb[0].mxu0
      %v1590 = vadd.f32 0.0, %v1589
      %v1591 = vpop.f32.mrb[0].mxu0
      %v1592 = vadd.f32 0.0, %v1591
      %v1593 = vpop.f32.mrb[0].mxu0
      %v1594 = vadd.f32 0.0, %v1593
      %1595 = vdwg.mxu0
      %v1612 = vunpack.c.l.b16 %v1395
      %v1613 = vunpack.c.h.b16 %v1395
      %v1614 = vunpack.c.l.b16 %v1396
      %v1615 = vunpack.c.h.b16 %v1396
      %v1616 = vunpack.c.l.b16 %v1397
      %v1617 = vunpack.c.h.b16 %v1397
      %v1618 = vunpack.c.l.b16 %v1398
      %v1619 = vunpack.c.h.b16 %v1398
      %v1620 = vunpack.c.l.b16 %v1399
      %v1621 = vunpack.c.h.b16 %v1399
      %v1622 = vunpack.c.l.b16 %v1400
      %v1623 = vunpack.c.h.b16 %v1400
      %v1624 = vunpack.c.l.b16 %v1401
      %v1625 = vunpack.c.h.b16 %v1401
      %v1626 = vunpack.c.l.b16 %v1402
      %v1627 = vunpack.c.h.b16 %v1402
      %v1628 = vunpack.c.l.b16 %v1403
      %v1629 = vunpack.c.h.b16 %v1403
      %v1630 = vunpack.c.l.b16 %v1404
      %v1631 = vunpack.c.h.b16 %v1404
      %v1632 = vunpack.c.l.b16 %v1405
      %v1633 = vunpack.c.h.b16 %v1405
      %v1634 = vunpack.c.l.b16 %v1406
      %v1635 = vunpack.c.h.b16 %v1406
      %v1636 = vunpack.c.l.b16 %v1407
      %v1637 = vunpack.c.h.b16 %v1407
      %v1638 = vunpack.c.l.b16 %v1408
      %v1639 = vunpack.c.h.b16 %v1408
      %v1640 = vunpack.c.l.b16 %v1409
      %v1641 = vunpack.c.h.b16 %v1409
      %v1642 = vunpack.c.l.b16 %v1410
      %v1643 = vunpack.c.h.b16 %v1410
      %v1644 = vpack.c.b16 %v1614, %v1612
      %v1645 = vpack.c.b16 %v1615, %v1613
      %v1646 = vpack.c.b16 %v1618, %v1616
      %v1647 = vpack.c.b16 %v1619, %v1617
      %v1648 = vpack.c.b16 %v1622, %v1620
      %v1649 = vpack.c.b16 %v1623, %v1621
      %v1650 = vpack.c.b16 %v1626, %v1624
      %v1651 = vpack.c.b16 %v1627, %v1625
      %v1652 = vpack.c.b16 %v1630, %v1628
      %v1653 = vpack.c.b16 %v1631, %v1629
      %v1654 = vpack.c.b16 %v1634, %v1632
      %v1655 = vpack.c.b16 %v1635, %v1633
      %v1656 = vpack.c.b16 %v1638, %v1636
      %v1657 = vpack.c.b16 %v1639, %v1637
      %v1658 = vpack.c.b16 %v1642, %v1640
      %v1659 = vpack.c.b16 %v1643, %v1641
      %1676 = vmatprep.subr.bf16.mxu0 %v1645
      %1677 = vmatpush1.bf16.msra.mxu0 %v1644
      %1678 = vmatprep.subr.bf16.mxu0 %v1647
      %1679 = vmatpush1.bf16.msra.mxu0 %v1646
      %1680 = vmatprep.subr.bf16.mxu0 %v1649
      %1681 = vmatpush1.bf16.msra.mxu0 %v1648
      %1682 = vmatprep.subr.bf16.mxu0 %v1651
      %1683 = vmatpush1.bf16.msra.mxu0 %v1650
      %1684 = vmatprep.subr.bf16.mxu0 %v1653
      %1685 = vmatpush1.bf16.msra.mxu0 %v1652
      %1686 = vmatprep.subr.bf16.mxu0 %v1655
      %1687 = vmatpush1.bf16.msra.mxu0 %v1654
      %1688 = vmatprep.subr.bf16.mxu0 %v1657
      %1689 = vmatpush1.bf16.msra.mxu0 %v1656
      %1690 = vmatprep.subr.bf16.mxu0 %v1659
      %1691 = vmatpush1.bf16.msra.mxu0 %v1658
      %1692 = vmatprep.subr.bf16.mxu0 0
      %1693 = vmatpush1.bf16.msra.mxu0 0
      %1694 = vmatprep.subr.bf16.mxu0 0
      %1695 = vmatpush1.bf16.msra.mxu0 0
      %1696 = vmatprep.subr.bf16.mxu0 0
      %1697 = vmatpush1.bf16.msra.mxu0 0
      %1698 = vmatprep.subr.bf16.mxu0 0
      %1699 = vmatpush1.bf16.msra.mxu0 0
      %1700 = vmatprep.subr.bf16.mxu0 0
      %1701 = vmatpush1.bf16.msra.mxu0 0
      %1702 = vmatprep.subr.bf16.mxu0 0
      %1703 = vmatpush1.bf16.msra.mxu0 0
      %1704 = vmatprep.subr.bf16.mxu0 0
      %1705 = vmatpush1.bf16.msra.mxu0 0
      %1706 = vmatprep.subr.bf16.mxu0 0
      %1707 = vmatpush1.bf16.msra.mxu0 0
      %1708 = vmatprep.mubr.bf16.mxu0 0
      %1709 = vmatmul.mubr.bf16.gmra.mrb[0].mxu0 %v1390
      %v1710 = vpop.f32.mrb[0].mxu0
      %v1711 = vadd.f32 %v1548, %v1710
      %v1712 = vpop.f32.mrb[0].mxu0
      %v1713 = vadd.f32 %v1550, %v1712
      %v1714 = vpop.f32.mrb[0].mxu0
      %v1715 = vadd.f32 %v1552, %v1714
      %v1716 = vpop.f32.mrb[0].mxu0
      %v1717 = vadd.f32 %v1554, %v1716
      %1718 = vmatprep.mubr.bf16.mxu0 0
      %1719 = vmatmul.mubr.bf16.gmra.mrb[0].mxu0 %v1391
      %v1720 = vpop.f32.mrb[0].mxu0
      %v1721 = vadd.f32 %v1558, %v1720
      %v1722 = vpop.f32.mrb[0].mxu0
      %v1723 = vadd.f32 %v1560, %v1722
      %v1724 = vpop.f32.mrb[0].mxu0
      %v1725 = vadd.f32 %v1562, %v1724
      %v1726 = vpop.f32.mrb[0].mxu0
      %v1727 = vadd.f32 %v1564, %v1726
      %1728 = vmatprep.mubr.bf16.mxu0 0
      %1729 = vmatmul.mubr.bf16.gmra.mrb[0].mxu0 %v1392
      %v1730 = vpop.f32.mrb[0].mxu0
      %v1731 = vadd.f32 %v1568, %v1730
      %v1732 = vpop.f32.mrb[0].mxu0
      %v1733 = vadd.f32 %v1570, %v1732
      %v1734 = vpop.f32.mrb[0].mxu0
      %v1735 = vadd.f32 %v1572, %v1734
      %v1736 = vpop.f32.mrb[0].mxu0
      %v1737 = vadd.f32 %v1574, %v1736
      %1738 = vmatprep.mubr.bf16.mxu0 0
      %1739 = vmatmul.mubr.bf16.gmra.mrb[0].mxu0 %v1393
      %v1740 = vpop.f32.mrb[0].mxu0
      %v1741 = vadd.f32 %v1578, %v1740
      %v1742 = vpop.f32.mrb[0].mxu0
      %v1743 = vadd.f32 %v1580, %v1742
      %v1744 = vpop.f32.mrb[0].mxu0
      %v1745 = vadd.f32 %v1582, %v1744
      %v1746 = vpop.f32.mrb[0].mxu0
      %v1747 = vadd.f32 %v1584, %v1746
      %1748 = vmatprep.mubr.bf16.mxu0 0
      %1749 = vmatmul.mubr.bf16.gmra.mrb[0].mxu0 %v1394
      %v1750 = vpop.f32.mrb[0].mxu0
      %v1751 = vadd.f32 %v1588, %v1750
      %v1752 = vpop.f32.mrb[0].mxu0
      %v1753 = vadd.f32 %v1590, %v1752
      %v1754 = vpop.f32.mrb[0].mxu0
      %v1755 = vadd.f32 %v1592, %v1754
      %v1756 = vpop.f32.mrb[0].mxu0
      %v1757 = vadd.f32 %v1594, %v1756
      %1758 = vdwg.mxu0
      %v1759 = vld [vmem:[#allocation2 + $0x8] sm:$0xff]
      %v1760 = vld [vmem:[#allocation2 + $0x10] sm:$0xff]
      %v1761 = vld [vmem:[#allocation2 + $0x18] sm:$0xff]
      %v1762 = vld [vmem:[#allocation2 + $0x20] sm:$0xff]
      %v1763 = vld [vmem:[#allocation2 + $0x28] sm:$0xff]
      %s1764 = scalar_lea.vmem %s2, 256
      %v1765 = vld [vmem:[%s1764] sm:$0xff]
      %v1766 = vld [vmem:[%s1764 + $0x8] sm:$0xff]
      %v1767 = vld [vmem:[%s1764 + $0x10] sm:$0xff]
      %v1768 = vld [vmem:[%s1764 + $0x18] sm:$0xff]
      %v1769 = vld [vmem:[%s1764 + $0x20] sm:$0xff]
      %v1770 = vld [vmem:[%s1764 + $0x28] sm:$0xff]
      %v1771 = vld [vmem:[%s1764 + $0x30] sm:$0xff]
      %v1772 = vld [vmem:[%s1764 + $0x38] sm:$0xff]
      %v1773 = vld [vmem:[%s1764 + $0x40] sm:$0xff]
      %v1774 = vld [vmem:[%s1764 + $0x48] sm:$0xff]
      %v1775 = vld [vmem:[%s1764 + $0x50] sm:$0xff]
      %v1776 = vld [vmem:[%s1764 + $0x58] sm:$0xff]
      %v1777 = vld [vmem:[%s1764 + $0x60] sm:$0xff]
      %v1778 = vld [vmem:[%s1764 + $0x68] sm:$0xff]
      %v1779 = vld [vmem:[%s1764 + $0x70] sm:$0xff]
      %v1780 = vld [vmem:[%s1764 + $0x78] sm:$0xff]
      %v1797 = vunpack.c.l.b16 %v1765
      %v1798 = vunpack.c.h.b16 %v1765
      %v1799 = vunpack.c.l.b16 %v1766
      %v1800 = vunpack.c.h.b16 %v1766
      %v1801 = vunpack.c.l.b16 %v1767
      %v1802 = vunpack.c.h.b16 %v1767
      %v1803 = vunpack.c.l.b16 %v1768
      %v1804 = vunpack.c.h.b16 %v1768
      %v1805 = vunpack.c.l.b16 %v1769
      %v1806 = vunpack.c.h.b16 %v1769
      %v1807 = vunpack.c.l.b16 %v1770
      %v1808 = vunpack.c.h.b16 %v1770
      %v1809 = vunpack.c.l.b16 %v1771
      %v1810 = vunpack.c.h.b16 %v1771
      %v1811 = vunpack.c.l.b16 %v1772
      %v1812 = vunpack.c.h.b16 %v1772
      %v1813 = vunpack.c.l.b16 %v1773
      %v1814 = vunpack.c.h.b16 %v1773
      %v1815 = vunpack.c.l.b16 %v1774
      %v1816 = vunpack.c.h.b16 %v1774
      %v1817 = vunpack.c.l.b16 %v1775
      %v1818 = vunpack.c.h.b16 %v1775
      %v1819 = vunpack.c.l.b16 %v1776
      %v1820 = vunpack.c.h.b16 %v1776
      %v1821 = vunpack.c.l.b16 %v1777
      %v1822 = vunpack.c.h.b16 %v1777
      %v1823 = vunpack.c.l.b16 %v1778
      %v1824 = vunpack.c.h.b16 %v1778
      %v1825 = vunpack.c.l.b16 %v1779
      %v1826 = vunpack.c.h.b16 %v1779
      %v1827 = vunpack.c.l.b16 %v1780
      %v1828 = vunpack.c.h.b16 %v1780
      %v1829 = vpack.c.b16 %v1799, %v1797
      %v1830 = vpack.c.b16 %v1800, %v1798
      %v1831 = vpack.c.b16 %v1803, %v1801
      %v1832 = vpack.c.b16 %v1804, %v1802
      %v1833 = vpack.c.b16 %v1807, %v1805
      %v1834 = vpack.c.b16 %v1808, %v1806
      %v1835 = vpack.c.b16 %v1811, %v1809
      %v1836 = vpack.c.b16 %v1812, %v1810
      %v1837 = vpack.c.b16 %v1815, %v1813
      %v1838 = vpack.c.b16 %v1816, %v1814
      %v1839 = vpack.c.b16 %v1819, %v1817
      %v1840 = vpack.c.b16 %v1820, %v1818
      %v1841 = vpack.c.b16 %v1823, %v1821
      %v1842 = vpack.c.b16 %v1824, %v1822
      %v1843 = vpack.c.b16 %v1827, %v1825
      %v1844 = vpack.c.b16 %v1828, %v1826
      %1861 = vmatprep.subr.bf16.mxu0 %v1830
      %1862 = vmatpush1.bf16.msra.mxu0 %v1829
      %1863 = vmatprep.subr.bf16.mxu0 %v1832
      %1864 = vmatpush1.bf16.msra.mxu0 %v1831
      %1865 = vmatprep.subr.bf16.mxu0 %v1834
      %1866 = vmatpush1.bf16.msra.mxu0 %v1833
      %1867 = vmatprep.subr.bf16.mxu0 %v1836
      %1868 = vmatpush1.bf16.msra.mxu0 %v1835
      %1869 = vmatprep.subr.bf16.mxu0 %v1838
      %1870 = vmatpush1.bf16.msra.mxu0 %v1837
      %1871 = vmatprep.subr.bf16.mxu0 %v1840
      %1872 = vmatpush1.bf16.msra.mxu0 %v1839
      %1873 = vmatprep.subr.bf16.mxu0 %v1842
      %1874 = vmatpush1.bf16.msra.mxu0 %v1841
      %1875 = vmatprep.subr.bf16.mxu0 %v1844
      %1876 = vmatpush1.bf16.msra.mxu0 %v1843
      %1877 = vmatprep.subr.bf16.mxu0 0
      %1878 = vmatpush1.bf16.msra.mxu0 0
      %1879 = vmatprep.subr.bf16.mxu0 0
      %1880 = vmatpush1.bf16.msra.mxu0 0
      %1881 = vmatprep.subr.bf16.mxu0 0
      %1882 = vmatpush1.bf16.msra.mxu0 0
      %1883 = vmatprep.subr.bf16.mxu0 0
      %1884 = vmatpush1.bf16.msra.mxu0 0
      %1885 = vmatprep.subr.bf16.mxu0 0
      %1886 = vmatpush1.bf16.msra.mxu0 0
      %1887 = vmatprep.subr.bf16.mxu0 0
      %1888 = vmatpush1.bf16.msra.mxu0 0
      %1889 = vmatprep.subr.bf16.mxu0 0
      %1890 = vmatpush1.bf16.msra.mxu0 0
      %1891 = vmatprep.subr.bf16.mxu0 0
      %1892 = vmatpush1.bf16.msra.mxu0 0
      %1893 = vmatprep.mubr.bf16.mxu0 0
      %1894 = vmatmul.mubr.bf16.gmra.mrb[0].mxu0 %v1759
      %v1895 = vpop.f32.mrb[0].mxu0
      %v1896 = vadd.f32 0.0, %v1895
      %v1897 = vpop.f32.mrb[0].mxu0
      %v1898 = vadd.f32 0.0, %v1897
      %v1899 = vpop.f32.mrb[0].mxu0
      %v1900 = vadd.f32 0.0, %v1899
      %v1901 = vpop.f32.mrb[0].mxu0
      %v1902 = vadd.f32 0.0, %v1901
      %1903 = vmatprep.mubr.bf16.mxu0 0
      %1904 = vmatmul.mubr.bf16.gmra.mrb[0].mxu0 %v1760
      %v1905 = vpop.f32.mrb[0].mxu0
      %v1906 = vadd.f32 0.0, %v1905
      %v1907 = vpop.f32.mrb[0].mxu0
      %v1908 = vadd.f32 0.0, %v1907
      %v1909 = vpop.f32.mrb[0].mxu0
      %v1910 = vadd.f32 0.0, %v1909
      %v1911 = vpop.f32.mrb[0].mxu0
      %v1912 = vadd.f32 0.0, %v1911
      %1913 = vmatprep.mubr.bf16.mxu0 0
      %1914 = vmatmul.mubr.bf16.gmra.mrb[0].mxu0 %v1761
      %v1915 = vpop.f32.mrb[0].mxu0
      %v1916 = vadd.f32 0.0, %v1915
      %v1917 = vpop.f32.mrb[0].mxu0
      %v1918 = vadd.f32 0.0, %v1917
      %v1919 = vpop.f32.mrb[0].mxu0
      %v1920 = vadd.f32 0.0, %v1919
      %v1921 = vpop.f32.mrb[0].mxu0
      %v1922 = vadd.f32 0.0, %v1921
      %1923 = vmatprep.mubr.bf16.mxu0 0
      %1924 = vmatmul.mubr.bf16.gmra.mrb[0].mxu0 %v1762
      %v1925 = vpop.f32.mrb[0].mxu0
      %v1926 = vadd.f32 0.0, %v1925
      %v1927 = vpop.f32.mrb[0].mxu0
      %v1928 = vadd.f32 0.0, %v1927
      %v1929 = vpop.f32.mrb[0].mxu0
      %v1930 = vadd.f32 0.0, %v1929
      %v1931 = vpop.f32.mrb[0].mxu0
      %v1932 = vadd.f32 0.0, %v1931
      %1933 = vmatprep.mubr.bf16.mxu0 0
      %1934 = vmatmul.mubr.bf16.gmra.mrb[0].mxu0 %v1763
      %v1935 = vpop.f32.mrb[0].mxu0
      %v1936 = vadd.f32 0.0, %v1935
      %v1937 = vpop.f32.mrb[0].mxu0
      %v1938 = vadd.f32 0.0, %v1937
      %v1939 = vpop.f32.mrb[0].mxu0
      %v1940 = vadd.f32 0.0, %v1939
      %v1941 = vpop.f32.mrb[0].mxu0
      %v1942 = vadd.f32 0.0, %v1941
      %1943 = vdwg.mxu0
      %v1944 = vadd.f32 %v1711, %v1896
      %v1945 = vadd.f32 %v1713, %v1898
      %v1946 = vadd.f32 %v1715, %v1900
      %v1947 = vadd.f32 %v1717, %v1902
      %v1948 = vadd.f32 %v1721, %v1906
      %v1949 = vadd.f32 %v1723, %v1908
      %v1950 = vadd.f32 %v1725, %v1910
      %v1951 = vadd.f32 %v1727, %v1912
      %v1952 = vadd.f32 %v1731, %v1916
      %v1953 = vadd.f32 %v1733, %v1918
      %v1954 = vadd.f32 %v1735, %v1920
      %v1955 = vadd.f32 %v1737, %v1922
      %v1956 = vadd.f32 %v1741, %v1926
      %v1957 = vadd.f32 %v1743, %v1928
      %v1958 = vadd.f32 %v1745, %v1930
      %v1959 = vadd.f32 %v1747, %v1932
      %v1960 = vadd.f32 %v1751, %v1936
      %v1961 = vadd.f32 %v1753, %v1938
      %v1962 = vadd.f32 %v1755, %v1940
      %v1963 = vadd.f32 %v1757, %v1942
      %v1964 = vld [vmem:[%s1372 + $0x8] sm:$0xff]
      %v1965 = vld [vmem:[%s1372 + $0x10] sm:$0xff]
      %v1966 = vld [vmem:[%s1372 + $0x18] sm:$0xff]
      %v1967 = vld [vmem:[%s1372 + $0x20] sm:$0xff]
      %v1968 = vld [vmem:[%s1372 + $0x28] sm:$0xff]
      %s1969 = scalar_lea.vmem %s2, 384
      %v1970 = vld [vmem:[%s1969] sm:$0xff]
      %v1971 = vld [vmem:[%s1969 + $0x8] sm:$0xff]
      %v1972 = vld [vmem:[%s1969 + $0x10] sm:$0xff]
      %v1973 = vld [vmem:[%s1969 + $0x18] sm:$0xff]
      %v1974 = vld [vmem:[%s1969 + $0x20] sm:$0xff]
      %v1975 = vld [vmem:[%s1969 + $0x28] sm:$0xff]
      %v1976 = vld [vmem:[%s1969 + $0x30] sm:$0xff]
      %v1977 = vld [vmem:[%s1969 + $0x38] sm:$0xff]
      %v1978 = vld [vmem:[%s1969 + $0x40] sm:$0xff]
      %v1979 = vld [vmem:[%s1969 + $0x48] sm:$0xff]
      %v1980 = vld [vmem:[%s1969 + $0x50] sm:$0xff]
      %v1981 = vld [vmem:[%s1969 + $0x58] sm:$0xff]
      %v1982 = vld [vmem:[%s1969 + $0x60] sm:$0xff]
      %v1983 = vld [vmem:[%s1969 + $0x68] sm:$0xff]
      %v1984 = vld [vmem:[%s1969 + $0x70] sm:$0xff]
      %v1985 = vld [vmem:[%s1969 + $0x78] sm:$0xff]
      %v2002 = vunpack.c.l.b16 %v1970
      %v2003 = vunpack.c.h.b16 %v1970
      %v2004 = vunpack.c.l.b16 %v1971
      %v2005 = vunpack.c.h.b16 %v1971
      %v2006 = vunpack.c.l.b16 %v1972
      %v2007 = vunpack.c.h.b16 %v1972
      %v2008 = vunpack.c.l.b16 %v1973
      %v2009 = vunpack.c.h.b16 %v1973
      %v2010 = vunpack.c.l.b16 %v1974
      %v2011 = vunpack.c.h.b16 %v1974
      %v2012 = vunpack.c.l.b16 %v1975
      %v2013 = vunpack.c.h.b16 %v1975
      %v2014 = vunpack.c.l.b16 %v1976
      %v2015 = vunpack.c.h.b16 %v1976
      %v2016 = vunpack.c.l.b16 %v1977
      %v2017 = vunpack.c.h.b16 %v1977
      %v2018 = vunpack.c.l.b16 %v1978
      %v2019 = vunpack.c.h.b16 %v1978
      %v2020 = vunpack.c.l.b16 %v1979
      %v2021 = vunpack.c.h.b16 %v1979
      %v2022 = vunpack.c.l.b16 %v1980
      %v2023 = vunpack.c.h.b16 %v1980
      %v2024 = vunpack.c.l.b16 %v1981
      %v2025 = vunpack.c.h.b16 %v1981
      %v2026 = vunpack.c.l.b16 %v1982
      %v2027 = vunpack.c.h.b16 %v1982
      %v2028 = vunpack.c.l.b16 %v1983
      %v2029 = vunpack.c.h.b16 %v1983
      %v2030 = vunpack.c.l.b16 %v1984
      %v2031 = vunpack.c.h.b16 %v1984
      %v2032 = vunpack.c.l.b16 %v1985
      %v2033 = vunpack.c.h.b16 %v1985
      %v2034 = vpack.c.b16 %v2004, %v2002
      %v2035 = vpack.c.b16 %v2005, %v2003
      %v2036 = vpack.c.b16 %v2008, %v2006
      %v2037 = vpack.c.b16 %v2009, %v2007
      %v2038 = vpack.c.b16 %v2012, %v2010
      %v2039 = vpack.c.b16 %v2013, %v2011
      %v2040 = vpack.c.b16 %v2016, %v2014
      %v2041 = vpack.c.b16 %v2017, %v2015
      %v2042 = vpack.c.b16 %v2020, %v2018
      %v2043 = vpack.c.b16 %v2021, %v2019
      %v2044 = vpack.c.b16 %v2024, %v2022
      %v2045 = vpack.c.b16 %v2025, %v2023
      %v2046 = vpack.c.b16 %v2028, %v2026
      %v2047 = vpack.c.b16 %v2029, %v2027
      %v2048 = vpack.c.b16 %v2032, %v2030
      %v2049 = vpack.c.b16 %v2033, %v2031
      %2066 = vmatprep.subr.bf16.mxu0 %v2035
      %2067 = vmatpush1.bf16.msra.mxu0 %v2034
      %2068 = vmatprep.subr.bf16.mxu0 %v2037
      %2069 = vmatpush1.bf16.msra.mxu0 %v2036
      %2070 = vmatprep.subr.bf16.mxu0 %v2039
      %2071 = vmatpush1.bf16.msra.mxu0 %v2038
      %2072 = vmatprep.subr.bf16.mxu0 %v2041
      %2073 = vmatpush1.bf16.msra.mxu0 %v2040
      %2074 = vmatprep.subr.bf16.mxu0 %v2043
      %2075 = vmatpush1.bf16.msra.mxu0 %v2042
      %2076 = vmatprep.subr.bf16.mxu0 %v2045
      %2077 = vmatpush1.bf16.msra.mxu0 %v2044
      %2078 = vmatprep.subr.bf16.mxu0 %v2047
      %2079 = vmatpush1.bf16.msra.mxu0 %v2046
      %2080 = vmatprep.subr.bf16.mxu0 %v2049
      %2081 = vmatpush1.bf16.msra.mxu0 %v2048
      %2082 = vmatprep.subr.bf16.mxu0 0
      %2083 = vmatpush1.bf16.msra.mxu0 0
      %2084 = vmatprep.subr.bf16.mxu0 0
      %2085 = vmatpush1.bf16.msra.mxu0 0
      %2086 = vmatprep.subr.bf16.mxu0 0
      %2087 = vmatpush1.bf16.msra.mxu0 0
      %2088 = vmatprep.subr.bf16.mxu0 0
      %2089 = vmatpush1.bf16.msra.mxu0 0
      %2090 = vmatprep.subr.bf16.mxu0 0
      %2091 = vmatpush1.bf16.msra.mxu0 0
      %2092 = vmatprep.subr.bf16.mxu0 0
      %2093 = vmatpush1.bf16.msra.mxu0 0
      %2094 = vmatprep.subr.bf16.mxu0 0
      %2095 = vmatpush1.bf16.msra.mxu0 0
      %2096 = vmatprep.subr.bf16.mxu0 0
      %2097 = vmatpush1.bf16.msra.mxu0 0
      %2098 = vmatprep.mubr.bf16.mxu0 0
      %2099 = vmatmul.mubr.bf16.gmra.mrb[0].mxu0 %v1964
      %v2100 = vpop.f32.mrb[0].mxu0
      %v2101 = vadd.f32 0.0, %v2100
      %v2102 = vpop.f32.mrb[0].mxu0
      %v2103 = vadd.f32 0.0, %v2102
      %v2104 = vpop.f32.mrb[0].mxu0
      %v2105 = vadd.f32 0.0, %v2104
      %v2106 = vpop.f32.mrb[0].mxu0
      %v2107 = vadd.f32 0.0, %v2106
      %2108 = vmatprep.mubr.bf16.mxu0 0
      %2109 = vmatmul.mubr.bf16.gmra.mrb[0].mxu0 %v1965
      %v2110 = vpop.f32.mrb[0].mxu0
      %v2111 = vadd.f32 0.0, %v2110
      %v2112 = vpop.f32.mrb[0].mxu0
      %v2113 = vadd.f32 0.0, %v2112
      %v2114 = vpop.f32.mrb[0].mxu0
      %v2115 = vadd.f32 0.0, %v2114
      %v2116 = vpop.f32.mrb[0].mxu0
      %v2117 = vadd.f32 0.0, %v2116
      %2118 = vmatprep.mubr.bf16.mxu0 0
      %2119 = vmatmul.mubr.bf16.gmra.mrb[0].mxu0 %v1966
      %v2120 = vpop.f32.mrb[0].mxu0
      %v2121 = vadd.f32 0.0, %v2120
      %v2122 = vpop.f32.mrb[0].mxu0
      %v2123 = vadd.f32 0.0, %v2122
      %v2124 = vpop.f32.mrb[0].mxu0
      %v2125 = vadd.f32 0.0, %v2124
      %v2126 = vpop.f32.mrb[0].mxu0
      %v2127 = vadd.f32 0.0, %v2126
      %2128 = vmatprep.mubr.bf16.mxu0 0
      %2129 = vmatmul.mubr.bf16.gmra.mrb[0].mxu0 %v1967
      %v2130 = vpop.f32.mrb[0].mxu0
      %v2131 = vadd.f32 0.0, %v2130
      %v2132 = vpop.f32.mrb[0].mxu0
      %v2133 = vadd.f32 0.0, %v2132
      %v2134 = vpop.f32.mrb[0].mxu0
      %v2135 = vadd.f32 0.0, %v2134
      %v2136 = vpop.f32.mrb[0].mxu0
      %v2137 = vadd.f32 0.0, %v2136
      %2138 = vmatprep.mubr.bf16.mxu0 0
      %2139 = vmatmul.mubr.bf16.gmra.mrb[0].mxu0 %v1968
      %v2140 = vpop.f32.mrb[0].mxu0
      %v2141 = vadd.f32 0.0, %v2140
      %v2142 = vpop.f32.mrb[0].mxu0
      %v2143 = vadd.f32 0.0, %v2142
      %v2144 = vpop.f32.mrb[0].mxu0
      %v2145 = vadd.f32 0.0, %v2144
      %v2146 = vpop.f32.mrb[0].mxu0
      %v2147 = vadd.f32 0.0, %v2146
      %2148 = vdwg.mxu0
      %v2149 = vadd.f32 %v1944, %v2101
      %v2150 = vadd.f32 %v1945, %v2103
      %v2151 = vadd.f32 %v1946, %v2105
      %v2152 = vadd.f32 %v1947, %v2107
      %v2153 = vadd.f32 %v1948, %v2111
      %v2154 = vadd.f32 %v1949, %v2113
      %v2155 = vadd.f32 %v1950, %v2115
      %v2156 = vadd.f32 %v1951, %v2117
      %v2157 = vadd.f32 %v1952, %v2121
      %v2158 = vadd.f32 %v1953, %v2123
      %v2159 = vadd.f32 %v1954, %v2125
      %v2160 = vadd.f32 %v1955, %v2127
      %v2161 = vadd.f32 %v1956, %v2131
      %v2162 = vadd.f32 %v1957, %v2133
      %v2163 = vadd.f32 %v1958, %v2135
      %v2164 = vadd.f32 %v1959, %v2137
      %v2165 = vadd.f32 %v1960, %v2141
      %v2166 = vadd.f32 %v1961, %v2143
      %v2167 = vadd.f32 %v1962, %v2145
      %v2168 = vadd.f32 %v1963, %v2147
      %v2169 = vld [vmem:[#allocation2 + $0x10] sm:$0xff]
      %v2170 = vld [vmem:[#allocation2 + $0x18] sm:$0xff]
      %v2171 = vld [vmem:[#allocation2 + $0x20] sm:$0xff]
      %v2172 = vld [vmem:[#allocation2 + $0x28] sm:$0xff]
      %v2173 = vld [vmem:[#allocation2 + $0x30] sm:$0xff]
      %s2174 = scalar_lea.vmem %s2, 512
      %v2175 = vld [vmem:[%s2174] sm:$0xff]
      %v2176 = vld [vmem:[%s2174 + $0x8] sm:$0xff]
      %v2177 = vld [vmem:[%s2174 + $0x10] sm:$0xff]
      %v2178 = vld [vmem:[%s2174 + $0x18] sm:$0xff]
      %v2179 = vld [vmem:[%s2174 + $0x20] sm:$0xff]
      %v2180 = vld [vmem:[%s2174 + $0x28] sm:$0xff]
      %v2181 = vld [vmem:[%s2174 + $0x30] sm:$0xff]
      %v2182 = vld [vmem:[%s2174 + $0x38] sm:$0xff]
      %v2183 = vld [vmem:[%s2174 + $0x40] sm:$0xff]
      %v2184 = vld [vmem:[%s2174 + $0x48] sm:$0xff]
      %v2185 = vld [vmem:[%s2174 + $0x50] sm:$0xff]
      %v2186 = vld [vmem:[%s2174 + $0x58] sm:$0xff]
      %v2187 = vld [vmem:[%s2174 + $0x60] sm:$0xff]
      %v2188 = vld [vmem:[%s2174 + $0x68] sm:$0xff]
      %v2189 = vld [vmem:[%s2174 + $0x70] sm:$0xff]
      %v2190 = vld [vmem:[%s2174 + $0x78] sm:$0xff]
      %v2207 = vunpack.c.l.b16 %v2175
      %v2208 = vunpack.c.h.b16 %v2175
      %v2209 = vunpack.c.l.b16 %v2176
      %v2210 = vunpack.c.h.b16 %v2176
      %v2211 = vunpack.c.l.b16 %v2177
      %v2212 = vunpack.c.h.b16 %v2177
      %v2213 = vunpack.c.l.b16 %v2178
      %v2214 = vunpack.c.h.b16 %v2178
      %v2215 = vunpack.c.l.b16 %v2179
      %v2216 = vunpack.c.h.b16 %v2179
      %v2217 = vunpack.c.l.b16 %v2180
      %v2218 = vunpack.c.h.b16 %v2180
      %v2219 = vunpack.c.l.b16 %v2181
      %v2220 = vunpack.c.h.b16 %v2181
      %v2221 = vunpack.c.l.b16 %v2182
      %v2222 = vunpack.c.h.b16 %v2182
      %v2223 = vunpack.c.l.b16 %v2183
      %v2224 = vunpack.c.h.b16 %v2183
      %v2225 = vunpack.c.l.b16 %v2184
      %v2226 = vunpack.c.h.b16 %v2184
      %v2227 = vunpack.c.l.b16 %v2185
      %v2228 = vunpack.c.h.b16 %v2185
      %v2229 = vunpack.c.l.b16 %v2186
      %v2230 = vunpack.c.h.b16 %v2186
      %v2231 = vunpack.c.l.b16 %v2187
      %v2232 = vunpack.c.h.b16 %v2187
      %v2233 = vunpack.c.l.b16 %v2188
      %v2234 = vunpack.c.h.b16 %v2188
      %v2235 = vunpack.c.l.b16 %v2189
      %v2236 = vunpack.c.h.b16 %v2189
      %v2237 = vunpack.c.l.b16 %v2190
      %v2238 = vunpack.c.h.b16 %v2190
      %v2239 = vpack.c.b16 %v2209, %v2207
      %v2240 = vpack.c.b16 %v2210, %v2208
      %v2241 = vpack.c.b16 %v2213, %v2211
      %v2242 = vpack.c.b16 %v2214, %v2212
      %v2243 = vpack.c.b16 %v2217, %v2215
      %v2244 = vpack.c.b16 %v2218, %v2216
      %v2245 = vpack.c.b16 %v2221, %v2219
      %v2246 = vpack.c.b16 %v2222, %v2220
      %v2247 = vpack.c.b16 %v2225, %v2223
      %v2248 = vpack.c.b16 %v2226, %v2224
      %v2249 = vpack.c.b16 %v2229, %v2227
      %v2250 = vpack.c.b16 %v2230, %v2228
      %v2251 = vpack.c.b16 %v2233, %v2231
      %v2252 = vpack.c.b16 %v2234, %v2232
      %v2253 = vpack.c.b16 %v2237, %v2235
      %v2254 = vpack.c.b16 %v2238, %v2236
      %2271 = vmatprep.subr.bf16.mxu0 %v2240
      %2272 = vmatpush1.bf16.msra.mxu0 %v2239
      %2273 = vmatprep.subr.bf16.mxu0 %v2242
      %2274 = vmatpush1.bf16.msra.mxu0 %v2241
      %2275 = vmatprep.subr.bf16.mxu0 %v2244
      %2276 = vmatpush1.bf16.msra.mxu0 %v2243
      %2277 = vmatprep.subr.bf16.mxu0 %v2246
      %2278 = vmatpush1.bf16.msra.mxu0 %v2245
      %2279 = vmatprep.subr.bf16.mxu0 %v2248
      %2280 = vmatpush1.bf16.msra.mxu0 %v2247
      %2281 = vmatprep.subr.bf16.mxu0 %v2250
      %2282 = vmatpush1.bf16.msra.mxu0 %v2249
      %2283 = vmatprep.subr.bf16.mxu0 %v2252
      %2284 = vmatpush1.bf16.msra.mxu0 %v2251
      %2285 = vmatprep.subr.bf16.mxu0 %v2254
      %2286 = vmatpush1.bf16.msra.mxu0 %v2253
      %2287 = vmatprep.subr.bf16.mxu0 0
      %2288 = vmatpush1.bf16.msra.mxu0 0
      %2289 = vmatprep.subr.bf16.mxu0 0
      %2290 = vmatpush1.bf16.msra.mxu0 0
      %2291 = vmatprep.subr.bf16.mxu0 0
      %2292 = vmatpush1.bf16.msra.mxu0 0
      %2293 = vmatprep.subr.bf16.mxu0 0
      %2294 = vmatpush1.bf16.msra.mxu0 0
      %2295 = vmatprep.subr.bf16.mxu0 0
      %2296 = vmatpush1.bf16.msra.mxu0 0
      %2297 = vmatprep.subr.bf16.mxu0 0
      %2298 = vmatpush1.bf16.msra.mxu0 0
      %2299 = vmatprep.subr.bf16.mxu0 0
      %2300 = vmatpush1.bf16.msra.mxu0 0
      %2301 = vmatprep.subr.bf16.mxu0 0
      %2302 = vmatpush1.bf16.msra.mxu0 0
      %2303 = vmatprep.mubr.bf16.mxu0 0
      %2304 = vmatmul.mubr.bf16.gmra.mrb[0].mxu0 %v2169
      %v2305 = vpop.f32.mrb[0].mxu0
      %v2306 = vadd.f32 0.0, %v2305
      %v2307 = vpop.f32.mrb[0].mxu0
      %v2308 = vadd.f32 0.0, %v2307
      %v2309 = vpop.f32.mrb[0].mxu0
      %v2310 = vadd.f32 0.0, %v2309
      %v2311 = vpop.f32.mrb[0].mxu0
      %v2312 = vadd.f32 0.0, %v2311
      %2313 = vmatprep.mubr.bf16.mxu0 0
      %2314 = vmatmul.mubr.bf16.gmra.mrb[0].mxu0 %v2170
      %v2315 = vpop.f32.mrb[0].mxu0
      %v2316 = vadd.f32 0.0, %v2315
      %v2317 = vpop.f32.mrb[0].mxu0
      %v2318 = vadd.f32 0.0, %v2317
      %v2319 = vpop.f32.mrb[0].mxu0
      %v2320 = vadd.f32 0.0, %v2319
      %v2321 = vpop.f32.mrb[0].mxu0
      %v2322 = vadd.f32 0.0, %v2321
      %2323 = vmatprep.mubr.bf16.mxu0 0
      %2324 = vmatmul.mubr.bf16.gmra.mrb[0].mxu0 %v2171
      %v2325 = vpop.f32.mrb[0].mxu0
      %v2326 = vadd.f32 0.0, %v2325
      %v2327 = vpop.f32.mrb[0].mxu0
      %v2328 = vadd.f32 0.0, %v2327
      %v2329 = vpop.f32.mrb[0].mxu0
      %v2330 = vadd.f32 0.0, %v2329
      %v2331 = vpop.f32.mrb[0].mxu0
      %v2332 = vadd.f32 0.0, %v2331
      %2333 = vmatprep.mubr.bf16.mxu0 0
      %2334 = vmatmul.mubr.bf16.gmra.mrb[0].mxu0 %v2172
      %v2335 = vpop.f32.mrb[0].mxu0
      %v2336 = vadd.f32 0.0, %v2335
      %v2337 = vpop.f32.mrb[0].mxu0
      %v2338 = vadd.f32 0.0, %v2337
      %v2339 = vpop.f32.mrb[0].mxu0
      %v2340 = vadd.f32 0.0, %v2339
      %v2341 = vpop.f32.mrb[0].mxu0
      %v2342 = vadd.f32 0.0, %v2341
      %2343 = vmatprep.mubr.bf16.mxu0 0
      %2344 = vmatmul.mubr.bf16.gmra.mrb[0].mxu0 %v2173
      %v2345 = vpop.f32.mrb[0].mxu0
      %v2346 = vadd.f32 0.0, %v2345
      %v2347 = vpop.f32.mrb[0].mxu0
      %v2348 = vadd.f32 0.0, %v2347
      %v2349 = vpop.f32.mrb[0].mxu0
      %v2350 = vadd.f32 0.0, %v2349
      %v2351 = vpop.f32.mrb[0].mxu0
      %v2352 = vadd.f32 0.0, %v2351
      %2353 = vdwg.mxu0
      %v2354 = vadd.f32 %v2149, %v2306
      %v2355 = vadd.f32 %v2150, %v2308
      %v2356 = vadd.f32 %v2151, %v2310
      %v2357 = vadd.f32 %v2152, %v2312
      %v2358 = vadd.f32 %v2153, %v2316
      %v2359 = vadd.f32 %v2154, %v2318
      %v2360 = vadd.f32 %v2155, %v2320
      %v2361 = vadd.f32 %v2156, %v2322
      %v2362 = vadd.f32 %v2157, %v2326
      %v2363 = vadd.f32 %v2158, %v2328
      %v2364 = vadd.f32 %v2159, %v2330
      %v2365 = vadd.f32 %v2160, %v2332
      %v2366 = vadd.f32 %v2161, %v2336
      %v2367 = vadd.f32 %v2162, %v2338
      %v2368 = vadd.f32 %v2163, %v2340
      %v2369 = vadd.f32 %v2164, %v2342
      %v2370 = vadd.f32 %v2165, %v2346
      %v2371 = vadd.f32 %v2166, %v2348
      %v2372 = vadd.f32 %v2167, %v2350
      %v2373 = vadd.f32 %v2168, %v2352
      %v2375 = vlaneseq
      %v2376 = vshrl.u32 %v2375, 7
      %v2377 = vsub.s32 0, %v2376
      %v2378 = vrot.slane %v1385, %v2377
      %v2379 = vlaneseq
      %v2380 = vshrl.u32 %v2379, 7
      %v2381 = vsub.s32 1, %v2380
      %v2382 = vrot.slane %v1385, %v2381
      %v2385 = vadd.f32 %v2354, %v2378
      %v2386 = vadd.f32 %v2355, %v2382
      %v2387 = vadd.f32 %v2356, %v2378
      %v2388 = vadd.f32 %v2357, %v2382
      %v2389 = vadd.f32 %v2358, %v2378
      %v2390 = vadd.f32 %v2359, %v2382
      %v2391 = vadd.f32 %v2360, %v2378
      %v2392 = vadd.f32 %v2361, %v2382
      %v2393 = vadd.f32 %v2362, %v2378
      %v2394 = vadd.f32 %v2363, %v2382
      %v2395 = vadd.f32 %v2364, %v2378
      %v2396 = vadd.f32 %v2365, %v2382
      %v2397 = vadd.f32 %v2366, %v2378
      %v2398 = vadd.f32 %v2367, %v2382
      %v2399 = vadd.f32 %v2368, %v2378
      %v2400 = vadd.f32 %v2369, %v2382
      %v2401 = vadd.f32 %v2370, %v2378
      %v2402 = vadd.f32 %v2371, %v2382
      %v2403 = vadd.f32 %v2372, %v2378
      %v2404 = vadd.f32 %v2373, %v2382
      %v2405 = vmax.f32 %v2385, 0.0
      %v2406 = vmax.f32 %v2386, 0.0
      %v2407 = vmax.f32 %v2387, 0.0
      %v2408 = vmax.f32 %v2388, 0.0
      %v2409 = vmax.f32 %v2389, 0.0
      %v2410 = vmax.f32 %v2390, 0.0
      %v2411 = vmax.f32 %v2391, 0.0
      %v2412 = vmax.f32 %v2392, 0.0
      %v2413 = vmax.f32 %v2393, 0.0
      %v2414 = vmax.f32 %v2394, 0.0
      %v2415 = vmax.f32 %v2395, 0.0
      %v2416 = vmax.f32 %v2396, 0.0
      %v2417 = vmax.f32 %v2397, 0.0
      %v2418 = vmax.f32 %v2398, 0.0
      %v2419 = vmax.f32 %v2399, 0.0
      %v2420 = vmax.f32 %v2400, 0.0
      %v2421 = vmax.f32 %v2401, 0.0
      %v2422 = vmax.f32 %v2402, 0.0
      %v2423 = vmax.f32 %v2403, 0.0
      %v2424 = vmax.f32 %v2404, 0.0
      %v2426 = vlaneseq
      %v2427 = vshrl.u32 %v2426, 7
      %v2428 = vsub.s32 0, %v2427
      %v2429 = vrot.slane %v1387, %v2428
      %v2430 = vlaneseq
      %v2431 = vshrl.u32 %v2430, 7
      %v2432 = vsub.s32 1, %v2431
      %v2433 = vrot.slane %v1387, %v2432
      %v2436 = vmul.f32 %v2405, %v2429
      %v2437 = vmul.f32 %v2406, %v2433
      %v2438 = vmul.f32 %v2407, %v2429
      %v2439 = vmul.f32 %v2408, %v2433
      %v2440 = vmul.f32 %v2409, %v2429
      %v2441 = vmul.f32 %v2410, %v2433
      %v2442 = vmul.f32 %v2411, %v2429
      %v2443 = vmul.f32 %v2412, %v2433
      %v2444 = vmul.f32 %v2413, %v2429
      %v2445 = vmul.f32 %v2414, %v2433
      %v2446 = vmul.f32 %v2415, %v2429
      %v2447 = vmul.f32 %v2416, %v2433
      %v2448 = vmul.f32 %v2417, %v2429
      %v2449 = vmul.f32 %v2418, %v2433
      %v2450 = vmul.f32 %v2419, %v2429
      %v2451 = vmul.f32 %v2420, %v2433
      %v2452 = vmul.f32 %v2421, %v2429
      %v2453 = vmul.f32 %v2422, %v2433
      %v2454 = vmul.f32 %v2423, %v2429
      %v2455 = vmul.f32 %v2424, %v2433
      %v2457 = vlaneseq
      %v2458 = vshrl.u32 %v2457, 7
      %v2459 = vsub.s32 0, %v2458
      %v2460 = vrot.slane %v1389, %v2459
      %v2461 = vlaneseq
      %v2462 = vshrl.u32 %v2461, 7
      %v2463 = vsub.s32 1, %v2462
      %v2464 = vrot.slane %v1389, %v2463
      %v2467 = vadd.f32 %v2436, %v2460
      %v2468 = vadd.f32 %v2437, %v2464
      %v2469 = vadd.f32 %v2438, %v2460
      %v2470 = vadd.f32 %v2439, %v2464
      %v2471 = vadd.f32 %v2440, %v2460
      %v2472 = vadd.f32 %v2441, %v2464
      %v2473 = vadd.f32 %v2442, %v2460
      %v2474 = vadd.f32 %v2443, %v2464
      %v2475 = vadd.f32 %v2444, %v2460
      %v2476 = vadd.f32 %v2445, %v2464
      %v2477 = vadd.f32 %v2446, %v2460
      %v2478 = vadd.f32 %v2447, %v2464
      %v2479 = vadd.f32 %v2448, %v2460
      %v2480 = vadd.f32 %v2449, %v2464
      %v2481 = vadd.f32 %v2450, %v2460
      %v2482 = vadd.f32 %v2451, %v2464
      %v2483 = vadd.f32 %v2452, %v2460
      %v2484 = vadd.f32 %v2453, %v2464
      %v2485 = vadd.f32 %v2454, %v2460
      %v2486 = vadd.f32 %v2455, %v2464
      %2487 = vmatprep.subr.bf16.mxu0 %v1482
      %2488 = vmatpush1.bf16.msra.mxu0 %v1481
      %2489 = vmatprep.subr.bf16.mxu0 %v1484
      %2490 = vmatpush1.bf16.msra.mxu0 %v1483
      %2491 = vmatprep.subr.bf16.mxu0 %v1486
      %2492 = vmatpush1.bf16.msra.mxu0 %v1485
      %2493 = vmatprep.subr.bf16.mxu0 %v1488
      %2494 = vmatpush1.bf16.msra.mxu0 %v1487
      %2495 = vmatprep.subr.bf16.mxu0 %v1490
      %2496 = vmatpush1.bf16.msra.mxu0 %v1489
      %2497 = vmatprep.subr.bf16.mxu0 %v1492
      %2498 = vmatpush1.bf16.msra.mxu0 %v1491
      %2499 = vmatprep.subr.bf16.mxu0 %v1494
      %2500 = vmatpush1.bf16.msra.mxu0 %v1493
      %2501 = vmatprep.subr.bf16.mxu0 %v1496
      %2502 = vmatpush1.bf16.msra.mxu0 %v1495
      %2503 = vmatprep.subr.bf16.mxu0 0
      %2504 = vmatpush1.bf16.msra.mxu0 0
      %2505 = vmatprep.subr.bf16.mxu0 0
      %2506 = vmatpush1.bf16.msra.mxu0 0
      %2507 = vmatprep.subr.bf16.mxu0 0
      %2508 = vmatpush1.bf16.msra.mxu0 0
      %2509 = vmatprep.subr.bf16.mxu0 0
      %2510 = vmatpush1.bf16.msra.mxu0 0
      %2511 = vmatprep.subr.bf16.mxu0 0
      %2512 = vmatpush1.bf16.msra.mxu0 0
      %2513 = vmatprep.subr.bf16.mxu0 0
      %2514 = vmatpush1.bf16.msra.mxu0 0
      %2515 = vmatprep.subr.bf16.mxu0 0
      %2516 = vmatpush1.bf16.msra.mxu0 0
      %2517 = vmatprep.subr.bf16.mxu0 0
      %2518 = vmatpush1.bf16.msra.mxu0 0
      %2519 = vmatprep.mubr.bf16.mxu0 0
      %2520 = vmatmul.mubr.bf16.gmra.mrb[0].mxu0 %v1759
      %v2521 = vpop.f32.mrb[0].mxu0
      %v2522 = vadd.f32 0.0, %v2521
      %v2523 = vpop.f32.mrb[0].mxu0
      %v2524 = vadd.f32 0.0, %v2523
      %v2525 = vpop.f32.mrb[0].mxu0
      %v2526 = vadd.f32 0.0, %v2525
      %v2527 = vpop.f32.mrb[0].mxu0
      %v2528 = vadd.f32 0.0, %v2527
      %2529 = vmatprep.mubr.bf16.mxu0 0
      %2530 = vmatmul.mubr.bf16.gmra.mrb[0].mxu0 %v1760
      %v2531 = vpop.f32.mrb[0].mxu0
      %v2532 = vadd.f32 0.0, %v2531
      %v2533 = vpop.f32.mrb[0].mxu0
      %v2534 = vadd.f32 0.0, %v2533
      %v2535 = vpop.f32.mrb[0].mxu0
      %v2536 = vadd.f32 0.0, %v2535
      %v2537 = vpop.f32.mrb[0].mxu0
      %v2538 = vadd.f32 0.0, %v2537
      %2539 = vmatprep.mubr.bf16.mxu0 0
      %2540 = vmatmul.mubr.bf16.gmra.mrb[0].mxu0 %v1761
      %v2541 = vpop.f32.mrb[0].mxu0
      %v2542 = vadd.f32 0.0, %v2541
      %v2543 = vpop.f32.mrb[0].mxu0
      %v2544 = vadd.f32 0.0, %v2543
      %v2545 = vpop.f32.mrb[0].mxu0
      %v2546 = vadd.f32 0.0, %v2545
      %v2547 = vpop.f32.mrb[0].mxu0
      %v2548 = vadd.f32 0.0, %v2547
      %2549 = vmatprep.mubr.bf16.mxu0 0
      %2550 = vmatmul.mubr.bf16.gmra.mrb[0].mxu0 %v1762
      %v2551 = vpop.f32.mrb[0].mxu0
      %v2552 = vadd.f32 0.0, %v2551
      %v2553 = vpop.f32.mrb[0].mxu0
      %v2554 = vadd.f32 0.0, %v2553
      %v2555 = vpop.f32.mrb[0].mxu0
      %v2556 = vadd.f32 0.0, %v2555
      %v2557 = vpop.f32.mrb[0].mxu0
      %v2558 = vadd.f32 0.0, %v2557
      %2559 = vmatprep.mubr.bf16.mxu0 0
      %2560 = vmatmul.mubr.bf16.gmra.mrb[0].mxu0 %v1763
      %v2561 = vpop.f32.mrb[0].mxu0
      %v2562 = vadd.f32 0.0, %v2561
      %v2563 = vpop.f32.mrb[0].mxu0
      %v2564 = vadd.f32 0.0, %v2563
      %v2565 = vpop.f32.mrb[0].mxu0
      %v2566 = vadd.f32 0.0, %v2565
      %v2567 = vpop.f32.mrb[0].mxu0
      %v2568 = vadd.f32 0.0, %v2567
      %2569 = vdwg.mxu0
      %2570 = vmatprep.subr.bf16.mxu0 %v1645
      %2571 = vmatpush1.bf16.msra.mxu0 %v1644
      %2572 = vmatprep.subr.bf16.mxu0 %v1647
      %2573 = vmatpush1.bf16.msra.mxu0 %v1646
      %2574 = vmatprep.subr.bf16.mxu0 %v1649
      %2575 = vmatpush1.bf16.msra.mxu0 %v1648
      %2576 = vmatprep.subr.bf16.mxu0 %v1651
      %2577 = vmatpush1.bf16.msra.mxu0 %v1650
      %2578 = vmatprep.subr.bf16.mxu0 %v1653
      %2579 = vmatpush1.bf16.msra.mxu0 %v1652
      %2580 = vmatprep.subr.bf16.mxu0 %v1655
      %2581 = vmatpush1.bf16.msra.mxu0 %v1654
      %2582 = vmatprep.subr.bf16.mxu0 %v1657
      %2583 = vmatpush1.bf16.msra.mxu0 %v1656
      %2584 = vmatprep.subr.bf16.mxu0 %v1659
      %2585 = vmatpush1.bf16.msra.mxu0 %v1658
      %2586 = vmatprep.subr.bf16.mxu0 0
      %2587 = vmatpush1.bf16.msra.mxu0 0
      %2588 = vmatprep.subr.bf16.mxu0 0
      %2589 = vmatpush1.bf16.msra.mxu0 0
      %2590 = vmatprep.subr.bf16.mxu0 0
      %2591 = vmatpush1.bf16.msra.mxu0 0
      %2592 = vmatprep.subr.bf16.mxu0 0
      %2593 = vmatpush1.bf16.msra.mxu0 0
      %2594 = vmatprep.subr.bf16.mxu0 0
      %2595 = vmatpush1.bf16.msra.mxu0 0
      %2596 = vmatprep.subr.bf16.mxu0 0
      %2597 = vmatpush1.bf16.msra.mxu0 0
      %2598 = vmatprep.subr.bf16.mxu0 0
      %2599 = vmatpush1.bf16.msra.mxu0 0
      %2600 = vmatprep.subr.bf16.mxu0 0
      %2601 = vmatpush1.bf16.msra.mxu0 0
      %2602 = vmatprep.mubr.bf16.mxu0 0
      %2603 = vmatmul.mubr.bf16.gmra.mrb[0].mxu0 %v1411
      %v2604 = vpop.f32.mrb[0].mxu0
      %v2605 = vadd.f32 %v2522, %v2604
      %v2606 = vpop.f32.mrb[0].mxu0
      %v2607 = vadd.f32 %v2524, %v2606
      %v2608 = vpop.f32.mrb[0].mxu0
      %v2609 = vadd.f32 %v2526, %v2608
      %v2610 = vpop.f32.mrb[0].mxu0
      %v2611 = vadd.f32 %v2528, %v2610
      %2612 = vmatprep.mubr.bf16.mxu0 0
      %2613 = vmatmul.mubr.bf16.gmra.mrb[0].mxu0 %v1412
      %v2614 = vpop.f32.mrb[0].mxu0
      %v2615 = vadd.f32 %v2532, %v2614
      %v2616 = vpop.f32.mrb[0].mxu0
      %v2617 = vadd.f32 %v2534, %v2616
      %v2618 = vpop.f32.mrb[0].mxu0
      %v2619 = vadd.f32 %v2536, %v2618
      %v2620 = vpop.f32.mrb[0].mxu0
      %v2621 = vadd.f32 %v2538, %v2620
      %2622 = vmatprep.mubr.bf16.mxu0 0
      %2623 = vmatmul.mubr.bf16.gmra.mrb[0].mxu0 %v1413
      %v2624 = vpop.f32.mrb[0].mxu0
      %v2625 = vadd.f32 %v2542, %v2624
      %v2626 = vpop.f32.mrb[0].mxu0
      %v2627 = vadd.f32 %v2544, %v2626
      %v2628 = vpop.f32.mrb[0].mxu0
      %v2629 = vadd.f32 %v2546, %v2628
      %v2630 = vpop.f32.mrb[0].mxu0
      %v2631 = vadd.f32 %v2548, %v2630
      %2632 = vmatprep.mubr.bf16.mxu0 0
      %2633 = vmatmul.mubr.bf16.gmra.mrb[0].mxu0 %v1414
      %v2634 = vpop.f32.mrb[0].mxu0
      %v2635 = vadd.f32 %v2552, %v2634
      %v2636 = vpop.f32.mrb[0].mxu0
      %v2637 = vadd.f32 %v2554, %v2636
      %v2638 = vpop.f32.mrb[0].mxu0
      %v2639 = vadd.f32 %v2556, %v2638
      %v2640 = vpop.f32.mrb[0].mxu0
      %v2641 = vadd.f32 %v2558, %v2640
      %2642 = vmatprep.mubr.bf16.mxu0 0
      %2643 = vmatmul.mubr.bf16.gmra.mrb[0].mxu0 %v1415
      %v2644 = vpop.f32.mrb[0].mxu0
      %v2645 = vadd.f32 %v2562, %v2644
      %v2646 = vpop.f32.mrb[0].mxu0
      %v2647 = vadd.f32 %v2564, %v2646
      %v2648 = vpop.f32.mrb[0].mxu0
      %v2649 = vadd.f32 %v2566, %v2648
      %v2650 = vpop.f32.mrb[0].mxu0
      %v2651 = vadd.f32 %v2568, %v2650
      %2652 = vdwg.mxu0
      %2653 = vmatprep.subr.bf16.mxu0 %v1830
      %2654 = vmatpush1.bf16.msra.mxu0 %v1829
      %2655 = vmatprep.subr.bf16.mxu0 %v1832
      %2656 = vmatpush1.bf16.msra.mxu0 %v1831
      %2657 = vmatprep.subr.bf16.mxu0 %v1834
      %2658 = vmatpush1.bf16.msra.mxu0 %v1833
      %2659 = vmatprep.subr.bf16.mxu0 %v1836
      %2660 = vmatpush1.bf16.msra.mxu0 %v1835
      %2661 = vmatprep.subr.bf16.mxu0 %v1838
      %2662 = vmatpush1.bf16.msra.mxu0 %v1837
      %2663 = vmatprep.subr.bf16.mxu0 %v1840
      %2664 = vmatpush1.bf16.msra.mxu0 %v1839
      %2665 = vmatprep.subr.bf16.mxu0 %v1842
      %2666 = vmatpush1.bf16.msra.mxu0 %v1841
      %2667 = vmatprep.subr.bf16.mxu0 %v1844
      %2668 = vmatpush1.bf16.msra.mxu0 %v1843
      %2669 = vmatprep.subr.bf16.mxu0 0
      %2670 = vmatpush1.bf16.msra.mxu0 0
      %2671 = vmatprep.subr.bf16.mxu0 0
      %2672 = vmatpush1.bf16.msra.mxu0 0
      %2673 = vmatprep.subr.bf16.mxu0 0
      %2674 = vmatpush1.bf16.msra.mxu0 0
      %2675 = vmatprep.subr.bf16.mxu0 0
      %2676 = vmatpush1.bf16.msra.mxu0 0
      %2677 = vmatprep.subr.bf16.mxu0 0
      %2678 = vmatpush1.bf16.msra.mxu0 0
      %2679 = vmatprep.subr.bf16.mxu0 0
      %2680 = vmatpush1.bf16.msra.mxu0 0
      %2681 = vmatprep.subr.bf16.mxu0 0
      %2682 = vmatpush1.bf16.msra.mxu0 0
      %2683 = vmatprep.subr.bf16.mxu0 0
      %2684 = vmatpush1.bf16.msra.mxu0 0
      %2685 = vmatprep.mubr.bf16.mxu0 0
      %2686 = vmatmul.mubr.bf16.gmra.mrb[0].mxu0 %v1964
      %v2687 = vpop.f32.mrb[0].mxu0
      %v2688 = vadd.f32 0.0, %v2687
      %v2689 = vpop.f32.mrb[0].mxu0
      %v2690 = vadd.f32 0.0, %v2689
      %v2691 = vpop.f32.mrb[0].mxu0
      %v2692 = vadd.f32 0.0, %v2691
      %v2693 = vpop.f32.mrb[0].mxu0
      %v2694 = vadd.f32 0.0, %v2693
      %2695 = vmatprep.mubr.bf16.mxu0 0
      %2696 = vmatmul.mubr.bf16.gmra.mrb[0].mxu0 %v1965
      %v2697 = vpop.f32.mrb[0].mxu0
      %v2698 = vadd.f32 0.0, %v2697
      %v2699 = vpop.f32.mrb[0].mxu0
      %v2700 = vadd.f32 0.0, %v2699
      %v2701 = vpop.f32.mrb[0].mxu0
      %v2702 = vadd.f32 0.0, %v2701
      %v2703 = vpop.f32.mrb[0].mxu0
      %v2704 = vadd.f32 0.0, %v2703
      %2705 = vmatprep.mubr.bf16.mxu0 0
      %2706 = vmatmul.mubr.bf16.gmra.mrb[0].mxu0 %v1966
      %v2707 = vpop.f32.mrb[0].mxu0
      %v2708 = vadd.f32 0.0, %v2707
      %v2709 = vpop.f32.mrb[0].mxu0
      %v2710 = vadd.f32 0.0, %v2709
      %v2711 = vpop.f32.mrb[0].mxu0
      %v2712 = vadd.f32 0.0, %v2711
      %v2713 = vpop.f32.mrb[0].mxu0
      %v2714 = vadd.f32 0.0, %v2713
      %2715 = vmatprep.mubr.bf16.mxu0 0
      %2716 = vmatmul.mubr.bf16.gmra.mrb[0].mxu0 %v1967
      %v2717 = vpop.f32.mrb[0].mxu0
      %v2718 = vadd.f32 0.0, %v2717
      %v2719 = vpop.f32.mrb[0].mxu0
      %v2720 = vadd.f32 0.0, %v2719
      %v2721 = vpop.f32.mrb[0].mxu0
      %v2722 = vadd.f32 0.0, %v2721
      %v2723 = vpop.f32.mrb[0].mxu0
      %v2724 = vadd.f32 0.0, %v2723
      %2725 = vmatprep.mubr.bf16.mxu0 0
      %2726 = vmatmul.mubr.bf16.gmra.mrb[0].mxu0 %v1968
      %v2727 = vpop.f32.mrb[0].mxu0
      %v2728 = vadd.f32 0.0, %v2727
      %v2729 = vpop.f32.mrb[0].mxu0
      %v2730 = vadd.f32 0.0, %v2729
      %v2731 = vpop.f32.mrb[0].mxu0
      %v2732 = vadd.f32 0.0, %v2731
      %v2733 = vpop.f32.mrb[0].mxu0
      %v2734 = vadd.f32 0.0, %v2733
      %2735 = vdwg.mxu0
      %v2736 = vadd.f32 %v2605, %v2688
      %v2737 = vadd.f32 %v2607, %v2690
      %v2738 = vadd.f32 %v2609, %v2692
      %v2739 = vadd.f32 %v2611, %v2694
      %v2740 = vadd.f32 %v2615, %v2698
      %v2741 = vadd.f32 %v2617, %v2700
      %v2742 = vadd.f32 %v2619, %v2702
      %v2743 = vadd.f32 %v2621, %v2704
      %v2744 = vadd.f32 %v2625, %v2708
      %v2745 = vadd.f32 %v2627, %v2710
      %v2746 = vadd.f32 %v2629, %v2712
      %v2747 = vadd.f32 %v2631, %v2714
      %v2748 = vadd.f32 %v2635, %v2718
      %v2749 = vadd.f32 %v2637, %v2720
      %v2750 = vadd.f32 %v2639, %v2722
      %v2751 = vadd.f32 %v2641, %v2724
      %v2752 = vadd.f32 %v2645, %v2728
      %v2753 = vadd.f32 %v2647, %v2730
      %v2754 = vadd.f32 %v2649, %v2732
      %v2755 = vadd.f32 %v2651, %v2734
      %2756 = vmatprep.subr.bf16.mxu0 %v2035
      %2757 = vmatpush1.bf16.msra.mxu0 %v2034
      %2758 = vmatprep.subr.bf16.mxu0 %v2037
      %2759 = vmatpush1.bf16.msra.mxu0 %v2036
      %2760 = vmatprep.subr.bf16.mxu0 %v2039
      %2761 = vmatpush1.bf16.msra.mxu0 %v2038
      %2762 = vmatprep.subr.bf16.mxu0 %v2041
      %2763 = vmatpush1.bf16.msra.mxu0 %v2040
      %2764 = vmatprep.subr.bf16.mxu0 %v2043
      %2765 = vmatpush1.bf16.msra.mxu0 %v2042
      %2766 = vmatprep.subr.bf16.mxu0 %v2045
      %2767 = vmatpush1.bf16.msra.mxu0 %v2044
      %2768 = vmatprep.subr.bf16.mxu0 %v2047
      %2769 = vmatpush1.bf16.msra.mxu0 %v2046
      %2770 = vmatprep.subr.bf16.mxu0 %v2049
      %2771 = vmatpush1.bf16.msra.mxu0 %v2048
      %2772 = vmatprep.subr.bf16.mxu0 0
      %2773 = vmatpush1.bf16.msra.mxu0 0
      %2774 = vmatprep.subr.bf16.mxu0 0
      %2775 = vmatpush1.bf16.msra.mxu0 0
      %2776 = vmatprep.subr.bf16.mxu0 0
      %2777 = vmatpush1.bf16.msra.mxu0 0
      %2778 = vmatprep.subr.bf16.mxu0 0
      %2779 = vmatpush1.bf16.msra.mxu0 0
      %2780 = vmatprep.subr.bf16.mxu0 0
      %2781 = vmatpush1.bf16.msra.mxu0 0
      %2782 = vmatprep.subr.bf16.mxu0 0
      %2783 = vmatpush1.bf16.msra.mxu0 0
      %2784 = vmatprep.subr.bf16.mxu0 0
      %2785 = vmatpush1.bf16.msra.mxu0 0
      %2786 = vmatprep.subr.bf16.mxu0 0
      %2787 = vmatpush1.bf16.msra.mxu0 0
      %2788 = vmatprep.mubr.bf16.mxu0 0
      %2789 = vmatmul.mubr.bf16.gmra.mrb[0].mxu0 %v2169
      %v2790 = vpop.f32.mrb[0].mxu0
      %v2791 = vadd.f32 0.0, %v2790
      %v2792 = vpop.f32.mrb[0].mxu0
      %v2793 = vadd.f32 0.0, %v2792
      %v2794 = vpop.f32.mrb[0].mxu0
      %v2795 = vadd.f32 0.0, %v2794
      %v2796 = vpop.f32.mrb[0].mxu0
      %v2797 = vadd.f32 0.0, %v2796
      %2798 = vmatprep.mubr.bf16.mxu0 0
      %2799 = vmatmul.mubr.bf16.gmra.mrb[0].mxu0 %v2170
      %v2800 = vpop.f32.mrb[0].mxu0
      %v2801 = vadd.f32 0.0, %v2800
      %v2802 = vpop.f32.mrb[0].mxu0
      %v2803 = vadd.f32 0.0, %v2802
      %v2804 = vpop.f32.mrb[0].mxu0
      %v2805 = vadd.f32 0.0, %v2804
      %v2806 = vpop.f32.mrb[0].mxu0
      %v2807 = vadd.f32 0.0, %v2806
      %2808 = vmatprep.mubr.bf16.mxu0 0
      %2809 = vmatmul.mubr.bf16.gmra.mrb[0].mxu0 %v2171
      %v2810 = vpop.f32.mrb[0].mxu0
      %v2811 = vadd.f32 0.0, %v2810
      %v2812 = vpop.f32.mrb[0].mxu0
      %v2813 = vadd.f32 0.0, %v2812
      %v2814 = vpop.f32.mrb[0].mxu0
      %v2815 = vadd.f32 0.0, %v2814
      %v2816 = vpop.f32.mrb[0].mxu0
      %v2817 = vadd.f32 0.0, %v2816
      %2818 = vmatprep.mubr.bf16.mxu0 0
      %2819 = vmatmul.mubr.bf16.gmra.mrb[0].mxu0 %v2172
      %v2820 = vpop.f32.mrb[0].mxu0
      %v2821 = vadd.f32 0.0, %v2820
      %v2822 = vpop.f32.mrb[0].mxu0
      %v2823 = vadd.f32 0.0, %v2822
      %v2824 = vpop.f32.mrb[0].mxu0
      %v2825 = vadd.f32 0.0, %v2824
      %v2826 = vpop.f32.mrb[0].mxu0
      %v2827 = vadd.f32 0.0, %v2826
      %2828 = vmatprep.mubr.bf16.mxu0 0
      %2829 = vmatmul.mubr.bf16.gmra.mrb[0].mxu0 %v2173
      %v2830 = vpop.f32.mrb[0].mxu0
      %v2831 = vadd.f32 0.0, %v2830
      %v2832 = vpop.f32.mrb[0].mxu0
      %v2833 = vadd.f32 0.0, %v2832
      %v2834 = vpop.f32.mrb[0].mxu0
      %v2835 = vadd.f32 0.0, %v2834
      %v2836 = vpop.f32.mrb[0].mxu0
      %v2837 = vadd.f32 0.0, %v2836
      %2838 = vdwg.mxu0
      %v2839 = vadd.f32 %v2736, %v2791
      %v2840 = vadd.f32 %v2737, %v2793
      %v2841 = vadd.f32 %v2738, %v2795
      %v2842 = vadd.f32 %v2739, %v2797
      %v2843 = vadd.f32 %v2740, %v2801
      %v2844 = vadd.f32 %v2741, %v2803
      %v2845 = vadd.f32 %v2742, %v2805
      %v2846 = vadd.f32 %v2743, %v2807
      %v2847 = vadd.f32 %v2744, %v2811
      %v2848 = vadd.f32 %v2745, %v2813
      %v2849 = vadd.f32 %v2746, %v2815
      %v2850 = vadd.f32 %v2747, %v2817
      %v2851 = vadd.f32 %v2748, %v2821
      %v2852 = vadd.f32 %v2749, %v2823
      %v2853 = vadd.f32 %v2750, %v2825
      %v2854 = vadd.f32 %v2751, %v2827
      %v2855 = vadd.f32 %v2752, %v2831
      %v2856 = vadd.f32 %v2753, %v2833
      %v2857 = vadd.f32 %v2754, %v2835
      %v2858 = vadd.f32 %v2755, %v2837
      %v2859 = vld [vmem:[%s1372 + $0x10] sm:$0xff]
      %v2860 = vld [vmem:[%s1372 + $0x18] sm:$0xff]
      %v2861 = vld [vmem:[%s1372 + $0x20] sm:$0xff]
      %v2862 = vld [vmem:[%s1372 + $0x28] sm:$0xff]
      %v2863 = vld [vmem:[%s1372 + $0x30] sm:$0xff]
      %2864 = vmatprep.subr.bf16.mxu0 %v2240
      %2865 = vmatpush1.bf16.msra.mxu0 %v2239
      %2866 = vmatprep.subr.bf16.mxu0 %v2242
      %2867 = vmatpush1.bf16.msra.mxu0 %v2241
      %2868 = vmatprep.subr.bf16.mxu0 %v2244
      %2869 = vmatpush1.bf16.msra.mxu0 %v2243
      %2870 = vmatprep.subr.bf16.mxu0 %v2246
      %2871 = vmatpush1.bf16.msra.mxu0 %v2245
      %2872 = vmatprep.subr.bf16.mxu0 %v2248
      %2873 = vmatpush1.bf16.msra.mxu0 %v2247
      %2874 = vmatprep.subr.bf16.mxu0 %v2250
      %2875 = vmatpush1.bf16.msra.mxu0 %v2249
      %2876 = vmatprep.subr.bf16.mxu0 %v2252
      %2877 = vmatpush1.bf16.msra.mxu0 %v2251
      %2878 = vmatprep.subr.bf16.mxu0 %v2254
      %2879 = vmatpush1.bf16.msra.mxu0 %v2253
      %2880 = vmatprep.subr.bf16.mxu0 0
      %2881 = vmatpush1.bf16.msra.mxu0 0
      %2882 = vmatprep.subr.bf16.mxu0 0
      %2883 = vmatpush1.bf16.msra.mxu0 0
      %2884 = vmatprep.subr.bf16.mxu0 0
      %2885 = vmatpush1.bf16.msra.mxu0 0
      %2886 = vmatprep.subr.bf16.mxu0 0
      %2887 = vmatpush1.bf16.msra.mxu0 0
      %2888 = vmatprep.subr.bf16.mxu0 0
      %2889 = vmatpush1.bf16.msra.mxu0 0
      %2890 = vmatprep.subr.bf16.mxu0 0
      %2891 = vmatpush1.bf16.msra.mxu0 0
      %2892 = vmatprep.subr.bf16.mxu0 0
      %2893 = vmatpush1.bf16.msra.mxu0 0
      %2894 = vmatprep.subr.bf16.mxu0 0
      %2895 = vmatpush1.bf16.msra.mxu0 0
      %2896 = vmatprep.mubr.bf16.mxu0 0
      %2897 = vmatmul.mubr.bf16.gmra.mrb[0].mxu0 %v2859
      %v2898 = vpop.f32.mrb[0].mxu0
      %v2899 = vadd.f32 0.0, %v2898
      %v2900 = vpop.f32.mrb[0].mxu0
      %v2901 = vadd.f32 0.0, %v2900
      %v2902 = vpop.f32.mrb[0].mxu0
      %v2903 = vadd.f32 0.0, %v2902
      %v2904 = vpop.f32.mrb[0].mxu0
      %v2905 = vadd.f32 0.0, %v2904
      %2906 = vmatprep.mubr.bf16.mxu0 0
      %2907 = vmatmul.mubr.bf16.gmra.mrb[0].mxu0 %v2860
      %v2908 = vpop.f32.mrb[0].mxu0
      %v2909 = vadd.f32 0.0, %v2908
      %v2910 = vpop.f32.mrb[0].mxu0
      %v2911 = vadd.f32 0.0, %v2910
      %v2912 = vpop.f32.mrb[0].mxu0
      %v2913 = vadd.f32 0.0, %v2912
      %v2914 = vpop.f32.mrb[0].mxu0
      %v2915 = vadd.f32 0.0, %v2914
      %2916 = vmatprep.mubr.bf16.mxu0 0
      %2917 = vmatmul.mubr.bf16.gmra.mrb[0].mxu0 %v2861
      %v2918 = vpop.f32.mrb[0].mxu0
      %v2919 = vadd.f32 0.0, %v2918
      %v2920 = vpop.f32.mrb[0].mxu0
      %v2921 = vadd.f32 0.0, %v2920
      %v2922 = vpop.f32.mrb[0].mxu0
      %v2923 = vadd.f32 0.0, %v2922
      %v2924 = vpop.f32.mrb[0].mxu0
      %v2925 = vadd.f32 0.0, %v2924
      %2926 = vmatprep.mubr.bf16.mxu0 0
      %2927 = vmatmul.mubr.bf16.gmra.mrb[0].mxu0 %v2862
      %v2928 = vpop.f32.mrb[0].mxu0
      %v2929 = vadd.f32 0.0, %v2928
      %v2930 = vpop.f32.mrb[0].mxu0
      %v2931 = vadd.f32 0.0, %v2930
      %v2932 = vpop.f32.mrb[0].mxu0
      %v2933 = vadd.f32 0.0, %v2932
      %v2934 = vpop.f32.mrb[0].mxu0
      %v2935 = vadd.f32 0.0, %v2934
      %2936 = vmatprep.mubr.bf16.mxu0 0
      %2937 = vmatmul.mubr.bf16.gmra.mrb[0].mxu0 %v2863
      %v2938 = vpop.f32.mrb[0].mxu0
      %v2939 = vadd.f32 0.0, %v2938
      %v2940 = vpop.f32.mrb[0].mxu0
      %v2941 = vadd.f32 0.0, %v2940
      %v2942 = vpop.f32.mrb[0].mxu0
      %v2943 = vadd.f32 0.0, %v2942
      %v2944 = vpop.f32.mrb[0].mxu0
      %v2945 = vadd.f32 0.0, %v2944
      %2946 = vdwg.mxu0
      %v2947 = vadd.f32 %v2839, %v2899
      %v2948 = vadd.f32 %v2840, %v2901
      %v2949 = vadd.f32 %v2841, %v2903
      %v2950 = vadd.f32 %v2842, %v2905
      %v2951 = vadd.f32 %v2843, %v2909
      %v2952 = vadd.f32 %v2844, %v2911
      %v2953 = vadd.f32 %v2845, %v2913
      %v2954 = vadd.f32 %v2846, %v2915
      %v2955 = vadd.f32 %v2847, %v2919
      %v2956 = vadd.f32 %v2848, %v2921
      %v2957 = vadd.f32 %v2849, %v2923
      %v2958 = vadd.f32 %v2850, %v2925
      %v2959 = vadd.f32 %v2851, %v2929
      %v2960 = vadd.f32 %v2852, %v2931
      %v2961 = vadd.f32 %v2853, %v2933
      %v2962 = vadd.f32 %v2854, %v2935
      %v2963 = vadd.f32 %v2855, %v2939
      %v2964 = vadd.f32 %v2856, %v2941
      %v2965 = vadd.f32 %v2857, %v2943
      %v2966 = vadd.f32 %v2858, %v2945
      %v2967 = vadd.f32 %v2947, %v2378
      %v2968 = vadd.f32 %v2948, %v2382
      %v2969 = vadd.f32 %v2949, %v2378
      %v2970 = vadd.f32 %v2950, %v2382
      %v2971 = vadd.f32 %v2951, %v2378
      %v2972 = vadd.f32 %v2952, %v2382
      %v2973 = vadd.f32 %v2953, %v2378
      %v2974 = vadd.f32 %v2954, %v2382
      %v2975 = vadd.f32 %v2955, %v2378
      %v2976 = vadd.f32 %v2956, %v2382
      %v2977 = vadd.f32 %v2957, %v2378
      %v2978 = vadd.f32 %v2958, %v2382
      %v2979 = vadd.f32 %v2959, %v2378
      %v2980 = vadd.f32 %v2960, %v2382
      %v2981 = vadd.f32 %v2961, %v2378
      %v2982 = vadd.f32 %v2962, %v2382
      %v2983 = vadd.f32 %v2963, %v2378
      %v2984 = vadd.f32 %v2964, %v2382
      %v2985 = vadd.f32 %v2965, %v2378
      %v2986 = vadd.f32 %v2966, %v2382
      %v2987 = vmax.f32 %v2967, 0.0
      %v2988 = vmax.f32 %v2968, 0.0
      %v2989 = vmax.f32 %v2969, 0.0
      %v2990 = vmax.f32 %v2970, 0.0
      %v2991 = vmax.f32 %v2971, 0.0
      %v2992 = vmax.f32 %v2972, 0.0
      %v2993 = vmax.f32 %v2973, 0.0
      %v2994 = vmax.f32 %v2974, 0.0
      %v2995 = vmax.f32 %v2975, 0.0
      %v2996 = vmax.f32 %v2976, 0.0
      %v2997 = vmax.f32 %v2977, 0.0
      %v2998 = vmax.f32 %v2978, 0.0
      %v2999 = vmax.f32 %v2979, 0.0
      %v3000 = vmax.f32 %v2980, 0.0
      %v3001 = vmax.f32 %v2981, 0.0
      %v3002 = vmax.f32 %v2982, 0.0
      %v3003 = vmax.f32 %v2983, 0.0
      %v3004 = vmax.f32 %v2984, 0.0
      %v3005 = vmax.f32 %v2985, 0.0
      %v3006 = vmax.f32 %v2986, 0.0
      %v3007 = vmul.f32 %v2987, %v2429
      %v3008 = vmul.f32 %v2988, %v2433
      %v3009 = vmul.f32 %v2989, %v2429
      %v3010 = vmul.f32 %v2990, %v2433
      %v3011 = vmul.f32 %v2991, %v2429
      %v3012 = vmul.f32 %v2992, %v2433
      %v3013 = vmul.f32 %v2993, %v2429
      %v3014 = vmul.f32 %v2994, %v2433
      %v3015 = vmul.f32 %v2995, %v2429
      %v3016 = vmul.f32 %v2996, %v2433
      %v3017 = vmul.f32 %v2997, %v2429
      %v3018 = vmul.f32 %v2998, %v2433
      %v3019 = vmul.f32 %v2999, %v2429
      %v3020 = vmul.f32 %v3000, %v2433
      %v3021 = vmul.f32 %v3001, %v2429
      %v3022 = vmul.f32 %v3002, %v2433
      %v3023 = vmul.f32 %v3003, %v2429
      %v3024 = vmul.f32 %v3004, %v2433
      %v3025 = vmul.f32 %v3005, %v2429
      %v3026 = vmul.f32 %v3006, %v2433
      %v3027 = vadd.f32 %v3007, %v2460
      %v3028 = vadd.f32 %v3008, %v2464
      %v3029 = vadd.f32 %v3009, %v2460
      %v3030 = vadd.f32 %v3010, %v2464
      %v3031 = vadd.f32 %v3011, %v2460
      %v3032 = vadd.f32 %v3012, %v2464
      %v3033 = vadd.f32 %v3013, %v2460
      %v3034 = vadd.f32 %v3014, %v2464
      %v3035 = vadd.f32 %v3015, %v2460
      %v3036 = vadd.f32 %v3016, %v2464
      %v3037 = vadd.f32 %v3017, %v2460
      %v3038 = vadd.f32 %v3018, %v2464
      %v3039 = vadd.f32 %v3019, %v2460
      %v3040 = vadd.f32 %v3020, %v2464
      %v3041 = vadd.f32 %v3021, %v2460
      %v3042 = vadd.f32 %v3022, %v2464
      %v3043 = vadd.f32 %v3023, %v2460
      %v3044 = vadd.f32 %v3024, %v2464
      %v3045 = vadd.f32 %v3025, %v2460
      %v3046 = vadd.f32 %v3026, %v2464
      %v3047 = vmax.f32 %v2467, %v3027
      %v3048 = vmax.f32 %v2468, %v3028
      %v3049 = vmax.f32 %v2469, %v3029
      %v3050 = vmax.f32 %v2470, %v3030
      %v3051 = vmax.f32 %v2471, %v3031
      %v3052 = vmax.f32 %v2472, %v3032
      %v3053 = vmax.f32 %v2473, %v3033
      %v3054 = vmax.f32 %v2474, %v3034
      %v3055 = vmax.f32 %v2475, %v3035
      %v3056 = vmax.f32 %v2476, %v3036
      %v3057 = vmax.f32 %v2477, %v3037
      %v3058 = vmax.f32 %v2478, %v3038
      %v3059 = vmax.f32 %v2479, %v3039
      %v3060 = vmax.f32 %v2480, %v3040
      %v3061 = vmax.f32 %v2481, %v3041
      %v3062 = vmax.f32 %v2482, %v3042
      %v3063 = vmax.f32 %v2483, %v3043
      %v3064 = vmax.f32 %v2484, %v3044
      %v3065 = vmax.f32 %v2485, %v3045
      %v3066 = vmax.f32 %v2486, %v3046
      %v3067 = vmax.f32 %v3047, %v3048
      %v3068 = vmax.f32 %v3049, %v3050
      %v3069 = vmax.f32 %v3051, %v3052
      %v3070 = vmax.f32 %v3053, %v3054
      %v3071 = vmax.f32 %v3055, %v3056
      %v3072 = vmax.f32 %v3057, %v3058
      %v3073 = vmax.f32 %v3059, %v3060
      %v3074 = vmax.f32 %v3061, %v3062
      %v3075 = vmax.f32 %v3063, %v3064
      %v3076 = vmax.f32 %v3065, %v3066
      %v3077 = vpack.c.bf16 %v3068, %v3067
      %v3078 = vpack.c.bf16 %v3070, %v3069
      %v3079 = vpack.c.bf16 %v3072, %v3071
      %v3080 = vpack.c.bf16 %v3074, %v3073
      %v3081 = vpack.c.bf16 %v3076, %v3075
      %v3082 = vld [vmem:[%s8] sm:$0x1]
      %v3083 = vld [vmem:[%s8 + $0x1] sm:$0x1]
      %v3084 = vld [vmem:[%s8 + $0x2] sm:$0x1]
      %v3085 = vld [vmem:[%s3] sm:$0xf]
      %v3086 = vld [vmem:[%s3 + $0x4] sm:$0xf]
      %v3087 = vld [vmem:[%s3 + $0x8] sm:$0xf]
      %v3088 = vld [vmem:[%s3 + $0xc] sm:$0xf]
      %v3089 = vld [vmem:[%s3 + $0x10] sm:$0xf]
      %v3090 = vld [vmem:[%s3 + $0x14] sm:$0xf]
      %v3091 = vld [vmem:[%s3 + $0x18] sm:$0xf]
      %v3092 = vld [vmem:[%s3 + $0x1c] sm:$0xf]
      %v3093 = vld [vmem:[%s3 + $0x20] sm:$0xf]
      %v3094 = vld [vmem:[%s3 + $0x24] sm:$0xf]
      %v3095 = vld [vmem:[%s3 + $0x28] sm:$0xf]
      %v3096 = vld [vmem:[%s3 + $0x2c] sm:$0xf]
      %v3097 = vld [vmem:[%s3 + $0x30] sm:$0xf]
      %v3098 = vld [vmem:[%s3 + $0x34] sm:$0xf]
      %v3099 = vld [vmem:[%s3 + $0x38] sm:$0xf]
      %v3100 = vld [vmem:[%s3 + $0x3c] sm:$0xf]
      %s3101 = scalar_lea.vmem %s3, 64
      %v3102 = vld [vmem:[%s3101] sm:$0xf]
      %v3103 = vld [vmem:[%s3101 + $0x4] sm:$0xf]
      %v3104 = vld [vmem:[%s3101 + $0x8] sm:$0xf]
      %v3105 = vld [vmem:[%s3101 + $0xc] sm:$0xf]
      %v3106 = vld [vmem:[%s3101 + $0x10] sm:$0xf]
      %v3107 = vld [vmem:[%s3101 + $0x14] sm:$0xf]
      %v3108 = vld [vmem:[%s3101 + $0x18] sm:$0xf]
      %v3109 = vld [vmem:[%s3101 + $0x1c] sm:$0xf]
      %v3110 = vld [vmem:[%s3101 + $0x20] sm:$0xf]
      %v3111 = vld [vmem:[%s3101 + $0x24] sm:$0xf]
      %v3112 = vld [vmem:[%s3101 + $0x28] sm:$0xf]
      %v3113 = vld [vmem:[%s3101 + $0x2c] sm:$0xf]
      %v3114 = vld [vmem:[%s3101 + $0x30] sm:$0xf]
      %v3115 = vld [vmem:[%s3101 + $0x34] sm:$0xf]
      %v3116 = vld [vmem:[%s3101 + $0x38] sm:$0xf]
      %v3117 = vld [vmem:[%s3101 + $0x3c] sm:$0xf]
      %v3134 = vunpack.c.l.b16 %v3102
      %v3135 = vunpack.c.l.b16 %v3103
      %v3136 = vunpack.c.l.b16 %v3104
      %v3137 = vunpack.c.l.b16 %v3105
      %v3138 = vunpack.c.l.b16 %v3106
      %v3139 = vunpack.c.l.b16 %v3107
      %v3140 = vunpack.c.l.b16 %v3108
      %v3141 = vunpack.c.l.b16 %v3109
      %v3142 = vunpack.c.l.b16 %v3110
      %v3143 = vunpack.c.l.b16 %v3111
      %v3144 = vunpack.c.l.b16 %v3112
      %v3145 = vunpack.c.l.b16 %v3113
      %v3146 = vunpack.c.l.b16 %v3114
      %v3147 = vunpack.c.l.b16 %v3115
      %v3148 = vunpack.c.l.b16 %v3116
      %v3149 = vunpack.c.l.b16 %v3117
      %v3150 = vpack.c.b16 %v3135, %v3134
      %v3151 = vpack.c.b16 %v3137, %v3136
      %v3152 = vpack.c.b16 %v3139, %v3138
      %v3153 = vpack.c.b16 %v3141, %v3140
      %v3154 = vpack.c.b16 %v3143, %v3142
      %v3155 = vpack.c.b16 %v3145, %v3144
      %v3156 = vpack.c.b16 %v3147, %v3146
      %v3157 = vpack.c.b16 %v3149, %v3148
      %3166 = vmatprep.subr.bf16.mxu0 0
      %3167 = vmatpush1.bf16.msra.mxu0 %v3150
      %3168 = vmatprep.subr.bf16.mxu0 0
      %3169 = vmatpush1.bf16.msra.mxu0 %v3151
      %3170 = vmatprep.subr.bf16.mxu0 0
      %3171 = vmatpush1.bf16.msra.mxu0 %v3152
      %3172 = vmatprep.subr.bf16.mxu0 0
      %3173 = vmatpush1.bf16.msra.mxu0 %v3153
      %3174 = vmatprep.subr.bf16.mxu0 0
      %3175 = vmatpush1.bf16.msra.mxu0 %v3154
      %3176 = vmatprep.subr.bf16.mxu0 0
      %3177 = vmatpush1.bf16.msra.mxu0 %v3155
      %3178 = vmatprep.subr.bf16.mxu0 0
      %3179 = vmatpush1.bf16.msra.mxu0 %v3156
      %3180 = vmatprep.subr.bf16.mxu0 0
      %3181 = vmatpush1.bf16.msra.mxu0 %v3157
      %3182 = vmatprep.subr.bf16.mxu0 0
      %3183 = vmatpush1.bf16.msra.mxu0 0
      %3184 = vmatprep.subr.bf16.mxu0 0
      %3185 = vmatpush1.bf16.msra.mxu0 0
      %3186 = vmatprep.subr.bf16.mxu0 0
      %3187 = vmatpush1.bf16.msra.mxu0 0
      %3188 = vmatprep.subr.bf16.mxu0 0
      %3189 = vmatpush1.bf16.msra.mxu0 0
      %3190 = vmatprep.subr.bf16.mxu0 0
      %3191 = vmatpush1.bf16.msra.mxu0 0
      %3192 = vmatprep.subr.bf16.mxu0 0
      %3193 = vmatpush1.bf16.msra.mxu0 0
      %3194 = vmatprep.subr.bf16.mxu0 0
      %3195 = vmatpush1.bf16.msra.mxu0 0
      %3196 = vmatprep.subr.bf16.mxu0 0
      %3197 = vmatpush1.bf16.msra.mxu0 0
      %3198 = vmatprep.mubr.bf16.mxu0 0
      %3199 = vmatmul.mubr.bf16.gmra.mrb[0].mxu0 %v3078
      %v3200 = vpop.f32.mrb[0].mxu0
      %v3201 = vadd.f32 0.0, %v3200
      %v3202 = vpop.f32.mrb[0].mxu0
      %v3203 = vpop.f32.mrb[0].mxu0
      %v3204 = vadd.f32 0.0, %v3203
      %v3205 = vpop.f32.mrb[0].mxu0
      %3206 = vdwg.mxu0
      %v3223 = vunpack.c.l.b16 %v3085
      %v3224 = vunpack.c.l.b16 %v3086
      %v3225 = vunpack.c.l.b16 %v3087
      %v3226 = vunpack.c.l.b16 %v3088
      %v3227 = vunpack.c.l.b16 %v3089
      %v3228 = vunpack.c.l.b16 %v3090
      %v3229 = vunpack.c.l.b16 %v3091
      %v3230 = vunpack.c.l.b16 %v3092
      %v3231 = vunpack.c.l.b16 %v3093
      %v3232 = vunpack.c.l.b16 %v3094
      %v3233 = vunpack.c.l.b16 %v3095
      %v3234 = vunpack.c.l.b16 %v3096
      %v3235 = vunpack.c.l.b16 %v3097
      %v3236 = vunpack.c.l.b16 %v3098
      %v3237 = vunpack.c.l.b16 %v3099
      %v3238 = vunpack.c.l.b16 %v3100
      %v3239 = vpack.c.b16 %v3224, %v3223
      %v3240 = vpack.c.b16 %v3226, %v3225
      %v3241 = vpack.c.b16 %v3228, %v3227
      %v3242 = vpack.c.b16 %v3230, %v3229
      %v3243 = vpack.c.b16 %v3232, %v3231
      %v3244 = vpack.c.b16 %v3234, %v3233
      %v3245 = vpack.c.b16 %v3236, %v3235
      %v3246 = vpack.c.b16 %v3238, %v3237
      %3255 = vmatprep.subr.bf16.mxu0 0
      %3256 = vmatpush1.bf16.msra.mxu0 %v3239
      %3257 = vmatprep.subr.bf16.mxu0 0
      %3258 = vmatpush1.bf16.msra.mxu0 %v3240
      %3259 = vmatprep.subr.bf16.mxu0 0
      %3260 = vmatpush1.bf16.msra.mxu0 %v3241
      %3261 = vmatprep.subr.bf16.mxu0 0
      %3262 = vmatpush1.bf16.msra.mxu0 %v3242
      %3263 = vmatprep.subr.bf16.mxu0 0
      %3264 = vmatpush1.bf16.msra.mxu0 %v3243
      %3265 = vmatprep.subr.bf16.mxu0 0
      %3266 = vmatpush1.bf16.msra.mxu0 %v3244
      %3267 = vmatprep.subr.bf16.mxu0 0
      %3268 = vmatpush1.bf16.msra.mxu0 %v3245
      %3269 = vmatprep.subr.bf16.mxu0 0
      %3270 = vmatpush1.bf16.msra.mxu0 %v3246
      %3271 = vmatprep.subr.bf16.mxu0 0
      %3272 = vmatpush1.bf16.msra.mxu0 0
      %3273 = vmatprep.subr.bf16.mxu0 0
      %3274 = vmatpush1.bf16.msra.mxu0 0
      %3275 = vmatprep.subr.bf16.mxu0 0
      %3276 = vmatpush1.bf16.msra.mxu0 0
      %3277 = vmatprep.subr.bf16.mxu0 0
      %3278 = vmatpush1.bf16.msra.mxu0 0
      %3279 = vmatprep.subr.bf16.mxu0 0
      %3280 = vmatpush1.bf16.msra.mxu0 0
      %3281 = vmatprep.subr.bf16.mxu0 0
      %3282 = vmatpush1.bf16.msra.mxu0 0
      %3283 = vmatprep.subr.bf16.mxu0 0
      %3284 = vmatpush1.bf16.msra.mxu0 0
      %3285 = vmatprep.subr.bf16.mxu0 0
      %3286 = vmatpush1.bf16.msra.mxu0 0
      %3287 = vmatprep.mubr.bf16.mxu0 0
      %3288 = vmatmul.mubr.bf16.gmra.mrb[0].mxu0 %v3077
      %v3289 = vpop.f32.mrb[0].mxu0
      %v3290 = vadd.f32 %v3201, %v3289
      %v3291 = vpop.f32.mrb[0].mxu0
      %v3292 = vpop.f32.mrb[0].mxu0
      %v3293 = vadd.f32 %v3204, %v3292
      %v3294 = vpop.f32.mrb[0].mxu0
      %3295 = vdwg.mxu0
      %s3296 = scalar_lea.vmem %s3, 128
      %v3297 = vld [vmem:[%s3296] sm:$0xf]
      %v3298 = vld [vmem:[%s3296 + $0x4] sm:$0xf]
      %v3299 = vld [vmem:[%s3296 + $0x8] sm:$0xf]
      %v3300 = vld [vmem:[%s3296 + $0xc] sm:$0xf]
      %v3301 = vld [vmem:[%s3296 + $0x10] sm:$0xf]
      %v3302 = vld [vmem:[%s3296 + $0x14] sm:$0xf]
      %v3303 = vld [vmem:[%s3296 + $0x18] sm:$0xf]
      %v3304 = vld [vmem:[%s3296 + $0x1c] sm:$0xf]
      %v3305 = vld [vmem:[%s3296 + $0x20] sm:$0xf]
      %v3306 = vld [vmem:[%s3296 + $0x24] sm:$0xf]
      %v3307 = vld [vmem:[%s3296 + $0x28] sm:$0xf]
      %v3308 = vld [vmem:[%s3296 + $0x2c] sm:$0xf]
      %v3309 = vld [vmem:[%s3296 + $0x30] sm:$0xf]
      %v3310 = vld [vmem:[%s3296 + $0x34] sm:$0xf]
      %v3311 = vld [vmem:[%s3296 + $0x38] sm:$0xf]
      %v3312 = vld [vmem:[%s3296 + $0x3c] sm:$0xf]
      %v3329 = vunpack.c.l.b16 %v3297
      %v3330 = vunpack.c.l.b16 %v3298
      %v3331 = vunpack.c.l.b16 %v3299
      %v3332 = vunpack.c.l.b16 %v3300
      %v3333 = vunpack.c.l.b16 %v3301
      %v3334 = vunpack.c.l.b16 %v3302
      %v3335 = vunpack.c.l.b16 %v3303
      %v3336 = vunpack.c.l.b16 %v3304
      %v3337 = vunpack.c.l.b16 %v3305
      %v3338 = vunpack.c.l.b16 %v3306
      %v3339 = vunpack.c.l.b16 %v3307
      %v3340 = vunpack.c.l.b16 %v3308
      %v3341 = vunpack.c.l.b16 %v3309
      %v3342 = vunpack.c.l.b16 %v3310
      %v3343 = vunpack.c.l.b16 %v3311
      %v3344 = vunpack.c.l.b16 %v3312
      %v3345 = vpack.c.b16 %v3330, %v3329
      %v3346 = vpack.c.b16 %v3332, %v3331
      %v3347 = vpack.c.b16 %v3334, %v3333
      %v3348 = vpack.c.b16 %v3336, %v3335
      %v3349 = vpack.c.b16 %v3338, %v3337
      %v3350 = vpack.c.b16 %v3340, %v3339
      %v3351 = vpack.c.b16 %v3342, %v3341
      %v3352 = vpack.c.b16 %v3344, %v3343
      %3361 = vmatprep.subr.bf16.mxu0 0
      %3362 = vmatpush1.bf16.msra.mxu0 %v3345
      %3363 = vmatprep.subr.bf16.mxu0 0
      %3364 = vmatpush1.bf16.msra.mxu0 %v3346
      %3365 = vmatprep.subr.bf16.mxu0 0
      %3366 = vmatpush1.bf16.msra.mxu0 %v3347
      %3367 = vmatprep.subr.bf16.mxu0 0
      %3368 = vmatpush1.bf16.msra.mxu0 %v3348
      %3369 = vmatprep.subr.bf16.mxu0 0
      %3370 = vmatpush1.bf16.msra.mxu0 %v3349
      %3371 = vmatprep.subr.bf16.mxu0 0
      %3372 = vmatpush1.bf16.msra.mxu0 %v3350
      %3373 = vmatprep.subr.bf16.mxu0 0
      %3374 = vmatpush1.bf16.msra.mxu0 %v3351
      %3375 = vmatprep.subr.bf16.mxu0 0
      %3376 = vmatpush1.bf16.msra.mxu0 %v3352
      %3377 = vmatprep.subr.bf16.mxu0 0
      %3378 = vmatpush1.bf16.msra.mxu0 0
      %3379 = vmatprep.subr.bf16.mxu0 0
      %3380 = vmatpush1.bf16.msra.mxu0 0
      %3381 = vmatprep.subr.bf16.mxu0 0
      %3382 = vmatpush1.bf16.msra.mxu0 0
      %3383 = vmatprep.subr.bf16.mxu0 0
      %3384 = vmatpush1.bf16.msra.mxu0 0
      %3385 = vmatprep.subr.bf16.mxu0 0
      %3386 = vmatpush1.bf16.msra.mxu0 0
      %3387 = vmatprep.subr.bf16.mxu0 0
      %3388 = vmatpush1.bf16.msra.mxu0 0
      %3389 = vmatprep.subr.bf16.mxu0 0
      %3390 = vmatpush1.bf16.msra.mxu0 0
      %3391 = vmatprep.subr.bf16.mxu0 0
      %3392 = vmatpush1.bf16.msra.mxu0 0
      %3393 = vmatprep.mubr.bf16.mxu0 0
      %3394 = vmatmul.mubr.bf16.gmra.mrb[0].mxu0 %v3079
      %v3395 = vpop.f32.mrb[0].mxu0
      %v3396 = vadd.f32 0.0, %v3395
      %v3397 = vpop.f32.mrb[0].mxu0
      %v3398 = vpop.f32.mrb[0].mxu0
      %v3399 = vadd.f32 0.0, %v3398
      %v3400 = vpop.f32.mrb[0].mxu0
      %3401 = vdwg.mxu0
      %v3402 = vadd.f32 %v3290, %v3396
      %v3403 = vadd.f32 %v3293, %v3399
      %s3404 = scalar_lea.vmem %s3, 192
      %v3405 = vld [vmem:[%s3404] sm:$0xf]
      %v3406 = vld [vmem:[%s3404 + $0x4] sm:$0xf]
      %v3407 = vld [vmem:[%s3404 + $0x8] sm:$0xf]
      %v3408 = vld [vmem:[%s3404 + $0xc] sm:$0xf]
      %v3409 = vld [vmem:[%s3404 + $0x10] sm:$0xf]
      %v3410 = vld [vmem:[%s3404 + $0x14] sm:$0xf]
      %v3411 = vld [vmem:[%s3404 + $0x18] sm:$0xf]
      %v3412 = vld [vmem:[%s3404 + $0x1c] sm:$0xf]
      %v3413 = vld [vmem:[%s3404 + $0x20] sm:$0xf]
      %v3414 = vld [vmem:[%s3404 + $0x24] sm:$0xf]
      %v3415 = vld [vmem:[%s3404 + $0x28] sm:$0xf]
      %v3416 = vld [vmem:[%s3404 + $0x2c] sm:$0xf]
      %v3417 = vld [vmem:[%s3404 + $0x30] sm:$0xf]
      %v3418 = vld [vmem:[%s3404 + $0x34] sm:$0xf]
      %v3419 = vld [vmem:[%s3404 + $0x38] sm:$0xf]
      %v3420 = vld [vmem:[%s3404 + $0x3c] sm:$0xf]
      %v3437 = vunpack.c.l.b16 %v3405
      %v3438 = vunpack.c.l.b16 %v3406
      %v3439 = vunpack.c.l.b16 %v3407
      %v3440 = vunpack.c.l.b16 %v3408
      %v3441 = vunpack.c.l.b16 %v3409
      %v3442 = vunpack.c.l.b16 %v3410
      %v3443 = vunpack.c.l.b16 %v3411
      %v3444 = vunpack.c.l.b16 %v3412
      %v3445 = vunpack.c.l.b16 %v3413
      %v3446 = vunpack.c.l.b16 %v3414
      %v3447 = vunpack.c.l.b16 %v3415
      %v3448 = vunpack.c.l.b16 %v3416
      %v3449 = vunpack.c.l.b16 %v3417
      %v3450 = vunpack.c.l.b16 %v3418
      %v3451 = vunpack.c.l.b16 %v3419
      %v3452 = vunpack.c.l.b16 %v3420
      %v3453 = vpack.c.b16 %v3438, %v3437
      %v3454 = vpack.c.b16 %v3440, %v3439
      %v3455 = vpack.c.b16 %v3442, %v3441
      %v3456 = vpack.c.b16 %v3444, %v3443
      %v3457 = vpack.c.b16 %v3446, %v3445
      %v3458 = vpack.c.b16 %v3448, %v3447
      %v3459 = vpack.c.b16 %v3450, %v3449
      %v3460 = vpack.c.b16 %v3452, %v3451
      %3469 = vmatprep.subr.bf16.mxu0 0
      %3470 = vmatpush1.bf16.msra.mxu0 %v3453
      %3471 = vmatprep.subr.bf16.mxu0 0
      %3472 = vmatpush1.bf16.msra.mxu0 %v3454
      %3473 = vmatprep.subr.bf16.mxu0 0
      %3474 = vmatpush1.bf16.msra.mxu0 %v3455
      %3475 = vmatprep.subr.bf16.mxu0 0
      %3476 = vmatpush1.bf16.msra.mxu0 %v3456
      %3477 = vmatprep.subr.bf16.mxu0 0
      %3478 = vmatpush1.bf16.msra.mxu0 %v3457
      %3479 = vmatprep.subr.bf16.mxu0 0
      %3480 = vmatpush1.bf16.msra.mxu0 %v3458
      %3481 = vmatprep.subr.bf16.mxu0 0
      %3482 = vmatpush1.bf16.msra.mxu0 %v3459
      %3483 = vmatprep.subr.bf16.mxu0 0
      %3484 = vmatpush1.bf16.msra.mxu0 %v3460
      %3485 = vmatprep.subr.bf16.mxu0 0
      %3486 = vmatpush1.bf16.msra.mxu0 0
      %3487 = vmatprep.subr.bf16.mxu0 0
      %3488 = vmatpush1.bf16.msra.mxu0 0
      %3489 = vmatprep.subr.bf16.mxu0 0
      %3490 = vmatpush1.bf16.msra.mxu0 0
      %3491 = vmatprep.subr.bf16.mxu0 0
      %3492 = vmatpush1.bf16.msra.mxu0 0
      %3493 = vmatprep.subr.bf16.mxu0 0
      %3494 = vmatpush1.bf16.msra.mxu0 0
      %3495 = vmatprep.subr.bf16.mxu0 0
      %3496 = vmatpush1.bf16.msra.mxu0 0
      %3497 = vmatprep.subr.bf16.mxu0 0
      %3498 = vmatpush1.bf16.msra.mxu0 0
      %3499 = vmatprep.subr.bf16.mxu0 0
      %3500 = vmatpush1.bf16.msra.mxu0 0
      %3501 = vmatprep.mubr.bf16.mxu0 0
      %3502 = vmatmul.mubr.bf16.gmra.mrb[0].mxu0 %v3080
      %v3503 = vpop.f32.mrb[0].mxu0
      %v3504 = vadd.f32 0.0, %v3503
      %v3505 = vpop.f32.mrb[0].mxu0
      %v3506 = vpop.f32.mrb[0].mxu0
      %v3507 = vadd.f32 0.0, %v3506
      %v3508 = vpop.f32.mrb[0].mxu0
      %3509 = vdwg.mxu0
      %v3510 = vadd.f32 %v3402, %v3504
      %v3511 = vadd.f32 %v3403, %v3507
      %s3512 = scalar_lea.vmem %s3, 256
      %v3513 = vld [vmem:[%s3512] sm:$0xf]
      %v3514 = vld [vmem:[%s3512 + $0x4] sm:$0xf]
      %v3515 = vld [vmem:[%s3512 + $0x8] sm:$0xf]
      %v3516 = vld [vmem:[%s3512 + $0xc] sm:$0xf]
      %v3517 = vld [vmem:[%s3512 + $0x10] sm:$0xf]
      %v3518 = vld [vmem:[%s3512 + $0x14] sm:$0xf]
      %v3519 = vld [vmem:[%s3512 + $0x18] sm:$0xf]
      %v3520 = vld [vmem:[%s3512 + $0x1c] sm:$0xf]
      %v3521 = vld [vmem:[%s3512 + $0x20] sm:$0xf]
      %v3522 = vld [vmem:[%s3512 + $0x24] sm:$0xf]
      %v3523 = vld [vmem:[%s3512 + $0x28] sm:$0xf]
      %v3524 = vld [vmem:[%s3512 + $0x2c] sm:$0xf]
      %v3525 = vld [vmem:[%s3512 + $0x30] sm:$0xf]
      %v3526 = vld [vmem:[%s3512 + $0x34] sm:$0xf]
      %v3527 = vld [vmem:[%s3512 + $0x38] sm:$0xf]
      %v3528 = vld [vmem:[%s3512 + $0x3c] sm:$0xf]
      %v3545 = vunpack.c.l.b16 %v3513
      %v3546 = vunpack.c.l.b16 %v3514
      %v3547 = vunpack.c.l.b16 %v3515
      %v3548 = vunpack.c.l.b16 %v3516
      %v3549 = vunpack.c.l.b16 %v3517
      %v3550 = vunpack.c.l.b16 %v3518
      %v3551 = vunpack.c.l.b16 %v3519
      %v3552 = vunpack.c.l.b16 %v3520
      %v3553 = vunpack.c.l.b16 %v3521
      %v3554 = vunpack.c.l.b16 %v3522
      %v3555 = vunpack.c.l.b16 %v3523
      %v3556 = vunpack.c.l.b16 %v3524
      %v3557 = vunpack.c.l.b16 %v3525
      %v3558 = vunpack.c.l.b16 %v3526
      %v3559 = vunpack.c.l.b16 %v3527
      %v3560 = vunpack.c.l.b16 %v3528
      %v3561 = vpack.c.b16 %v3546, %v3545
      %v3562 = vpack.c.b16 %v3548, %v3547
      %v3563 = vpack.c.b16 %v3550, %v3549
      %v3564 = vpack.c.b16 %v3552, %v3551
      %v3565 = vpack.c.b16 %v3554, %v3553
      %v3566 = vpack.c.b16 %v3556, %v3555
      %v3567 = vpack.c.b16 %v3558, %v3557
      %v3568 = vpack.c.b16 %v3560, %v3559
      %3577 = vmatprep.subr.bf16.mxu0 0
      %3578 = vmatpush1.bf16.msra.mxu0 %v3561
      %3579 = vmatprep.subr.bf16.mxu0 0
      %3580 = vmatpush1.bf16.msra.mxu0 %v3562
      %3581 = vmatprep.subr.bf16.mxu0 0
      %3582 = vmatpush1.bf16.msra.mxu0 %v3563
      %3583 = vmatprep.subr.bf16.mxu0 0
      %3584 = vmatpush1.bf16.msra.mxu0 %v3564
      %3585 = vmatprep.subr.bf16.mxu0 0
      %3586 = vmatpush1.bf16.msra.mxu0 %v3565
      %3587 = vmatprep.subr.bf16.mxu0 0
      %3588 = vmatpush1.bf16.msra.mxu0 %v3566
      %3589 = vmatprep.subr.bf16.mxu0 0
      %3590 = vmatpush1.bf16.msra.mxu0 %v3567
      %3591 = vmatprep.subr.bf16.mxu0 0
      %3592 = vmatpush1.bf16.msra.mxu0 %v3568
      %3593 = vmatprep.subr.bf16.mxu0 0
      %3594 = vmatpush1.bf16.msra.mxu0 0
      %3595 = vmatprep.subr.bf16.mxu0 0
      %3596 = vmatpush1.bf16.msra.mxu0 0
      %3597 = vmatprep.subr.bf16.mxu0 0
      %3598 = vmatpush1.bf16.msra.mxu0 0
      %3599 = vmatprep.subr.bf16.mxu0 0
      %3600 = vmatpush1.bf16.msra.mxu0 0
      %3601 = vmatprep.subr.bf16.mxu0 0
      %3602 = vmatpush1.bf16.msra.mxu0 0
      %3603 = vmatprep.subr.bf16.mxu0 0
      %3604 = vmatpush1.bf16.msra.mxu0 0
      %3605 = vmatprep.subr.bf16.mxu0 0
      %3606 = vmatpush1.bf16.msra.mxu0 0
      %3607 = vmatprep.subr.bf16.mxu0 0
      %3608 = vmatpush1.bf16.msra.mxu0 0
      %3609 = vmatprep.mubr.bf16.mxu0 0
      %3610 = vmatmul.mubr.bf16.gmra.mrb[0].mxu0 %v3081
      %v3611 = vpop.f32.mrb[0].mxu0
      %v3612 = vadd.f32 0.0, %v3611
      %v3613 = vpop.f32.mrb[0].mxu0
      %v3614 = vpop.f32.mrb[0].mxu0
      %v3615 = vadd.f32 0.0, %v3614
      %v3616 = vpop.f32.mrb[0].mxu0
      %3617 = vdwg.mxu0
      %v3618 = vadd.f32 %v3510, %v3612
      %v3619 = vadd.f32 %v3511, %v3615
      %v3620 = vlaneseq
      %v3621 = vshrl.u32 %v3620, 7
      %v3622 = vsub.s32 0, %v3621
      %v3623 = vrot.slane %v3082, %v3622
      %v3624 = vadd.f32 %v3618, %v3623
      %v3625 = vadd.f32 %v3619, %v3623
      %v3626 = vmax.f32 %v3624, 0.0
      %v3627 = vmax.f32 %v3625, 0.0
      %v3628 = vpack.c.bf16 %v3627, %v3626
      %v3629 = vld [vmem:[%s4] sm:$0xf]
      %v3630 = vld [vmem:[%s4 + $0x4] sm:$0xf]
      %v3631 = vld [vmem:[%s4 + $0x8] sm:$0xf]
      %v3632 = vld [vmem:[%s4 + $0xc] sm:$0xf]
      %v3633 = vld [vmem:[%s4 + $0x10] sm:$0xf]
      %v3634 = vld [vmem:[%s4 + $0x14] sm:$0xf]
      %v3635 = vld [vmem:[%s4 + $0x18] sm:$0xf]
      %v3636 = vld [vmem:[%s4 + $0x1c] sm:$0xf]
      %v3637 = vld [vmem:[%s4 + $0x20] sm:$0xf]
      %v3638 = vld [vmem:[%s4 + $0x24] sm:$0xf]
      %v3639 = vld [vmem:[%s4 + $0x28] sm:$0xf]
      %v3640 = vld [vmem:[%s4 + $0x2c] sm:$0xf]
      %v3641 = vld [vmem:[%s4 + $0x30] sm:$0xf]
      %v3642 = vld [vmem:[%s4 + $0x34] sm:$0xf]
      %v3643 = vld [vmem:[%s4 + $0x38] sm:$0xf]
      %v3644 = vld [vmem:[%s4 + $0x3c] sm:$0xf]
      %v3645 = vlaneseq
      %v3646 = vshrl.u32 %v3645, 7
      %v3647 = vsub.s32 0, %v3646
      %v3648 = vrot.slane %v3083, %v3647
      %v3665 = vunpack.c.l.b16 %v3629
      %v3666 = vunpack.c.l.b16 %v3630
      %v3667 = vunpack.c.l.b16 %v3631
      %v3668 = vunpack.c.l.b16 %v3632
      %v3669 = vunpack.c.l.b16 %v3633
      %v3670 = vunpack.c.l.b16 %v3634
      %v3671 = vunpack.c.l.b16 %v3635
      %v3672 = vunpack.c.l.b16 %v3636
      %v3673 = vunpack.c.l.b16 %v3637
      %v3674 = vunpack.c.l.b16 %v3638
      %v3675 = vunpack.c.l.b16 %v3639
      %v3676 = vunpack.c.l.b16 %v3640
      %v3677 = vunpack.c.l.b16 %v3641
      %v3678 = vunpack.c.l.b16 %v3642
      %v3679 = vunpack.c.l.b16 %v3643
      %v3680 = vunpack.c.l.b16 %v3644
      %v3681 = vpack.c.b16 %v3666, %v3665
      %v3682 = vpack.c.b16 %v3668, %v3667
      %v3683 = vpack.c.b16 %v3670, %v3669
      %v3684 = vpack.c.b16 %v3672, %v3671
      %v3685 = vpack.c.b16 %v3674, %v3673
      %v3686 = vpack.c.b16 %v3676, %v3675
      %v3687 = vpack.c.b16 %v3678, %v3677
      %v3688 = vpack.c.b16 %v3680, %v3679
      %3697 = vmatprep.subr.bf16.mxu0 0
      %3698 = vmatpush1.bf16.msra.mxu0 %v3681
      %3699 = vmatprep.subr.bf16.mxu0 0
      %3700 = vmatpush1.bf16.msra.mxu0 %v3682
      %3701 = vmatprep.subr.bf16.mxu0 0
      %3702 = vmatpush1.bf16.msra.mxu0 %v3683
      %3703 = vmatprep.subr.bf16.mxu0 0
      %3704 = vmatpush1.bf16.msra.mxu0 %v3684
      %3705 = vmatprep.subr.bf16.mxu0 0
      %3706 = vmatpush1.bf16.msra.mxu0 %v3685
      %3707 = vmatprep.subr.bf16.mxu0 0
      %3708 = vmatpush1.bf16.msra.mxu0 %v3686
      %3709 = vmatprep.subr.bf16.mxu0 0
      %3710 = vmatpush1.bf16.msra.mxu0 %v3687
      %3711 = vmatprep.subr.bf16.mxu0 0
      %3712 = vmatpush1.bf16.msra.mxu0 %v3688
      %3713 = vmatprep.subr.bf16.mxu0 0
      %3714 = vmatpush1.bf16.msra.mxu0 0
      %3715 = vmatprep.subr.bf16.mxu0 0
      %3716 = vmatpush1.bf16.msra.mxu0 0
      %3717 = vmatprep.subr.bf16.mxu0 0
      %3718 = vmatpush1.bf16.msra.mxu0 0
      %3719 = vmatprep.subr.bf16.mxu0 0
      %3720 = vmatpush1.bf16.msra.mxu0 0
      %3721 = vmatprep.subr.bf16.mxu0 0
      %3722 = vmatpush1.bf16.msra.mxu0 0
      %3723 = vmatprep.subr.bf16.mxu0 0
      %3724 = vmatpush1.bf16.msra.mxu0 0
      %3725 = vmatprep.subr.bf16.mxu0 0
      %3726 = vmatpush1.bf16.msra.mxu0 0
      %3727 = vmatprep.subr.bf16.mxu0 0
      %3728 = vmatpush1.bf16.msra.mxu0 0
      %3729 = vmatprep.mubr.bf16.mxu0 0
      %3730 = vmatmul.mubr.bf16.gmra.mrb[0].mxu0 %v3628
      %v3731 = vpop.f32.mrb[0].mxu0
      %v3732 = vadd.f32 %v3648, %v3731
      %v3733 = vpop.f32.mrb[0].mxu0
      %v3734 = vpop.f32.mrb[0].mxu0
      %v3735 = vadd.f32 %v3648, %v3734
      %v3736 = vpop.f32.mrb[0].mxu0
      %3737 = vdwg.mxu0
      %v3738 = vmax.f32 %v3732, 0.0
      %v3739 = vmax.f32 %v3735, 0.0
      %v3740 = vpack.c.bf16 %v3739, %v3738
      %v3741 = vld [vmem:[%s5] sm:$0xf]
      %v3742 = vld [vmem:[%s5 + $0x4] sm:$0xf]
      %v3743 = vld [vmem:[%s5 + $0x8] sm:$0xf]
      %v3744 = vld [vmem:[%s5 + $0xc] sm:$0xf]
      %v3745 = vld [vmem:[%s5 + $0x10] sm:$0xf]
      %v3746 = vld [vmem:[%s5 + $0x14] sm:$0xf]
      %v3747 = vld [vmem:[%s5 + $0x18] sm:$0xf]
      %v3748 = vld [vmem:[%s5 + $0x1c] sm:$0xf]
      %v3749 = vld [vmem:[%s5 + $0x20] sm:$0xf]
      %v3750 = vld [vmem:[%s5 + $0x24] sm:$0xf]
      %v3751 = vld [vmem:[%s5 + $0x28] sm:$0xf]
      %v3752 = vld [vmem:[%s5 + $0x2c] sm:$0xf]
      %v3753 = vld [vmem:[%s5 + $0x30] sm:$0xf]
      %v3754 = vld [vmem:[%s5 + $0x34] sm:$0xf]
      %v3755 = vld [vmem:[%s5 + $0x38] sm:$0xf]
      %v3756 = vld [vmem:[%s5 + $0x3c] sm:$0xf]
      %v3757 = vlaneseq
      %v3758 = vshrl.u32 %v3757, 7
      %v3759 = vsub.s32 0, %v3758
      %v3760 = vrot.slane %v3084, %v3759
      %v3777 = vunpack.c.l.b16 %v3741
      %v3778 = vunpack.c.l.b16 %v3742
      %v3779 = vunpack.c.l.b16 %v3743
      %v3780 = vunpack.c.l.b16 %v3744
      %v3781 = vunpack.c.l.b16 %v3745
      %v3782 = vunpack.c.l.b16 %v3746
      %v3783 = vunpack.c.l.b16 %v3747
      %v3784 = vunpack.c.l.b16 %v3748
      %v3785 = vunpack.c.l.b16 %v3749
      %v3786 = vunpack.c.l.b16 %v3750
      %v3787 = vunpack.c.l.b16 %v3751
      %v3788 = vunpack.c.l.b16 %v3752
      %v3789 = vunpack.c.l.b16 %v3753
      %v3790 = vunpack.c.l.b16 %v3754
      %v3791 = vunpack.c.l.b16 %v3755
      %v3792 = vunpack.c.l.b16 %v3756
      %v3793 = vpack.c.b16 %v3778, %v3777
      %v3794 = vpack.c.b16 %v3780, %v3779
      %v3795 = vpack.c.b16 %v3782, %v3781
      %v3796 = vpack.c.b16 %v3784, %v3783
      %v3797 = vpack.c.b16 %v3786, %v3785
      %v3798 = vpack.c.b16 %v3788, %v3787
      %v3799 = vpack.c.b16 %v3790, %v3789
      %v3800 = vpack.c.b16 %v3792, %v3791
      %3809 = vmatprep.subr.bf16.mxu0 0
      %3810 = vmatpush1.bf16.msra.mxu0 %v3793
      %3811 = vmatprep.subr.bf16.mxu0 0
      %3812 = vmatpush1.bf16.msra.mxu0 %v3794
      %3813 = vmatprep.subr.bf16.mxu0 0
      %3814 = vmatpush1.bf16.msra.mxu0 %v3795
      %3815 = vmatprep.subr.bf16.mxu0 0
      %3816 = vmatpush1.bf16.msra.mxu0 %v3796
      %3817 = vmatprep.subr.bf16.mxu0 0
      %3818 = vmatpush1.bf16.msra.mxu0 %v3797
      %3819 = vmatprep.subr.bf16.mxu0 0
      %3820 = vmatpush1.bf16.msra.mxu0 %v3798
      %3821 = vmatprep.subr.bf16.mxu0 0
      %3822 = vmatpush1.bf16.msra.mxu0 %v3799
      %3823 = vmatprep.subr.bf16.mxu0 0
      %3824 = vmatpush1.bf16.msra.mxu0 %v3800
      %3825 = vmatprep.subr.bf16.mxu0 0
      %3826 = vmatpush1.bf16.msra.mxu0 0
      %3827 = vmatprep.subr.bf16.mxu0 0
      %3828 = vmatpush1.bf16.msra.mxu0 0
      %3829 = vmatprep.subr.bf16.mxu0 0
      %3830 = vmatpush1.bf16.msra.mxu0 0
      %3831 = vmatprep.subr.bf16.mxu0 0
      %3832 = vmatpush1.bf16.msra.mxu0 0
      %3833 = vmatprep.subr.bf16.mxu0 0
      %3834 = vmatpush1.bf16.msra.mxu0 0
      %3835 = vmatprep.subr.bf16.mxu0 0
      %3836 = vmatpush1.bf16.msra.mxu0 0
      %3837 = vmatprep.subr.bf16.mxu0 0
      %3838 = vmatpush1.bf16.msra.mxu0 0
      %3839 = vmatprep.subr.bf16.mxu0 0
      %3840 = vmatpush1.bf16.msra.mxu0 0
      %3841 = vmatprep.mubr.bf16.mxu0 0
      %3842 = vmatmul.mubr.bf16.gmra.mrb[0].mxu0 %v3740
      %v3843 = vpop.f32.mrb[0].mxu0
      %v3844 = vadd.f32 %v3760, %v3843
      %v3845 = vpop.f32.mrb[0].mxu0
      %v3846 = vpop.f32.mrb[0].mxu0
      %v3847 = vadd.f32 %v3760, %v3846
      %v3848 = vpop.f32.mrb[0].mxu0
      %3849 = vdwg.mxu0
      %3850 = vst [vmem:[%s332] sm:$0xff] %v3844
      %3851 = vst [vmem:[%s332 + $0x8] sm:$0xff] %v3847
      %s3852 = smul.u32 2, %s20
      %p3853 = scmp.lt.s32.totalorder %s3852, 3
      %s3854 = scalar_select %p3853, %s3852, 3
      %s3855 = smul.addr %s3854, 8
      %s3856 = scalar_lea.vmem %s9, %s3855
      // Predicated region
      $region57: #{pnet_forward.1} parent=55 // pred_check
        %p3857 = pneg %p232
      $region58: #{pnet_forward.1} parent=55 // pred_check_branch
        %3859 = sbr.rel (%p3857) target = $region60
      $region59: #{pnet_forward.1} parent=55 // pred_region
        %s3860 = smul.u32 2, %s20
      $region60: #{pnet_forward.1} parent=55 // pred_fallthru
        _
    $region56: #{pnet_forward.1} parent=5 // pred_fallthru
      _
    %p3861 = scmp.le.s32.totalorder 2, %s15
    // Predicated region
    $region61: #{pnet_forward.1} parent=5 // pred_check
      %p3862 = pneg %p3861
    $region62: #{pnet_forward.1} parent=5 // pred_check_branch
      %3864 = sbr.rel (%p3862) target = $region64
    $region63: #{pnet_forward.1} parent=5 // pred_region
      %s3865 = ssub.s32 %s15, 2
      // Predicated region
      $region65: #{pnet_forward.1} parent=63 // pred_check
        %p3866 = pneg %p238
      $region66: #{pnet_forward.1} parent=63 // pred_check_branch
        %3868 = sbr.rel (%p3866) target = $region68
      $region67: #{pnet_forward.1} parent=63 // pred_region
        %s3869 = smul.u32 2, %s21
        %p3870 = scmp.lt.s32.totalorder %s3869, 3
        %s3871 = scalar_select %p3870, %s3869, 3
        %s3872 = smul.addr %s3871, 8
        %s3873 = scalar_lea.vmem %s9, %s3872
      $region68: #{pnet_forward.1} parent=63 // pred_fallthru
        _
    $region64: #{pnet_forward.1} parent=5 // pred_fallthru
      _
  $region6: #{pnet_forward.1} parent=0 // loop_footer
    %s19 = sadd.s32 1, %s15
  $region7: #{pnet_forward.1} parent=0 // loop_footer_branch
    %14 = sbr.rel target = $region3
  $region8: #{pnet_forward.1} parent=0 // loop_exit
    _

</llo_original>
